<compile_context>
chip_gen: v6e
topology: v6e:2x2x1
jax: 0.10.0
libtpu: 0.0.40
codegen_flags: <defaults>
</compile_context>

<pallas_src>
import math
import jax
import jax.numpy as jnp
from jax.experimental import pallas as pl
from jax.experimental.pallas import tpu as pltpu

# ----------------------------- configuration --------------------------------
N_PLAYERS   = 5
N_FEATURES  = 4
CONTEXT_DIM = 32
RNN_DIM     = 32
TARGET_DIM  = 2                 # regressor target (not 'gk', not classifier)
PS          = (108.0, 72.0)     # pitch scale applied to the output
BATCH       = 2
SEQ         = 8
FEAT        = 2 * N_PLAYERS * N_FEATURES   # 40


# ----------------------------- parameter init -------------------------------
def uniform(key, shape, fan_in):
    k = 1.0 / math.sqrt(fan_in)
    return jax.random.uniform(key, shape, jnp.float32, -k, k)


def init_params(key):
    """Raw (PyTorch-structured) parameters — used by the pure-JAX reference."""
    ks = jax.random.split(key, 24)
    D, H, F = CONTEXT_DIM, RNN_DIM, N_FEATURES
    # set encoders (team1 / team2): F->D, ReLU, mean-pool over players, D->D
    enc1 = (uniform(ks[0], (F, D), F), uniform(ks[1], (1, D), F),
            uniform(ks[2], (D, D), D), uniform(ks[3], (1, D), D))
    enc2 = (uniform(ks[4], (F, D), F), uniform(ks[5], (1, D), F),
            uniform(ks[6], (D, D), D), uniform(ks[7], (1, D), D))
    # context_fc: 2D -> D
    wc = uniform(ks[8], (2 * D, D), 2 * D)
    bc = uniform(ks[9], (1, D), 2 * D)
    # LSTM layer 1 (input D) and layer 2 (input H); combined bias = b_ih + b_hh
    lstm1 = (uniform(ks[10], (D, 4 * H), H), uniform(ks[11], (H, 4 * H), H),
             uniform(ks[12], (1, 4 * H), H) + uniform(ks[13], (1, 4 * H), H))
    lstm2 = (uniform(ks[14], (H, 4 * H), H), uniform(ks[15], (H, 4 * H), H),
             uniform(ks[16], (1, 4 * H), H) + uniform(ks[17], (1, 4 * H), H))
    # output_fc: H -> 2*target_dim (then GLU)
    wout = uniform(ks[18], (H, 2 * TARGET_DIM), H)
    bout = uniform(ks[19], (1, 2 * TARGET_DIM), H)
    ps = jnp.array([PS], dtype=jnp.float32)                            # (1, 2)
    return enc1, enc2, wc, bc, lstm1, lstm2, wout, bout, ps


def prepare_fused_params(params):
    """One-time prep: fuse encoders, pooling, context_fc and the ps scale."""
    enc1, enc2, wc, bc, lstm1, lstm2, wout, bout, ps = params
    P, F, D, H, T = N_PLAYERS, N_FEATURES, CONTEXT_DIM, RNN_DIM, TARGET_DIM
    w1a, b1a, w2a, b2a = enc1
    w1b, b1b, w2b, b2b = enc2

    # W1_big (2PF, 2PD): block-diagonal per-player first layer of both encoders.
    w1_big = jnp.zeros((2 * P * F, 2 * P * D), jnp.float32)
    for p in range(P):
        w1_big = w1_big.at[p * F:(p + 1) * F, p * D:(p + 1) * D].set(w1a)
        w1_big = w1_big.at[(P + p) * F:(P + p + 1) * F,
                           (P + p) * D:(P + p + 1) * D].set(w1b)
    b1_big = jnp.concatenate([jnp.tile(b1a, (1, P)), jnp.tile(b1b, (1, P))], axis=1)

    # W2_big (2PD, 2D): player mean-pool folded into the second encoder layer.
    w2_big = jnp.zeros((2 * P * D, 2 * D), jnp.float32)
    for p in range(P):
        w2_big = w2_big.at[p * D:(p + 1) * D, :D].set(w2a / P)
        w2_big = w2_big.at[(P + p) * D:(P + p + 1) * D, D:].set(w2b / P)
    b2_big = jnp.concatenate([b2a, b2b], axis=1)

    # No nonlinearity between (h @ w2_big + b2_big) and (@ wc): fold wc/bc in.
    hp = jax.lax.Precision.HIGHEST
    w2c = jnp.dot(w2_big, wc, precision=hp)                # (2PD, D) = (320, 32)
    b2c = jnp.dot(b2_big, wc, precision=hp) + bc           # (1, D)

    # LSTM weights kept separate (Wih1 is pre-applied to all time steps at once).
    wih1, whh1, bl1 = lstm1
    wih2, whh2, bl2 = lstm2

    # Fold pitch scale into the linear 'a' half of output_fc (GLU is a*sigmoid(b)).
    wout_f = jnp.concatenate([wout[:, :T] * ps, wout[:, T:]], axis=1)
    bout_f = jnp.concatenate([bout[:, :T] * ps, bout[:, T:]], axis=1)

    return (w1_big, b1_big, w2c, b2c,
            wih1, whh1, bl1, wih2, whh2, bl2, wout_f, bout_f)


# ------------------------------ fused kernel ---------------------------------
def pilstm_forward(x_bsd, fused):
    """x_bsd: [batch, seq, 2*n_players*n_features] (batch-first, like nn.Module).
    Returns [batch, seq, TARGET_DIM]."""
    (w1, b1, w2c, b2c, wih1, whh1, bl1, wih2, whh2, bl2, wout, bout) = fused
    batch, seq, feat = x_bsd.shape
    H, T = RNN_DIM, TARGET_DIM

    def kernel(x_ref, w1_ref, b1_ref, w2c_ref, b2c_ref,
               wih1_ref, whh1_ref, bl1_ref, wih2_ref, whh2_ref, bl2_ref,
               wout_ref, bout_ref, out_ref, h2_scr):
        # ---- context encoders + context_fc (wc folded into w2c): 2 matmuls ----
        x = x_ref[0]                                                  # (seq, 40)
        hx = jnp.maximum(
            jnp.dot(x, w1_ref[...], preferred_element_type=jnp.float32)
            + b1_ref[...], 0.0)                                       # (seq, 320)
        z = jnp.maximum(
            jnp.dot(hx, w2c_ref[...], preferred_element_type=jnp.float32)
            + b2c_ref[...], 0.0)                                      # (seq, 32)

        # ---- layer-1 input projection hoisted out of the recurrence ----------
        gin1 = jnp.dot(z, wih1_ref[...],
                       preferred_element_type=jnp.float32) + bl1_ref[...]  # (seq, 4H)

        whh1v = whh1_ref[...]
        wih2v, whh2v, bl2v = wih2_ref[...], whh2_ref[...], bl2_ref[...]

        def gates_to_state(g, cprev):
            # One full-vreg sigmoid + one full-vreg tanh (EUP has slack).
            sig = jax.nn.sigmoid(g)
            tnh = jnp.tanh(g)
            i = sig[:, 0 * H:1 * H]          # PyTorch gate order: i, f, g, o
            f = sig[:, 1 * H:2 * H]
            gg = tnh[:, 2 * H:3 * H]
            o = sig[:, 3 * H:4 * H]
            c_new = f * cprev + i * gg
            h_new = o * jnp.tanh(c_new)
            return h_new, c_new

        # ---- 2-layer LSTM, time loop statically unrolled, state in vregs -----
        zero = jnp.zeros((1, H), jnp.float32)
        h1, c1, h2, c2 = zero, zero, zero, zero
        for t in range(seq):
            g1 = gin1[t:t + 1, :] + jnp.dot(
                h1, whh1v, preferred_element_type=jnp.float32)
            h1, c1 = gates_to_state(g1, c1)
            g2 = (jnp.dot(h1, wih2v, preferred_element_type=jnp.float32)
                  + jnp.dot(h2, whh2v, preferred_element_type=jnp.float32)
                  + bl2v)
            h2, c2 = gates_to_state(g2, c2)
            h2_scr[t:t + 1, :] = h2          # per-step store, overlaps recurrence

        # ---- output_fc (Linear + GLU, ps folded) once over all steps ---------
        y = jnp.dot(h2_scr[...], wout_ref[...],
                    preferred_element_type=jnp.float32) + bout_ref[...]  # (seq, 2T)
        out_ref[0] = y[:, :T] * jax.nn.sigmoid(y[:, T:])                 # (seq, T)

    weights = (w1, b1, w2c, b2c, wih1, whh1, bl1, wih2, whh2, bl2, wout, bout)
    # Grid-index-invariant weight specs: DMA'd once, stay resident in VMEM.
    wspec = lambda a: pl.BlockSpec(a.shape, lambda b, nd=a.ndim: (0,) * nd)

    out = pl.pallas_call(
        kernel,
        out_shape=jax.ShapeDtypeStruct((batch, seq, T), jnp.float32),
        grid_spec=pltpu.PrefetchScalarGridSpec(
            num_scalar_prefetch=0,
            grid=(batch,),                         # one batch element per grid step
            in_specs=[pl.BlockSpec((1, seq, feat), lambda b: (b, 0, 0))]
                     + [wspec(a) for a in weights],
            out_specs=pl.BlockSpec((1, seq, T), lambda b: (b, 0, 0)),
            scratch_shapes=[pltpu.VMEM((seq, H), jnp.float32)]),
        compiler_params=pltpu.CompilerParams(
            dimension_semantics=("parallel",)),    # v7x: batch split across 2 TCs
    )(x_bsd, *weights)

    return out                                      # already batch-first


# ------------------------------- pure-JAX ref --------------------------------
def pilstm_ref(x_bsd, params):
    enc1, enc2, wc, bc, lstm1, lstm2, wout, bout, ps = params
    x = jnp.transpose(x_bsd, (1, 0, 2))
    seq, batch, _ = x.shape
    npf = N_PLAYERS * N_FEATURES

    def enc(xp, p):
        w1, b1, w2, b2 = p
        h = jax.nn.relu(xp @ w1 + b1)
        return h.mean(axis=1) @ w2 + b2

    x1 = x[:, :, :npf].reshape(seq * batch, N_PLAYERS, N_FEATURES)
    x2 = x[:, :, npf:].reshape(seq * batch, N_PLAYERS, N_FEATURES)
    z = jax.nn.relu(jnp.concatenate([enc(x1, enc1), enc(x2, enc2)], -1) @ wc + bc)
    z = z.reshape(seq, batch, CONTEXT_DIM)

    H = RNN_DIM

    def cell(x_t, h, c, p):
        wih, whh, b = p
        g = x_t @ wih + h @ whh + b
        i, f, gg, o = (jax.nn.sigmoid(g[:, :H]), jax.nn.sigmoid(g[:, H:2*H]),
                       jnp.tanh(g[:, 2*H:3*H]), jax.nn.sigmoid(g[:, 3*H:]))
        c = f * c + i * gg
        return o * jnp.tanh(c), c

    def step(carry, x_t):
        h1, c1, h2, c2 = carry
        h1, c1 = cell(x_t, h1, c1, lstm1)
        h2, c2 = cell(h1, h2, c2, lstm2)
        y = h2 @ wout + bout
        o = (y[:, :TARGET_DIM] * jax.nn.sigmoid(y[:, TARGET_DIM:])) * ps
        return (h1, c1, h2, c2), o

    zero = jnp.zeros((batch, H), jnp.float32)
    _, outs = jax.lax.scan(step, (zero, zero, zero, zero), z)
    return jnp.transpose(outs, (1, 0, 2))


# ----------------------------------- main ------------------------------------
if __name__ == "__main__":
    key = jax.random.PRNGKey(0)
    k_param, k_x = jax.random.split(key)
    params = init_params(k_param)
    fused = prepare_fused_params(params)
    x = jax.random.normal(k_x, (BATCH, SEQ, FEAT), dtype=jnp.float32)

    out = pilstm_forward(x, fused)
    out = jax.block_until_ready(out)

    ref = pilstm_ref(x, params)
    assert out.shape == (BATCH, SEQ, TARGET_DIM), out.shape
    assert jnp.allclose(out, ref, atol=1e-4, rtol=1e-4), float(jnp.abs(out - ref).max())

    print("KERNEL_OK")
</pallas_src>

<mosaic_0001>
module attributes {stable_mosaic.version = 11 : i64} {
  func.func @kernel(%arg0: i32, %arg1: memref<1x8x40xf32, #tpu.memory_space<vmem>>, %arg2: memref<40x320xf32, #tpu.memory_space<vmem>>, %arg3: memref<1x320xf32, #tpu.memory_space<vmem>>, %arg4: memref<320x32xf32, #tpu.memory_space<vmem>>, %arg5: memref<1x32xf32, #tpu.memory_space<vmem>>, %arg6: memref<32x128xf32, #tpu.memory_space<vmem>>, %arg7: memref<32x128xf32, #tpu.memory_space<vmem>>, %arg8: memref<1x128xf32, #tpu.memory_space<vmem>>, %arg9: memref<32x128xf32, #tpu.memory_space<vmem>>, %arg10: memref<32x128xf32, #tpu.memory_space<vmem>>, %arg11: memref<1x128xf32, #tpu.memory_space<vmem>>, %arg12: memref<32x4xf32, #tpu.memory_space<vmem>>, %arg13: memref<1x4xf32, #tpu.memory_space<vmem>>, %arg14: memref<1x8x2xf32, #tpu.memory_space<vmem>>, %arg15: memref<8x32xf32, #tpu.memory_space<vmem>>) attributes {dimension_semantics = [#tpu.dimension_semantics<parallel>], iteration_bounds = array<i64: 2>, scalar_prefetch = 0 : i64, scratch_operands = 1 : i64, tpu.core_type = #tpu.core_type<tc>, window_params = [{transform_indices = @transform_0, window_bounds = array<i64: 1, 8, 40>}, {pipeline_mode = #tpu.pipeline_mode<synchronous>, transform_indices = @transform_1, window_bounds = array<i64: 40, 320>}, {pipeline_mode = #tpu.pipeline_mode<synchronous>, transform_indices = @transform_2, window_bounds = array<i64: 1, 320>}, {pipeline_mode = #tpu.pipeline_mode<synchronous>, transform_indices = @transform_3, window_bounds = array<i64: 320, 32>}, {pipeline_mode = #tpu.pipeline_mode<synchronous>, transform_indices = @transform_4, window_bounds = array<i64: 1, 32>}, {pipeline_mode = #tpu.pipeline_mode<synchronous>, transform_indices = @transform_5, window_bounds = array<i64: 32, 128>}, {pipeline_mode = #tpu.pipeline_mode<synchronous>, transform_indices = @transform_6, window_bounds = array<i64: 32, 128>}, {pipeline_mode = #tpu.pipeline_mode<synchronous>, transform_indices = @transform_7, window_bounds = array<i64: 1, 128>}, {pipeline_mode = #tpu.pipeline_mode<synchronous>, transform_indices = @transform_8, window_bounds = array<i64: 32, 128>}, {pipeline_mode = #tpu.pipeline_mode<synchronous>, transform_indices = @transform_9, window_bounds = array<i64: 32, 128>}, {pipeline_mode = #tpu.pipeline_mode<synchronous>, transform_indices = @transform_10, window_bounds = array<i64: 1, 128>}, {pipeline_mode = #tpu.pipeline_mode<synchronous>, transform_indices = @transform_11, window_bounds = array<i64: 32, 4>}, {pipeline_mode = #tpu.pipeline_mode<synchronous>, transform_indices = @transform_12, window_bounds = array<i64: 1, 4>}, {transform_indices = @transform_13, window_bounds = array<i64: 1, 8, 2>}]} {
    %c0 = arith.constant 0 : index
    %c0_0 = arith.constant 0 : index
    %c0_1 = arith.constant 0 : index
    %0 = vector.load %arg1[%c0, %c0_0, %c0_1] : memref<1x8x40xf32, #tpu.memory_space<vmem>>, vector<1x8x40xf32>
    %1 = vector.shape_cast %0 : vector<1x8x40xf32> to vector<8x40xf32>
    %c0_2 = arith.constant 0 : index
    %c0_3 = arith.constant 0 : index
    %2 = vector.load %arg2[%c0_2, %c0_3] : memref<40x320xf32, #tpu.memory_space<vmem>>, vector<40x320xf32>
    %cst = arith.constant dense<0.000000e+00> : vector<8x320xf32>
    %3 = tpu.matmul %1, %2, %cst {dimension_numbers = #tpu.dot_dimension_numbers<[1], [0], [0], [1], [0, 0, 1, 1], [], []>} : vector<8x40xf32>, vector<40x320xf32>, vector<8x320xf32> -> vector<8x320xf32>
    %c0_4 = arith.constant 0 : index
    %c0_5 = arith.constant 0 : index
    %4 = vector.load %arg3[%c0_4, %c0_5] : memref<1x320xf32, #tpu.memory_space<vmem>>, vector<1x320xf32>
    %5 = vector.broadcast %4 : vector<1x320xf32> to vector<8x320xf32>
    %6 = arith.addf %3, %5 : vector<8x320xf32>
    %cst_6 = arith.constant 0.000000e+00 : f32
    %7 = vector.broadcast %cst_6 : f32 to vector<8x320xf32>
    %8 = arith.maximumf %6, %7 : vector<8x320xf32>
    %c0_7 = arith.constant 0 : index
    %c0_8 = arith.constant 0 : index
    %9 = vector.load %arg4[%c0_7, %c0_8] : memref<320x32xf32, #tpu.memory_space<vmem>>, vector<320x32xf32>
    %cst_9 = arith.constant dense<0.000000e+00> : vector<8x32xf32>
    %10 = tpu.matmul %8, %9, %cst_9 {dimension_numbers = #tpu.dot_dimension_numbers<[1], [0], [0], [1], [0, 0, 1, 1], [], []>} : vector<8x320xf32>, vector<320x32xf32>, vector<8x32xf32> -> vector<8x32xf32>
    %c0_10 = arith.constant 0 : index
    %c0_11 = arith.constant 0 : index
    %11 = vector.load %arg5[%c0_10, %c0_11] : memref<1x32xf32, #tpu.memory_space<vmem>>, vector<1x32xf32>
    %12 = vector.broadcast %11 : vector<1x32xf32> to vector<8x32xf32>
    %13 = arith.addf %10, %12 : vector<8x32xf32>
    %cst_12 = arith.constant 0.000000e+00 : f32
    %14 = vector.broadcast %cst_12 : f32 to vector<8x32xf32>
    %15 = arith.maximumf %13, %14 : vector<8x32xf32>
    %c0_13 = arith.constant 0 : index
    %c0_14 = arith.constant 0 : index
    %16 = vector.load %arg6[%c0_13, %c0_14] : memref<32x128xf32, #tpu.memory_space<vmem>>, vector<32x128xf32>
    %cst_15 = arith.constant dense<0.000000e+00> : vector<8x128xf32>
    %17 = tpu.matmul %15, %16, %cst_15 {dimension_numbers = #tpu.dot_dimension_numbers<[1], [0], [0], [1], [0, 0, 1, 1], [], []>} : vector<8x32xf32>, vector<32x128xf32>, vector<8x128xf32> -> vector<8x128xf32>
    %c0_16 = arith.constant 0 : index
    %c0_17 = arith.constant 0 : index
    %18 = vector.load %arg8[%c0_16, %c0_17] : memref<1x128xf32, #tpu.memory_space<vmem>>, vector<1x128xf32>
    %19 = vector.broadcast %18 : vector<1x128xf32> to vector<8x128xf32>
    %20 = arith.addf %17, %19 : vector<8x128xf32>
    %c0_18 = arith.constant 0 : index
    %c0_19 = arith.constant 0 : index
    %21 = vector.load %arg7[%c0_18, %c0_19] : memref<32x128xf32, #tpu.memory_space<vmem>>, vector<32x128xf32>
    %c0_20 = arith.constant 0 : index
    %c0_21 = arith.constant 0 : index
    %22 = vector.load %arg9[%c0_20, %c0_21] : memref<32x128xf32, #tpu.memory_space<vmem>>, vector<32x128xf32>
    %c0_22 = arith.constant 0 : index
    %c0_23 = arith.constant 0 : index
    %23 = vector.load %arg10[%c0_22, %c0_23] : memref<32x128xf32, #tpu.memory_space<vmem>>, vector<32x128xf32>
    %c0_24 = arith.constant 0 : index
    %c0_25 = arith.constant 0 : index
    %24 = vector.load %arg11[%c0_24, %c0_25] : memref<1x128xf32, #tpu.memory_space<vmem>>, vector<1x128xf32>
    %cst_26 = arith.constant 0.000000e+00 : f32
    %25 = vector.broadcast %cst_26 : f32 to vector<1x32xf32>
    %26 = vector.extract_strided_slice %20 {offsets = [0, 0], sizes = [1, 128], strides = [1, 1]} : vector<8x128xf32> to vector<1x128xf32>
    %cst_27 = arith.constant dense<0.000000e+00> : vector<1x128xf32>
    %27 = tpu.matmul %25, %21, %cst_27 {dimension_numbers = #tpu.dot_dimension_numbers<[1], [0], [0], [1], [0, 0, 1, 1], [], []>} : vector<1x32xf32>, vector<32x128xf32>, vector<1x128xf32> -> vector<1x128xf32>
    %28 = arith.addf %26, %27 : vector<1x128xf32>
    %29 = arith.negf %28 : vector<1x128xf32>
    %30 = math.exp %29 : vector<1x128xf32>
    %cst_28 = arith.constant 1.000000e+00 : f32
    %31 = vector.broadcast %cst_28 : f32 to vector<1x128xf32>
    %32 = arith.addf %31, %30 : vector<1x128xf32>
    %33 = arith.divf %31, %32 : vector<1x128xf32>
    %34 = math.tanh %28 : vector<1x128xf32>
    %35 = vector.extract_strided_slice %33 {offsets = [0, 0], sizes = [1, 32], strides = [1, 1]} : vector<1x128xf32> to vector<1x32xf32>
    %36 = vector.extract_strided_slice %33 {offsets = [0, 32], sizes = [1, 32], strides = [1, 1]} : vector<1x128xf32> to vector<1x32xf32>
    %37 = vector.extract_strided_slice %34 {offsets = [0, 64], sizes = [1, 32], strides = [1, 1]} : vector<1x128xf32> to vector<1x32xf32>
    %38 = vector.extract_strided_slice %33 {offsets = [0, 96], sizes = [1, 32], strides = [1, 1]} : vector<1x128xf32> to vector<1x32xf32>
    %39 = arith.mulf %36, %25 : vector<1x32xf32>
    %40 = arith.mulf %35, %37 : vector<1x32xf32>
    %41 = arith.addf %39, %40 : vector<1x32xf32>
    %42 = math.tanh %41 : vector<1x32xf32>
    %43 = arith.mulf %38, %42 : vector<1x32xf32>
    %cst_29 = arith.constant dense<0.000000e+00> : vector<1x128xf32>
    %44 = tpu.matmul %43, %22, %cst_29 {dimension_numbers = #tpu.dot_dimension_numbers<[1], [0], [0], [1], [0, 0, 1, 1], [], []>} : vector<1x32xf32>, vector<32x128xf32>, vector<1x128xf32> -> vector<1x128xf32>
    %cst_30 = arith.constant dense<0.000000e+00> : vector<1x128xf32>
    %45 = tpu.matmul %25, %23, %cst_30 {dimension_numbers = #tpu.dot_dimension_numbers<[1], [0], [0], [1], [0, 0, 1, 1], [], []>} : vector<1x32xf32>, vector<32x128xf32>, vector<1x128xf32> -> vector<1x128xf32>
    %46 = arith.addf %44, %45 : vector<1x128xf32>
    %47 = arith.addf %46, %24 : vector<1x128xf32>
    %48 = arith.negf %47 : vector<1x128xf32>
    %49 = math.exp %48 : vector<1x128xf32>
    %cst_31 = arith.constant 1.000000e+00 : f32
    %50 = vector.broadcast %cst_31 : f32 to vector<1x128xf32>
    %51 = arith.addf %50, %49 : vector<1x128xf32>
    %52 = arith.divf %50, %51 : vector<1x128xf32>
    %53 = math.tanh %47 : vector<1x128xf32>
    %54 = vector.extract_strided_slice %52 {offsets = [0, 0], sizes = [1, 32], strides = [1, 1]} : vector<1x128xf32> to vector<1x32xf32>
    %55 = vector.extract_strided_slice %52 {offsets = [0, 32], sizes = [1, 32], strides = [1, 1]} : vector<1x128xf32> to vector<1x32xf32>
    %56 = vector.extract_strided_slice %53 {offsets = [0, 64], sizes = [1, 32], strides = [1, 1]} : vector<1x128xf32> to vector<1x32xf32>
    %57 = vector.extract_strided_slice %52 {offsets = [0, 96], sizes = [1, 32], strides = [1, 1]} : vector<1x128xf32> to vector<1x32xf32>
    %58 = arith.mulf %55, %25 : vector<1x32xf32>
    %59 = arith.mulf %54, %56 : vector<1x32xf32>
    %60 = arith.addf %58, %59 : vector<1x32xf32>
    %61 = math.tanh %60 : vector<1x32xf32>
    %62 = arith.mulf %57, %61 : vector<1x32xf32>
    %c0_32 = arith.constant 0 : index
    %c0_33 = arith.constant 0 : index
    %63 = vector.load %arg15[%c0_32, %c0_33] : memref<8x32xf32, #tpu.memory_space<vmem>>, vector<1x32xf32>
    tpu.vector_store %arg15[%c0_32, %c0_33], %62 {strides = array<i32>} : memref<8x32xf32, #tpu.memory_space<vmem>>, vector<1x32xf32>,
    %64 = vector.extract_strided_slice %20 {offsets = [1, 0], sizes = [1, 128], strides = [1, 1]} : vector<8x128xf32> to vector<1x128xf32>
    %cst_34 = arith.constant dense<0.000000e+00> : vector<1x128xf32>
    %65 = tpu.matmul %43, %21, %cst_34 {dimension_numbers = #tpu.dot_dimension_numbers<[1], [0], [0], [1], [0, 0, 1, 1], [], []>} : vector<1x32xf32>, vector<32x128xf32>, vector<1x128xf32> -> vector<1x128xf32>
    %66 = arith.addf %64, %65 : vector<1x128xf32>
    %67 = arith.negf %66 : vector<1x128xf32>
    %68 = math.exp %67 : vector<1x128xf32>
    %cst_35 = arith.constant 1.000000e+00 : f32
    %69 = vector.broadcast %cst_35 : f32 to vector<1x128xf32>
    %70 = arith.addf %69, %68 : vector<1x128xf32>
    %71 = arith.divf %69, %70 : vector<1x128xf32>
    %72 = math.tanh %66 : vector<1x128xf32>
    %73 = vector.extract_strided_slice %71 {offsets = [0, 0], sizes = [1, 32], strides = [1, 1]} : vector<1x128xf32> to vector<1x32xf32>
    %74 = vector.extract_strided_slice %71 {offsets = [0, 32], sizes = [1, 32], strides = [1, 1]} : vector<1x128xf32> to vector<1x32xf32>
    %75 = vector.extract_strided_slice %72 {offsets = [0, 64], sizes = [1, 32], strides = [1, 1]} : vector<1x128xf32> to vector<1x32xf32>
    %76 = vector.extract_strided_slice %71 {offsets = [0, 96], sizes = [1, 32], strides = [1, 1]} : vector<1x128xf32> to vector<1x32xf32>
    %77 = arith.mulf %74, %41 : vector<1x32xf32>
    %78 = arith.mulf %73, %75 : vector<1x32xf32>
    %79 = arith.addf %77, %78 : vector<1x32xf32>
    %80 = math.tanh %79 : vector<1x32xf32>
    %81 = arith.mulf %76, %80 : vector<1x32xf32>
    %cst_36 = arith.constant dense<0.000000e+00> : vector<1x128xf32>
    %82 = tpu.matmul %81, %22, %cst_36 {dimension_numbers = #tpu.dot_dimension_numbers<[1], [0], [0], [1], [0, 0, 1, 1], [], []>} : vector<1x32xf32>, vector<32x128xf32>, vector<1x128xf32> -> vector<1x128xf32>
    %cst_37 = arith.constant dense<0.000000e+00> : vector<1x128xf32>
    %83 = tpu.matmul %62, %23, %cst_37 {dimension_numbers = #tpu.dot_dimension_numbers<[1], [0], [0], [1], [0, 0, 1, 1], [], []>} : vector<1x32xf32>, vector<32x128xf32>, vector<1x128xf32> -> vector<1x128xf32>
    %84 = arith.addf %82, %83 : vector<1x128xf32>
    %85 = arith.addf %84, %24 : vector<1x128xf32>
    %86 = arith.negf %85 : vector<1x128xf32>
    %87 = math.exp %86 : vector<1x128xf32>
    %cst_38 = arith.constant 1.000000e+00 : f32
    %88 = vector.broadcast %cst_38 : f32 to vector<1x128xf32>
    %89 = arith.addf %88, %87 : vector<1x128xf32>
    %90 = arith.divf %88, %89 : vector<1x128xf32>
    %91 = math.tanh %85 : vector<1x128xf32>
    %92 = vector.extract_strided_slice %90 {offsets = [0, 0], sizes = [1, 32], strides = [1, 1]} : vector<1x128xf32> to vector<1x32xf32>
    %93 = vector.extract_strided_slice %90 {offsets = [0, 32], sizes = [1, 32], strides = [1, 1]} : vector<1x128xf32> to vector<1x32xf32>
    %94 = vector.extract_strided_slice %91 {offsets = [0, 64], sizes = [1, 32], strides = [1, 1]} : vector<1x128xf32> to vector<1x32xf32>
    %95 = vector.extract_strided_slice %90 {offsets = [0, 96], sizes = [1, 32], strides = [1, 1]} : vector<1x128xf32> to vector<1x32xf32>
    %96 = arith.mulf %93, %60 : vector<1x32xf32>
    %97 = arith.mulf %92, %94 : vector<1x32xf32>
    %98 = arith.addf %96, %97 : vector<1x32xf32>
    %99 = math.tanh %98 : vector<1x32xf32>
    %100 = arith.mulf %95, %99 : vector<1x32xf32>
    %c1 = arith.constant 1 : index
    %c0_39 = arith.constant 0 : index
    %101 = vector.load %arg15[%c1, %c0_39] : memref<8x32xf32, #tpu.memory_space<vmem>>, vector<1x32xf32>
    tpu.vector_store %arg15[%c1, %c0_39], %100 {strides = array<i32>} : memref<8x32xf32, #tpu.memory_space<vmem>>, vector<1x32xf32>,
    %102 = vector.extract_strided_slice %20 {offsets = [2, 0], sizes = [1, 128], strides = [1, 1]} : vector<8x128xf32> to vector<1x128xf32>
    %cst_40 = arith.constant dense<0.000000e+00> : vector<1x128xf32>
    %103 = tpu.matmul %81, %21, %cst_40 {dimension_numbers = #tpu.dot_dimension_numbers<[1], [0], [0], [1], [0, 0, 1, 1], [], []>} : vector<1x32xf32>, vector<32x128xf32>, vector<1x128xf32> -> vector<1x128xf32>
    %104 = arith.addf %102, %103 : vector<1x128xf32>
    %105 = arith.negf %104 : vector<1x128xf32>
    %106 = math.exp %105 : vector<1x128xf32>
    %cst_41 = arith.constant 1.000000e+00 : f32
    %107 = vector.broadcast %cst_41 : f32 to vector<1x128xf32>
    %108 = arith.addf %107, %106 : vector<1x128xf32>
    %109 = arith.divf %107, %108 : vector<1x128xf32>
    %110 = math.tanh %104 : vector<1x128xf32>
    %111 = vector.extract_strided_slice %109 {offsets = [0, 0], sizes = [1, 32], strides = [1, 1]} : vector<1x128xf32> to vector<1x32xf32>
    %112 = vector.extract_strided_slice %109 {offsets = [0, 32], sizes = [1, 32], strides = [1, 1]} : vector<1x128xf32> to vector<1x32xf32>
    %113 = vector.extract_strided_slice %110 {offsets = [0, 64], sizes = [1, 32], strides = [1, 1]} : vector<1x128xf32> to vector<1x32xf32>
    %114 = vector.extract_strided_slice %109 {offsets = [0, 96], sizes = [1, 32], strides = [1, 1]} : vector<1x128xf32> to vector<1x32xf32>
    %115 = arith.mulf %112, %79 : vector<1x32xf32>
    %116 = arith.mulf %111, %113 : vector<1x32xf32>
    %117 = arith.addf %115, %116 : vector<1x32xf32>
    %118 = math.tanh %117 : vector<1x32xf32>
    %119 = arith.mulf %114, %118 : vector<1x32xf32>
    %cst_42 = arith.constant dense<0.000000e+00> : vector<1x128xf32>
    %120 = tpu.matmul %119, %22, %cst_42 {dimension_numbers = #tpu.dot_dimension_numbers<[1], [0], [0], [1], [0, 0, 1, 1], [], []>} : vector<1x32xf32>, vector<32x128xf32>, vector<1x128xf32> -> vector<1x128xf32>
    %cst_43 = arith.constant dense<0.000000e+00> : vector<1x128xf32>
    %121 = tpu.matmul %100, %23, %cst_43 {dimension_numbers = #tpu.dot_dimension_numbers<[1], [0], [0], [1], [0, 0, 1, 1], [], []>} : vector<1x32xf32>, vector<32x128xf32>, vector<1x128xf32> -> vector<1x128xf32>
    %122 = arith.addf %120, %121 : vector<1x128xf32>
    %123 = arith.addf %122, %24 : vector<1x128xf32>
    %124 = arith.negf %123 : vector<1x128xf32>
    %125 = math.exp %124 : vector<1x128xf32>
    %cst_44 = arith.constant 1.000000e+00 : f32
    %126 = vector.broadcast %cst_44 : f32 to vector<1x128xf32>
    %127 = arith.addf %126, %125 : vector<1x128xf32>
    %128 = arith.divf %126, %127 : vector<1x128xf32>
    %129 = math.tanh %123 : vector<1x128xf32>
    %130 = vector.extract_strided_slice %128 {offsets = [0, 0], sizes = [1, 32], strides = [1, 1]} : vector<1x128xf32> to vector<1x32xf32>
    %131 = vector.extract_strided_slice %128 {offsets = [0, 32], sizes = [1, 32], strides = [1, 1]} : vector<1x128xf32> to vector<1x32xf32>
    %132 = vector.extract_strided_slice %129 {offsets = [0, 64], sizes = [1, 32], strides = [1, 1]} : vector<1x128xf32> to vector<1x32xf32>
    %133 = vector.extract_strided_slice %128 {offsets = [0, 96], sizes = [1, 32], strides = [1, 1]} : vector<1x128xf32> to vector<1x32xf32>
    %134 = arith.mulf %131, %98 : vector<1x32xf32>
    %135 = arith.mulf %130, %132 : vector<1x32xf32>
    %136 = arith.addf %134, %135 : vector<1x32xf32>
    %137 = math.tanh %136 : vector<1x32xf32>
    %138 = arith.mulf %133, %137 : vector<1x32xf32>
    %c2 = arith.constant 2 : index
    %c0_45 = arith.constant 0 : index
    %139 = vector.load %arg15[%c2, %c0_45] : memref<8x32xf32, #tpu.memory_space<vmem>>, vector<1x32xf32>
    tpu.vector_store %arg15[%c2, %c0_45], %138 {strides = array<i32>} : memref<8x32xf32, #tpu.memory_space<vmem>>, vector<1x32xf32>,
    %140 = vector.extract_strided_slice %20 {offsets = [3, 0], sizes = [1, 128], strides = [1, 1]} : vector<8x128xf32> to vector<1x128xf32>
    %cst_46 = arith.constant dense<0.000000e+00> : vector<1x128xf32>
    %141 = tpu.matmul %119, %21, %cst_46 {dimension_numbers = #tpu.dot_dimension_numbers<[1], [0], [0], [1], [0, 0, 1, 1], [], []>} : vector<1x32xf32>, vector<32x128xf32>, vector<1x128xf32> -> vector<1x128xf32>
    %142 = arith.addf %140, %141 : vector<1x128xf32>
    %143 = arith.negf %142 : vector<1x128xf32>
    %144 = math.exp %143 : vector<1x128xf32>
    %cst_47 = arith.constant 1.000000e+00 : f32
    %145 = vector.broadcast %cst_47 : f32 to vector<1x128xf32>
    %146 = arith.addf %145, %144 : vector<1x128xf32>
    %147 = arith.divf %145, %146 : vector<1x128xf32>
    %148 = math.tanh %142 : vector<1x128xf32>
    %149 = vector.extract_strided_slice %147 {offsets = [0, 0], sizes = [1, 32], strides = [1, 1]} : vector<1x128xf32> to vector<1x32xf32>
    %150 = vector.extract_strided_slice %147 {offsets = [0, 32], sizes = [1, 32], strides = [1, 1]} : vector<1x128xf32> to vector<1x32xf32>
    %151 = vector.extract_strided_slice %148 {offsets = [0, 64], sizes = [1, 32], strides = [1, 1]} : vector<1x128xf32> to vector<1x32xf32>
    %152 = vector.extract_strided_slice %147 {offsets = [0, 96], sizes = [1, 32], strides = [1, 1]} : vector<1x128xf32> to vector<1x32xf32>
    %153 = arith.mulf %150, %117 : vector<1x32xf32>
    %154 = arith.mulf %149, %151 : vector<1x32xf32>
    %155 = arith.addf %153, %154 : vector<1x32xf32>
    %156 = math.tanh %155 : vector<1x32xf32>
    %157 = arith.mulf %152, %156 : vector<1x32xf32>
    %cst_48 = arith.constant dense<0.000000e+00> : vector<1x128xf32>
    %158 = tpu.matmul %157, %22, %cst_48 {dimension_numbers = #tpu.dot_dimension_numbers<[1], [0], [0], [1], [0, 0, 1, 1], [], []>} : vector<1x32xf32>, vector<32x128xf32>, vector<1x128xf32> -> vector<1x128xf32>
    %cst_49 = arith.constant dense<0.000000e+00> : vector<1x128xf32>
    %159 = tpu.matmul %138, %23, %cst_49 {dimension_numbers = #tpu.dot_dimension_numbers<[1], [0], [0], [1], [0, 0, 1, 1], [], []>} : vector<1x32xf32>, vector<32x128xf32>, vector<1x128xf32> -> vector<1x128xf32>
    %160 = arith.addf %158, %159 : vector<1x128xf32>
    %161 = arith.addf %160, %24 : vector<1x128xf32>
    %162 = arith.negf %161 : vector<1x128xf32>
    %163 = math.exp %162 : vector<1x128xf32>
    %cst_50 = arith.constant 1.000000e+00 : f32
    %164 = vector.broadcast %cst_50 : f32 to vector<1x128xf32>
    %165 = arith.addf %164, %163 : vector<1x128xf32>
    %166 = arith.divf %164, %165 : vector<1x128xf32>
    %167 = math.tanh %161 : vector<1x128xf32>
    %168 = vector.extract_strided_slice %166 {offsets = [0, 0], sizes = [1, 32], strides = [1, 1]} : vector<1x128xf32> to vector<1x32xf32>
    %169 = vector.extract_strided_slice %166 {offsets = [0, 32], sizes = [1, 32], strides = [1, 1]} : vector<1x128xf32> to vector<1x32xf32>
    %170 = vector.extract_strided_slice %167 {offsets = [0, 64], sizes = [1, 32], strides = [1, 1]} : vector<1x128xf32> to vector<1x32xf32>
    %171 = vector.extract_strided_slice %166 {offsets = [0, 96], sizes = [1, 32], strides = [1, 1]} : vector<1x128xf32> to vector<1x32xf32>
    %172 = arith.mulf %169, %136 : vector<1x32xf32>
    %173 = arith.mulf %168, %170 : vector<1x32xf32>
    %174 = arith.addf %172, %173 : vector<1x32xf32>
    %175 = math.tanh %174 : vector<1x32xf32>
    %176 = arith.mulf %171, %175 : vector<1x32xf32>
    %c3 = arith.constant 3 : index
    %c0_51 = arith.constant 0 : index
    %177 = vector.load %arg15[%c3, %c0_51] : memref<8x32xf32, #tpu.memory_space<vmem>>, vector<1x32xf32>
    tpu.vector_store %arg15[%c3, %c0_51], %176 {strides = array<i32>} : memref<8x32xf32, #tpu.memory_space<vmem>>, vector<1x32xf32>,
    %178 = vector.extract_strided_slice %20 {offsets = [4, 0], sizes = [1, 128], strides = [1, 1]} : vector<8x128xf32> to vector<1x128xf32>
    %cst_52 = arith.constant dense<0.000000e+00> : vector<1x128xf32>
    %179 = tpu.matmul %157, %21, %cst_52 {dimension_numbers = #tpu.dot_dimension_numbers<[1], [0], [0], [1], [0, 0, 1, 1], [], []>} : vector<1x32xf32>, vector<32x128xf32>, vector<1x128xf32> -> vector<1x128xf32>
    %180 = arith.addf %178, %179 : vector<1x128xf32>
    %181 = arith.negf %180 : vector<1x128xf32>
    %182 = math.exp %181 : vector<1x128xf32>
    %cst_53 = arith.constant 1.000000e+00 : f32
    %183 = vector.broadcast %cst_53 : f32 to vector<1x128xf32>
    %184 = arith.addf %183, %182 : vector<1x128xf32>
    %185 = arith.divf %183, %184 : vector<1x128xf32>
    %186 = math.tanh %180 : vector<1x128xf32>
    %187 = vector.extract_strided_slice %185 {offsets = [0, 0], sizes = [1, 32], strides = [1, 1]} : vector<1x128xf32> to vector<1x32xf32>
    %188 = vector.extract_strided_slice %185 {offsets = [0, 32], sizes = [1, 32], strides = [1, 1]} : vector<1x128xf32> to vector<1x32xf32>
    %189 = vector.extract_strided_slice %186 {offsets = [0, 64], sizes = [1, 32], strides = [1, 1]} : vector<1x128xf32> to vector<1x32xf32>
    %190 = vector.extract_strided_slice %185 {offsets = [0, 96], sizes = [1, 32], strides = [1, 1]} : vector<1x128xf32> to vector<1x32xf32>
    %191 = arith.mulf %188, %155 : vector<1x32xf32>
    %192 = arith.mulf %187, %189 : vector<1x32xf32>
    %193 = arith.addf %191, %192 : vector<1x32xf32>
    %194 = math.tanh %193 : vector<1x32xf32>
    %195 = arith.mulf %190, %194 : vector<1x32xf32>
    %cst_54 = arith.constant dense<0.000000e+00> : vector<1x128xf32>
    %196 = tpu.matmul %195, %22, %cst_54 {dimension_numbers = #tpu.dot_dimension_numbers<[1], [0], [0], [1], [0, 0, 1, 1], [], []>} : vector<1x32xf32>, vector<32x128xf32>, vector<1x128xf32> -> vector<1x128xf32>
    %cst_55 = arith.constant dense<0.000000e+00> : vector<1x128xf32>
    %197 = tpu.matmul %176, %23, %cst_55 {dimension_numbers = #tpu.dot_dimension_numbers<[1], [0], [0], [1], [0, 0, 1, 1], [], []>} : vector<1x32xf32>, vector<32x128xf32>, vector<1x128xf32> -> vector<1x128xf32>
    %198 = arith.addf %196, %197 : vector<1x128xf32>
    %199 = arith.addf %198, %24 : vector<1x128xf32>
    %200 = arith.negf %199 : vector<1x128xf32>
    %201 = math.exp %200 : vector<1x128xf32>
    %cst_56 = arith.constant 1.000000e+00 : f32
    %202 = vector.broadcast %cst_56 : f32 to vector<1x128xf32>
    %203 = arith.addf %202, %201 : vector<1x128xf32>
    %204 = arith.divf %202, %203 : vector<1x128xf32>
    %205 = math.tanh %199 : vector<1x128xf32>
    %206 = vector.extract_strided_slice %204 {offsets = [0, 0], sizes = [1, 32], strides = [1, 1]} : vector<1x128xf32> to vector<1x32xf32>
    %207 = vector.extract_strided_slice %204 {offsets = [0, 32], sizes = [1, 32], strides = [1, 1]} : vector<1x128xf32> to vector<1x32xf32>
    %208 = vector.extract_strided_slice %205 {offsets = [0, 64], sizes = [1, 32], strides = [1, 1]} : vector<1x128xf32> to vector<1x32xf32>
    %209 = vector.extract_strided_slice %204 {offsets = [0, 96], sizes = [1, 32], strides = [1, 1]} : vector<1x128xf32> to vector<1x32xf32>
    %210 = arith.mulf %207, %174 : vector<1x32xf32>
    %211 = arith.mulf %206, %208 : vector<1x32xf32>
    %212 = arith.addf %210, %211 : vector<1x32xf32>
    %213 = math.tanh %212 : vector<1x32xf32>
    %214 = arith.mulf %209, %213 : vector<1x32xf32>
    %c4 = arith.constant 4 : index
    %c0_57 = arith.constant 0 : index
    %215 = vector.load %arg15[%c4, %c0_57] : memref<8x32xf32, #tpu.memory_space<vmem>>, vector<1x32xf32>
    tpu.vector_store %arg15[%c4, %c0_57], %214 {strides = array<i32>} : memref<8x32xf32, #tpu.memory_space<vmem>>, vector<1x32xf32>,
    %216 = vector.extract_strided_slice %20 {offsets = [5, 0], sizes = [1, 128], strides = [1, 1]} : vector<8x128xf32> to vector<1x128xf32>
    %cst_58 = arith.constant dense<0.000000e+00> : vector<1x128xf32>
    %217 = tpu.matmul %195, %21, %cst_58 {dimension_numbers = #tpu.dot_dimension_numbers<[1], [0], [0], [1], [0, 0, 1, 1], [], []>} : vector<1x32xf32>, vector<32x128xf32>, vector<1x128xf32> -> vector<1x128xf32>
    %218 = arith.addf %216, %217 : vector<1x128xf32>
    %219 = arith.negf %218 : vector<1x128xf32>
    %220 = math.exp %219 : vector<1x128xf32>
    %cst_59 = arith.constant 1.000000e+00 : f32
    %221 = vector.broadcast %cst_59 : f32 to vector<1x128xf32>
    %222 = arith.addf %221, %220 : vector<1x128xf32>
    %223 = arith.divf %221, %222 : vector<1x128xf32>
    %224 = math.tanh %218 : vector<1x128xf32>
    %225 = vector.extract_strided_slice %223 {offsets = [0, 0], sizes = [1, 32], strides = [1, 1]} : vector<1x128xf32> to vector<1x32xf32>
    %226 = vector.extract_strided_slice %223 {offsets = [0, 32], sizes = [1, 32], strides = [1, 1]} : vector<1x128xf32> to vector<1x32xf32>
    %227 = vector.extract_strided_slice %224 {offsets = [0, 64], sizes = [1, 32], strides = [1, 1]} : vector<1x128xf32> to vector<1x32xf32>
    %228 = vector.extract_strided_slice %223 {offsets = [0, 96], sizes = [1, 32], strides = [1, 1]} : vector<1x128xf32> to vector<1x32xf32>
    %229 = arith.mulf %226, %193 : vector<1x32xf32>
    %230 = arith.mulf %225, %227 : vector<1x32xf32>
    %231 = arith.addf %229, %230 : vector<1x32xf32>
    %232 = math.tanh %231 : vector<1x32xf32>
    %233 = arith.mulf %228, %232 : vector<1x32xf32>
    %cst_60 = arith.constant dense<0.000000e+00> : vector<1x128xf32>
    %234 = tpu.matmul %233, %22, %cst_60 {dimension_numbers = #tpu.dot_dimension_numbers<[1], [0], [0], [1], [0, 0, 1, 1], [], []>} : vector<1x32xf32>, vector<32x128xf32>, vector<1x128xf32> -> vector<1x128xf32>
    %cst_61 = arith.constant dense<0.000000e+00> : vector<1x128xf32>
    %235 = tpu.matmul %214, %23, %cst_61 {dimension_numbers = #tpu.dot_dimension_numbers<[1], [0], [0], [1], [0, 0, 1, 1], [], []>} : vector<1x32xf32>, vector<32x128xf32>, vector<1x128xf32> -> vector<1x128xf32>
    %236 = arith.addf %234, %235 : vector<1x128xf32>
    %237 = arith.addf %236, %24 : vector<1x128xf32>
    %238 = arith.negf %237 : vector<1x128xf32>
    %239 = math.exp %238 : vector<1x128xf32>
    %cst_62 = arith.constant 1.000000e+00 : f32
    %240 = vector.broadcast %cst_62 : f32 to vector<1x128xf32>
    %241 = arith.addf %240, %239 : vector<1x128xf32>
    %242 = arith.divf %240, %241 : vector<1x128xf32>
    %243 = math.tanh %237 : vector<1x128xf32>
    %244 = vector.extract_strided_slice %242 {offsets = [0, 0], sizes = [1, 32], strides = [1, 1]} : vector<1x128xf32> to vector<1x32xf32>
    %245 = vector.extract_strided_slice %242 {offsets = [0, 32], sizes = [1, 32], strides = [1, 1]} : vector<1x128xf32> to vector<1x32xf32>
    %246 = vector.extract_strided_slice %243 {offsets = [0, 64], sizes = [1, 32], strides = [1, 1]} : vector<1x128xf32> to vector<1x32xf32>
    %247 = vector.extract_strided_slice %242 {offsets = [0, 96], sizes = [1, 32], strides = [1, 1]} : vector<1x128xf32> to vector<1x32xf32>
    %248 = arith.mulf %245, %212 : vector<1x32xf32>
    %249 = arith.mulf %244, %246 : vector<1x32xf32>
    %250 = arith.addf %248, %249 : vector<1x32xf32>
    %251 = math.tanh %250 : vector<1x32xf32>
    %252 = arith.mulf %247, %251 : vector<1x32xf32>
    %c5 = arith.constant 5 : index
    %c0_63 = arith.constant 0 : index
    %253 = vector.load %arg15[%c5, %c0_63] : memref<8x32xf32, #tpu.memory_space<vmem>>, vector<1x32xf32>
    tpu.vector_store %arg15[%c5, %c0_63], %252 {strides = array<i32>} : memref<8x32xf32, #tpu.memory_space<vmem>>, vector<1x32xf32>,
    %254 = vector.extract_strided_slice %20 {offsets = [6, 0], sizes = [1, 128], strides = [1, 1]} : vector<8x128xf32> to vector<1x128xf32>
    %cst_64 = arith.constant dense<0.000000e+00> : vector<1x128xf32>
    %255 = tpu.matmul %233, %21, %cst_64 {dimension_numbers = #tpu.dot_dimension_numbers<[1], [0], [0], [1], [0, 0, 1, 1], [], []>} : vector<1x32xf32>, vector<32x128xf32>, vector<1x128xf32> -> vector<1x128xf32>
    %256 = arith.addf %254, %255 : vector<1x128xf32>
    %257 = arith.negf %256 : vector<1x128xf32>
    %258 = math.exp %257 : vector<1x128xf32>
    %cst_65 = arith.constant 1.000000e+00 : f32
    %259 = vector.broadcast %cst_65 : f32 to vector<1x128xf32>
    %260 = arith.addf %259, %258 : vector<1x128xf32>
    %261 = arith.divf %259, %260 : vector<1x128xf32>
    %262 = math.tanh %256 : vector<1x128xf32>
    %263 = vector.extract_strided_slice %261 {offsets = [0, 0], sizes = [1, 32], strides = [1, 1]} : vector<1x128xf32> to vector<1x32xf32>
    %264 = vector.extract_strided_slice %261 {offsets = [0, 32], sizes = [1, 32], strides = [1, 1]} : vector<1x128xf32> to vector<1x32xf32>
    %265 = vector.extract_strided_slice %262 {offsets = [0, 64], sizes = [1, 32], strides = [1, 1]} : vector<1x128xf32> to vector<1x32xf32>
    %266 = vector.extract_strided_slice %261 {offsets = [0, 96], sizes = [1, 32], strides = [1, 1]} : vector<1x128xf32> to vector<1x32xf32>
    %267 = arith.mulf %264, %231 : vector<1x32xf32>
    %268 = arith.mulf %263, %265 : vector<1x32xf32>
    %269 = arith.addf %267, %268 : vector<1x32xf32>
    %270 = math.tanh %269 : vector<1x32xf32>
    %271 = arith.mulf %266, %270 : vector<1x32xf32>
    %cst_66 = arith.constant dense<0.000000e+00> : vector<1x128xf32>
    %272 = tpu.matmul %271, %22, %cst_66 {dimension_numbers = #tpu.dot_dimension_numbers<[1], [0], [0], [1], [0, 0, 1, 1], [], []>} : vector<1x32xf32>, vector<32x128xf32>, vector<1x128xf32> -> vector<1x128xf32>
    %cst_67 = arith.constant dense<0.000000e+00> : vector<1x128xf32>
    %273 = tpu.matmul %252, %23, %cst_67 {dimension_numbers = #tpu.dot_dimension_numbers<[1], [0], [0], [1], [0, 0, 1, 1], [], []>} : vector<1x32xf32>, vector<32x128xf32>, vector<1x128xf32> -> vector<1x128xf32>
    %274 = arith.addf %272, %273 : vector<1x128xf32>
    %275 = arith.addf %274, %24 : vector<1x128xf32>
    %276 = arith.negf %275 : vector<1x128xf32>
    %277 = math.exp %276 : vector<1x128xf32>
    %cst_68 = arith.constant 1.000000e+00 : f32
    %278 = vector.broadcast %cst_68 : f32 to vector<1x128xf32>
    %279 = arith.addf %278, %277 : vector<1x128xf32>
    %280 = arith.divf %278, %279 : vector<1x128xf32>
    %281 = math.tanh %275 : vector<1x128xf32>
    %282 = vector.extract_strided_slice %280 {offsets = [0, 0], sizes = [1, 32], strides = [1, 1]} : vector<1x128xf32> to vector<1x32xf32>
    %283 = vector.extract_strided_slice %280 {offsets = [0, 32], sizes = [1, 32], strides = [1, 1]} : vector<1x128xf32> to vector<1x32xf32>
    %284 = vector.extract_strided_slice %281 {offsets = [0, 64], sizes = [1, 32], strides = [1, 1]} : vector<1x128xf32> to vector<1x32xf32>
    %285 = vector.extract_strided_slice %280 {offsets = [0, 96], sizes = [1, 32], strides = [1, 1]} : vector<1x128xf32> to vector<1x32xf32>
    %286 = arith.mulf %283, %250 : vector<1x32xf32>
    %287 = arith.mulf %282, %284 : vector<1x32xf32>
    %288 = arith.addf %286, %287 : vector<1x32xf32>
    %289 = math.tanh %288 : vector<1x32xf32>
    %290 = arith.mulf %285, %289 : vector<1x32xf32>
    %c6 = arith.constant 6 : index
    %c0_69 = arith.constant 0 : index
    %291 = vector.load %arg15[%c6, %c0_69] : memref<8x32xf32, #tpu.memory_space<vmem>>, vector<1x32xf32>
    tpu.vector_store %arg15[%c6, %c0_69], %290 {strides = array<i32>} : memref<8x32xf32, #tpu.memory_space<vmem>>, vector<1x32xf32>,
    %292 = vector.extract_strided_slice %20 {offsets = [7, 0], sizes = [1, 128], strides = [1, 1]} : vector<8x128xf32> to vector<1x128xf32>
    %cst_70 = arith.constant dense<0.000000e+00> : vector<1x128xf32>
    %293 = tpu.matmul %271, %21, %cst_70 {dimension_numbers = #tpu.dot_dimension_numbers<[1], [0], [0], [1], [0, 0, 1, 1], [], []>} : vector<1x32xf32>, vector<32x128xf32>, vector<1x128xf32> -> vector<1x128xf32>
    %294 = arith.addf %292, %293 : vector<1x128xf32>
    %295 = arith.negf %294 : vector<1x128xf32>
    %296 = math.exp %295 : vector<1x128xf32>
    %cst_71 = arith.constant 1.000000e+00 : f32
    %297 = vector.broadcast %cst_71 : f32 to vector<1x128xf32>
    %298 = arith.addf %297, %296 : vector<1x128xf32>
    %299 = arith.divf %297, %298 : vector<1x128xf32>
    %300 = math.tanh %294 : vector<1x128xf32>
    %301 = vector.extract_strided_slice %299 {offsets = [0, 0], sizes = [1, 32], strides = [1, 1]} : vector<1x128xf32> to vector<1x32xf32>
    %302 = vector.extract_strided_slice %299 {offsets = [0, 32], sizes = [1, 32], strides = [1, 1]} : vector<1x128xf32> to vector<1x32xf32>
    %303 = vector.extract_strided_slice %300 {offsets = [0, 64], sizes = [1, 32], strides = [1, 1]} : vector<1x128xf32> to vector<1x32xf32>
    %304 = vector.extract_strided_slice %299 {offsets = [0, 96], sizes = [1, 32], strides = [1, 1]} : vector<1x128xf32> to vector<1x32xf32>
    %305 = arith.mulf %302, %269 : vector<1x32xf32>
    %306 = arith.mulf %301, %303 : vector<1x32xf32>
    %307 = arith.addf %305, %306 : vector<1x32xf32>
    %308 = math.tanh %307 : vector<1x32xf32>
    %309 = arith.mulf %304, %308 : vector<1x32xf32>
    %cst_72 = arith.constant dense<0.000000e+00> : vector<1x128xf32>
    %310 = tpu.matmul %309, %22, %cst_72 {dimension_numbers = #tpu.dot_dimension_numbers<[1], [0], [0], [1], [0, 0, 1, 1], [], []>} : vector<1x32xf32>, vector<32x128xf32>, vector<1x128xf32> -> vector<1x128xf32>
    %cst_73 = arith.constant dense<0.000000e+00> : vector<1x128xf32>
    %311 = tpu.matmul %290, %23, %cst_73 {dimension_numbers = #tpu.dot_dimension_numbers<[1], [0], [0], [1], [0, 0, 1, 1], [], []>} : vector<1x32xf32>, vector<32x128xf32>, vector<1x128xf32> -> vector<1x128xf32>
    %312 = arith.addf %310, %311 : vector<1x128xf32>
    %313 = arith.addf %312, %24 : vector<1x128xf32>
    %314 = arith.negf %313 : vector<1x128xf32>
    %315 = math.exp %314 : vector<1x128xf32>
    %cst_74 = arith.constant 1.000000e+00 : f32
    %316 = vector.broadcast %cst_74 : f32 to vector<1x128xf32>
    %317 = arith.addf %316, %315 : vector<1x128xf32>
    %318 = arith.divf %316, %317 : vector<1x128xf32>
    %319 = math.tanh %313 : vector<1x128xf32>
    %320 = vector.extract_strided_slice %318 {offsets = [0, 0], sizes = [1, 32], strides = [1, 1]} : vector<1x128xf32> to vector<1x32xf32>
    %321 = vector.extract_strided_slice %318 {offsets = [0, 32], sizes = [1, 32], strides = [1, 1]} : vector<1x128xf32> to vector<1x32xf32>
    %322 = vector.extract_strided_slice %319 {offsets = [0, 64], sizes = [1, 32], strides = [1, 1]} : vector<1x128xf32> to vector<1x32xf32>
    %323 = vector.extract_strided_slice %318 {offsets = [0, 96], sizes = [1, 32], strides = [1, 1]} : vector<1x128xf32> to vector<1x32xf32>
    %324 = arith.mulf %321, %288 : vector<1x32xf32>
    %325 = arith.mulf %320, %322 : vector<1x32xf32>
    %326 = arith.addf %324, %325 : vector<1x32xf32>
    %327 = math.tanh %326 : vector<1x32xf32>
    %328 = arith.mulf %323, %327 : vector<1x32xf32>
    %c7 = arith.constant 7 : index
    %c0_75 = arith.constant 0 : index
    %329 = vector.load %arg15[%c7, %c0_75] : memref<8x32xf32, #tpu.memory_space<vmem>>, vector<1x32xf32>
    tpu.vector_store %arg15[%c7, %c0_75], %328 {strides = array<i32>} : memref<8x32xf32, #tpu.memory_space<vmem>>, vector<1x32xf32>,
    %c0_76 = arith.constant 0 : index
    %c0_77 = arith.constant 0 : index
    %330 = vector.load %arg15[%c0_76, %c0_77] : memref<8x32xf32, #tpu.memory_space<vmem>>, vector<8x32xf32>
    %c0_78 = arith.constant 0 : index
    %c0_79 = arith.constant 0 : index
    %331 = vector.load %arg12[%c0_78, %c0_79] : memref<32x4xf32, #tpu.memory_space<vmem>>, vector<32x4xf32>
    %cst_80 = arith.constant dense<0.000000e+00> : vector<8x4xf32>
    %332 = tpu.matmul %330, %331, %cst_80 {dimension_numbers = #tpu.dot_dimension_numbers<[1], [0], [0], [1], [0, 0, 1, 1], [], []>} : vector<8x32xf32>, vector<32x4xf32>, vector<8x4xf32> -> vector<8x4xf32>
    %c0_81 = arith.constant 0 : index
    %c0_82 = arith.constant 0 : index
    %333 = vector.load %arg13[%c0_81, %c0_82] : memref<1x4xf32, #tpu.memory_space<vmem>>, vector<1x4xf32>
    %334 = vector.broadcast %333 : vector<1x4xf32> to vector<8x4xf32>
    %335 = arith.addf %332, %334 : vector<8x4xf32>
    %336 = vector.extract_strided_slice %335 {offsets = [0, 0], sizes = [8, 2], strides = [1, 1]} : vector<8x4xf32> to vector<8x2xf32>
    %337 = vector.extract_strided_slice %335 {offsets = [0, 2], sizes = [8, 2], strides = [1, 1]} : vector<8x4xf32> to vector<8x2xf32>
    %338 = arith.negf %337 : vector<8x2xf32>
    %339 = math.exp %338 : vector<8x2xf32>
    %cst_83 = arith.constant 1.000000e+00 : f32
    %340 = vector.broadcast %cst_83 : f32 to vector<8x2xf32>
    %341 = arith.addf %340, %339 : vector<8x2xf32>
    %342 = arith.divf %340, %341 : vector<8x2xf32>
    %343 = arith.mulf %336, %342 : vector<8x2xf32>
    %c0_84 = arith.constant 0 : index
    %c0_85 = arith.constant 0 : index
    %c0_86 = arith.constant 0 : index
    %344 = vector.load %arg14[%c0_84, %c0_85, %c0_86] : memref<1x8x2xf32, #tpu.memory_space<vmem>>, vector<1x8x2xf32>
    %345 = vector.shape_cast %344 : vector<1x8x2xf32> to vector<8x2xf32>
    %346 = vector.shape_cast %343 : vector<8x2xf32> to vector<1x8x2xf32>
    tpu.vector_store %arg14[%c0_84, %c0_85, %c0_86], %346 {strides = array<i32>} : memref<1x8x2xf32, #tpu.memory_space<vmem>>, vector<1x8x2xf32>,
    return
  }
  func.func @transform_0(%arg0: i32) -> (i32, i32, i32) {
    %c0_i32 = arith.constant 0 : i32
    %c0_i32_0 = arith.constant 0 : i32
    %c0_i32_1 = arith.constant 0 : i32
    return %arg0, %c0_i32, %c0_i32_0 : i32, i32, i32
  }
  func.func @transform_1(%arg0: i32) -> (i32, i32) {
    %c0_i32 = arith.constant 0 : i32
    %c0_i32_0 = arith.constant 0 : i32
    %c0_i32_1 = arith.constant 0 : i32
    return %c0_i32, %c0_i32_0 : i32, i32
  }
  func.func @transform_2(%arg0: i32) -> (i32, i32) {
    %c0_i32 = arith.constant 0 : i32
    %c0_i32_0 = arith.constant 0 : i32
    %c0_i32_1 = arith.constant 0 : i32
    return %c0_i32, %c0_i32_0 : i32, i32
  }
  func.func @transform_3(%arg0: i32) -> (i32, i32) {
    %c0_i32 = arith.constant 0 : i32
    %c0_i32_0 = arith.constant 0 : i32
    %c0_i32_1 = arith.constant 0 : i32
    return %c0_i32, %c0_i32_0 : i32, i32
  }
  func.func @transform_4(%arg0: i32) -> (i32, i32) {
    %c0_i32 = arith.constant 0 : i32
    %c0_i32_0 = arith.constant 0 : i32
    %c0_i32_1 = arith.constant 0 : i32
    return %c0_i32, %c0_i32_0 : i32, i32
  }
  func.func @transform_5(%arg0: i32) -> (i32, i32) {
    %c0_i32 = arith.constant 0 : i32
    %c0_i32_0 = arith.constant 0 : i32
    %c0_i32_1 = arith.constant 0 : i32
    return %c0_i32, %c0_i32_0 : i32, i32
  }
  func.func @transform_6(%arg0: i32) -> (i32, i32) {
    %c0_i32 = arith.constant 0 : i32
    %c0_i32_0 = arith.constant 0 : i32
    %c0_i32_1 = arith.constant 0 : i32
    return %c0_i32, %c0_i32_0 : i32, i32
  }
  func.func @transform_7(%arg0: i32) -> (i32, i32) {
    %c0_i32 = arith.constant 0 : i32
    %c0_i32_0 = arith.constant 0 : i32
    %c0_i32_1 = arith.constant 0 : i32
    return %c0_i32, %c0_i32_0 : i32, i32
  }
  func.func @transform_8(%arg0: i32) -> (i32, i32) {
    %c0_i32 = arith.constant 0 : i32
    %c0_i32_0 = arith.constant 0 : i32
    %c0_i32_1 = arith.constant 0 : i32
    return %c0_i32, %c0_i32_0 : i32, i32
  }
  func.func @transform_9(%arg0: i32) -> (i32, i32) {
    %c0_i32 = arith.constant 0 : i32
    %c0_i32_0 = arith.constant 0 : i32
    %c0_i32_1 = arith.constant 0 : i32
    return %c0_i32, %c0_i32_0 : i32, i32
  }
  func.func @transform_10(%arg0: i32) -> (i32, i32) {
    %c0_i32 = arith.constant 0 : i32
    %c0_i32_0 = arith.constant 0 : i32
    %c0_i32_1 = arith.constant 0 : i32
    return %c0_i32, %c0_i32_0 : i32, i32
  }
  func.func @transform_11(%arg0: i32) -> (i32, i32) {
    %c0_i32 = arith.constant 0 : i32
    %c0_i32_0 = arith.constant 0 : i32
    %c0_i32_1 = arith.constant 0 : i32
    return %c0_i32, %c0_i32_0 : i32, i32
  }
  func.func @transform_12(%arg0: i32) -> (i32, i32) {
    %c0_i32 = arith.constant 0 : i32
    %c0_i32_0 = arith.constant 0 : i32
    %c0_i32_1 = arith.constant 0 : i32
    return %c0_i32, %c0_i32_0 : i32, i32
  }
  func.func @transform_13(%arg0: i32) -> (i32, i32, i32) {
    %c0_i32 = arith.constant 0 : i32
    %c0_i32_0 = arith.constant 0 : i32
    %c0_i32_1 = arith.constant 0 : i32
    return %arg0, %c0_i32, %c0_i32_0 : i32, i32, i32
  }
}

</mosaic_0001>

<llo_original>
// kernel: tpu_custom_call.1
$region0: #{tpu_custom_call.1}
  #allocation0 [shape = 'u32[]', space=smem, size = 0x4, offset = 0x4, fixed_abs, tag = 'smem constant byte address 0x4 - core index']
  #allocation1 [shape = 'u32[144,128]{1,0:T(1,128)}', space=vmem, size = 0x12000, scoped, tag = 'internal scratch']
  #allocation2 [shape = 'f32[8,32]{1,0:T(8,128)}', space=vmem, size = 0x1000, scoped, tag = 'scratch operand']
  %s0 = inlined_call_operand.vmem [shape: f32[2,8,40], index: 0, kind: input, shape index: {}]
  %s1 = inlined_call_operand.vmem [shape: f32[40,320], index: 1, kind: input, shape index: {}]
  %s2 = inlined_call_operand.vmem [shape: f32[1,320], index: 2, kind: input, shape index: {}]
  %s3 = inlined_call_operand.vmem [shape: f32[320,32], index: 3, kind: input, shape index: {}]
  %s4 = inlined_call_operand.vmem [shape: f32[1,32], index: 4, kind: input, shape index: {}]
  %s5 = inlined_call_operand.vmem [shape: f32[32,128], index: 5, kind: input, shape index: {}]
  %s6 = inlined_call_operand.vmem [shape: f32[32,128], index: 6, kind: input, shape index: {}]
  %s7 = inlined_call_operand.vmem [shape: f32[1,128], index: 7, kind: input, shape index: {}]
  %s8 = inlined_call_operand.vmem [shape: f32[32,128], index: 8, kind: input, shape index: {}]
  %s9 = inlined_call_operand.vmem [shape: f32[32,128], index: 9, kind: input, shape index: {}]
  %s10 = inlined_call_operand.vmem [shape: f32[1,128], index: 10, kind: input, shape index: {}]
  %s11 = inlined_call_operand.vmem [shape: f32[32,4], index: 11, kind: input, shape index: {}]
  %s12 = inlined_call_operand.vmem [shape: f32[1,4], index: 12, kind: input, shape index: {}]
  %s13 = inlined_call_operand.vmem [shape: f32[2,8,2], index: 13, kind: output, shape index: {}]
  %s14 = sld [smem:[#allocation0]]
  $region85: #{tpu_custom_call.1} parent=0
    _
  %s16 = ssub.s32 1, %s14
  %s17 = scalar_select 0, %s16, %s14
  loop: start=0, step=1, limit=4
  $region2: #{tpu_custom_call.1} parent=0 // loop_pre_header
    _
  $region3: #{tpu_custom_call.1} parent=0 // loop_header
    %s19 = sphi 0, %s23
    %p20 = scmp.ge.s32.totalorder %s19, 4
    %s29 = sphi 0, %s31
    %s32 = sphi 0, %s29
    %s33 = sphi 0, %s32
    %s49 = sphi 0, %s33
    %s53 = sphi 0, %s53
    %s55 = sphi 0, %s53
    %s56 = sphi 0, %s55
    %s70 = sphi 0, %s56
    %s74 = sphi 0, %s74
    %s76 = sphi 0, %s74
    %s77 = sphi 0, %s76
    %s91 = sphi 0, %s77
    %s95 = sphi 0, %s95
    %s97 = sphi 0, %s95
    %s98 = sphi 0, %s97
    %s112 = sphi 0, %s98
    %s116 = sphi 0, %s116
    %s118 = sphi 0, %s116
    %s119 = sphi 0, %s118
    %s133 = sphi 0, %s119
    %s137 = sphi 0, %s137
    %s139 = sphi 0, %s137
    %s140 = sphi 0, %s139
    %s154 = sphi 0, %s140
    %s158 = sphi 0, %s158
    %s160 = sphi 0, %s158
    %s161 = sphi 0, %s160
    %s175 = sphi 0, %s161
    %s179 = sphi 0, %s179
    %s181 = sphi 0, %s179
    %s182 = sphi 0, %s181
    %s196 = sphi 0, %s182
    %s200 = sphi 0, %s200
    %s202 = sphi 0, %s200
    %s203 = sphi 0, %s202
    %s217 = sphi 0, %s203
    %s221 = sphi 0, %s221
    %s223 = sphi 0, %s221
    %s224 = sphi 0, %s223
    %s238 = sphi 0, %s224
    %s242 = sphi 0, %s242
    %s244 = sphi 0, %s242
    %s245 = sphi 0, %s244
    %s259 = sphi 0, %s245
    %s263 = sphi 0, %s263
    %s265 = sphi 0, %s263
    %s266 = sphi 0, %s265
    %s280 = sphi 0, %s266
    %s284 = sphi 0, %s284
    %s286 = sphi 0, %s284
    %s287 = sphi 0, %s286
    %s301 = sphi 0, %s287
    %s307 = sphi 0, %s309
    %s310 = sphi 0, %s307
    %s311 = sphi 0, %s310
    %s327 = sphi 0, %s311
  $region4: #{tpu_custom_call.1} parent=0 // loop_header_branch
    %22 = sbr.rel (%p20) target = $region8
  $region5: #{tpu_custom_call.1} parent=0 // loop_body
    %s24 = ssub.s32 %s19, 1
    %s25 = ssub.s32 %s19, 2
    %s26 = sadd.s32 %s19, 1
    %s27 = ssub.s32 %s19, %s26
    %p28 = scmp.eq.s32.totalorder %s27, 0
    %s30 = sadd.s32 %s29, 1
    %s31 = scalar_select %p28, %s29, %s30
    %p34 = pneg %p28
    %p35 = scmp.eq.s32.totalorder %s19, 1
    %p36 = por %p34, %p35
    %p37 = scmp.ne.s32.totalorder %s29, %s32
    %p38 = scmp.eq.s32.totalorder %s19, 0
    %p39 = por %p37, %p38
    %p40 = scmp.ne.s32.totalorder %s29, %s32
    %p41 = scmp.eq.s32.totalorder %s24, 1
    %p42 = por %p40, %p41
    %p43 = scmp.ne.s32.totalorder %s32, %s33
    %p44 = scmp.eq.s32.totalorder %s24, 0
    %p45 = por %p43, %p44
    %p46 = scmp.ne.s32.totalorder %s32, %s33
    %p47 = scmp.eq.s32.totalorder %s25, 1
    %p48 = por %p46, %p47
    %p50 = scmp.ne.s32.totalorder %s33, %s49
    %p51 = scmp.eq.s32.totalorder %s25, 0
    %p52 = por %p50, %p51
    %s54 = sadd.s32 %s53, 1
    %p57 = scmp.eq.s32.totalorder %s19, 1
    %p58 = scmp.ne.s32.totalorder %s53, %s55
    %p59 = scmp.eq.s32.totalorder %s19, 0
    %p60 = por %p58, %p59
    %p61 = scmp.ne.s32.totalorder %s53, %s55
    %p62 = scmp.eq.s32.totalorder %s24, 1
    %p63 = por %p61, %p62
    %p64 = scmp.ne.s32.totalorder %s55, %s56
    %p65 = scmp.eq.s32.totalorder %s24, 0
    %p66 = por %p64, %p65
    %p67 = scmp.ne.s32.totalorder %s55, %s56
    %p68 = scmp.eq.s32.totalorder %s25, 1
    %p69 = por %p67, %p68
    %p71 = scmp.ne.s32.totalorder %s56, %s70
    %p72 = scmp.eq.s32.totalorder %s25, 0
    %p73 = por %p71, %p72
    %s75 = sadd.s32 %s74, 1
    %p78 = scmp.eq.s32.totalorder %s19, 1
    %p79 = scmp.ne.s32.totalorder %s74, %s76
    %p80 = scmp.eq.s32.totalorder %s19, 0
    %p81 = por %p79, %p80
    %p82 = scmp.ne.s32.totalorder %s74, %s76
    %p83 = scmp.eq.s32.totalorder %s24, 1
    %p84 = por %p82, %p83
    %p85 = scmp.ne.s32.totalorder %s76, %s77
    %p86 = scmp.eq.s32.totalorder %s24, 0
    %p87 = por %p85, %p86
    %p88 = scmp.ne.s32.totalorder %s76, %s77
    %p89 = scmp.eq.s32.totalorder %s25, 1
    %p90 = por %p88, %p89
    %p92 = scmp.ne.s32.totalorder %s77, %s91
    %p93 = scmp.eq.s32.totalorder %s25, 0
    %p94 = por %p92, %p93
    %s96 = sadd.s32 %s95, 1
    %p99 = scmp.eq.s32.totalorder %s19, 1
    %p100 = scmp.ne.s32.totalorder %s95, %s97
    %p101 = scmp.eq.s32.totalorder %s19, 0
    %p102 = por %p100, %p101
    %p103 = scmp.ne.s32.totalorder %s95, %s97
    %p104 = scmp.eq.s32.totalorder %s24, 1
    %p105 = por %p103, %p104
    %p106 = scmp.ne.s32.totalorder %s97, %s98
    %p107 = scmp.eq.s32.totalorder %s24, 0
    %p108 = por %p106, %p107
    %p109 = scmp.ne.s32.totalorder %s97, %s98
    %p110 = scmp.eq.s32.totalorder %s25, 1
    %p111 = por %p109, %p110
    %p113 = scmp.ne.s32.totalorder %s98, %s112
    %p114 = scmp.eq.s32.totalorder %s25, 0
    %p115 = por %p113, %p114
    %s117 = sadd.s32 %s116, 1
    %p120 = scmp.eq.s32.totalorder %s19, 1
    %p121 = scmp.ne.s32.totalorder %s116, %s118
    %p122 = scmp.eq.s32.totalorder %s19, 0
    %p123 = por %p121, %p122
    %p124 = scmp.ne.s32.totalorder %s116, %s118
    %p125 = scmp.eq.s32.totalorder %s24, 1
    %p126 = por %p124, %p125
    %p127 = scmp.ne.s32.totalorder %s118, %s119
    %p128 = scmp.eq.s32.totalorder %s24, 0
    %p129 = por %p127, %p128
    %p130 = scmp.ne.s32.totalorder %s118, %s119
    %p131 = scmp.eq.s32.totalorder %s25, 1
    %p132 = por %p130, %p131
    %p134 = scmp.ne.s32.totalorder %s119, %s133
    %p135 = scmp.eq.s32.totalorder %s25, 0
    %p136 = por %p134, %p135
    %s138 = sadd.s32 %s137, 1
    %p141 = scmp.eq.s32.totalorder %s19, 1
    %p142 = scmp.ne.s32.totalorder %s137, %s139
    %p143 = scmp.eq.s32.totalorder %s19, 0
    %p144 = por %p142, %p143
    %p145 = scmp.ne.s32.totalorder %s137, %s139
    %p146 = scmp.eq.s32.totalorder %s24, 1
    %p147 = por %p145, %p146
    %p148 = scmp.ne.s32.totalorder %s139, %s140
    %p149 = scmp.eq.s32.totalorder %s24, 0
    %p150 = por %p148, %p149
    %p151 = scmp.ne.s32.totalorder %s139, %s140
    %p152 = scmp.eq.s32.totalorder %s25, 1
    %p153 = por %p151, %p152
    %p155 = scmp.ne.s32.totalorder %s140, %s154
    %p156 = scmp.eq.s32.totalorder %s25, 0
    %p157 = por %p155, %p156
    %s159 = sadd.s32 %s158, 1
    %p162 = scmp.eq.s32.totalorder %s19, 1
    %p163 = scmp.ne.s32.totalorder %s158, %s160
    %p164 = scmp.eq.s32.totalorder %s19, 0
    %p165 = por %p163, %p164
    %p166 = scmp.ne.s32.totalorder %s158, %s160
    %p167 = scmp.eq.s32.totalorder %s24, 1
    %p168 = por %p166, %p167
    %p169 = scmp.ne.s32.totalorder %s160, %s161
    %p170 = scmp.eq.s32.totalorder %s24, 0
    %p171 = por %p169, %p170
    %p172 = scmp.ne.s32.totalorder %s160, %s161
    %p173 = scmp.eq.s32.totalorder %s25, 1
    %p174 = por %p172, %p173
    %p176 = scmp.ne.s32.totalorder %s161, %s175
    %p177 = scmp.eq.s32.totalorder %s25, 0
    %p178 = por %p176, %p177
    %s180 = sadd.s32 %s179, 1
    %p183 = scmp.eq.s32.totalorder %s19, 1
    %p184 = scmp.ne.s32.totalorder %s179, %s181
    %p185 = scmp.eq.s32.totalorder %s19, 0
    %p186 = por %p184, %p185
    %p187 = scmp.ne.s32.totalorder %s179, %s181
    %p188 = scmp.eq.s32.totalorder %s24, 1
    %p189 = por %p187, %p188
    %p190 = scmp.ne.s32.totalorder %s181, %s182
    %p191 = scmp.eq.s32.totalorder %s24, 0
    %p192 = por %p190, %p191
    %p193 = scmp.ne.s32.totalorder %s181, %s182
    %p194 = scmp.eq.s32.totalorder %s25, 1
    %p195 = por %p193, %p194
    %p197 = scmp.ne.s32.totalorder %s182, %s196
    %p198 = scmp.eq.s32.totalorder %s25, 0
    %p199 = por %p197, %p198
    %s201 = sadd.s32 %s200, 1
    %p204 = scmp.eq.s32.totalorder %s19, 1
    %p205 = scmp.ne.s32.totalorder %s200, %s202
    %p206 = scmp.eq.s32.totalorder %s19, 0
    %p207 = por %p205, %p206
    %p208 = scmp.ne.s32.totalorder %s200, %s202
    %p209 = scmp.eq.s32.totalorder %s24, 1
    %p210 = por %p208, %p209
    %p211 = scmp.ne.s32.totalorder %s202, %s203
    %p212 = scmp.eq.s32.totalorder %s24, 0
    %p213 = por %p211, %p212
    %p214 = scmp.ne.s32.totalorder %s202, %s203
    %p215 = scmp.eq.s32.totalorder %s25, 1
    %p216 = por %p214, %p215
    %p218 = scmp.ne.s32.totalorder %s203, %s217
    %p219 = scmp.eq.s32.totalorder %s25, 0
    %p220 = por %p218, %p219
    %s222 = sadd.s32 %s221, 1
    %p225 = scmp.eq.s32.totalorder %s19, 1
    %p226 = scmp.ne.s32.totalorder %s221, %s223
    %p227 = scmp.eq.s32.totalorder %s19, 0
    %p228 = por %p226, %p227
    %p229 = scmp.ne.s32.totalorder %s221, %s223
    %p230 = scmp.eq.s32.totalorder %s24, 1
    %p231 = por %p229, %p230
    %p232 = scmp.ne.s32.totalorder %s223, %s224
    %p233 = scmp.eq.s32.totalorder %s24, 0
    %p234 = por %p232, %p233
    %p235 = scmp.ne.s32.totalorder %s223, %s224
    %p236 = scmp.eq.s32.totalorder %s25, 1
    %p237 = por %p235, %p236
    %p239 = scmp.ne.s32.totalorder %s224, %s238
    %p240 = scmp.eq.s32.totalorder %s25, 0
    %p241 = por %p239, %p240
    %s243 = sadd.s32 %s242, 1
    %p246 = scmp.eq.s32.totalorder %s19, 1
    %p247 = scmp.ne.s32.totalorder %s242, %s244
    %p248 = scmp.eq.s32.totalorder %s19, 0
    %p249 = por %p247, %p248
    %p250 = scmp.ne.s32.totalorder %s242, %s244
    %p251 = scmp.eq.s32.totalorder %s24, 1
    %p252 = por %p250, %p251
    %p253 = scmp.ne.s32.totalorder %s244, %s245
    %p254 = scmp.eq.s32.totalorder %s24, 0
    %p255 = por %p253, %p254
    %p256 = scmp.ne.s32.totalorder %s244, %s245
    %p257 = scmp.eq.s32.totalorder %s25, 1
    %p258 = por %p256, %p257
    %p260 = scmp.ne.s32.totalorder %s245, %s259
    %p261 = scmp.eq.s32.totalorder %s25, 0
    %p262 = por %p260, %p261
    %s264 = sadd.s32 %s263, 1
    %p267 = scmp.eq.s32.totalorder %s19, 1
    %p268 = scmp.ne.s32.totalorder %s263, %s265
    %p269 = scmp.eq.s32.totalorder %s19, 0
    %p270 = por %p268, %p269
    %p271 = scmp.ne.s32.totalorder %s263, %s265
    %p272 = scmp.eq.s32.totalorder %s24, 1
    %p273 = por %p271, %p272
    %p274 = scmp.ne.s32.totalorder %s265, %s266
    %p275 = scmp.eq.s32.totalorder %s24, 0
    %p276 = por %p274, %p275
    %p277 = scmp.ne.s32.totalorder %s265, %s266
    %p278 = scmp.eq.s32.totalorder %s25, 1
    %p279 = por %p277, %p278
    %p281 = scmp.ne.s32.totalorder %s266, %s280
    %p282 = scmp.eq.s32.totalorder %s25, 0
    %p283 = por %p281, %p282
    %s285 = sadd.s32 %s284, 1
    %p288 = scmp.eq.s32.totalorder %s19, 1
    %p289 = scmp.ne.s32.totalorder %s284, %s286
    %p290 = scmp.eq.s32.totalorder %s19, 0
    %p291 = por %p289, %p290
    %p292 = scmp.ne.s32.totalorder %s284, %s286
    %p293 = scmp.eq.s32.totalorder %s24, 1
    %p294 = por %p292, %p293
    %p295 = scmp.ne.s32.totalorder %s286, %s287
    %p296 = scmp.eq.s32.totalorder %s24, 0
    %p297 = por %p295, %p296
    %p298 = scmp.ne.s32.totalorder %s286, %s287
    %p299 = scmp.eq.s32.totalorder %s25, 1
    %p300 = por %p298, %p299
    %p302 = scmp.ne.s32.totalorder %s287, %s301
    %p303 = scmp.eq.s32.totalorder %s25, 0
    %p304 = por %p302, %p303
    %s305 = ssub.s32 %s19, %s26
    %p306 = scmp.eq.s32.totalorder %s305, 0
    %s308 = sadd.s32 %s307, 1
    %s309 = scalar_select %p306, %s307, %s308
    %p312 = pneg %p306
    %p313 = scmp.eq.s32.totalorder %s19, 1
    %p314 = por %p312, %p313
    %p315 = scmp.ne.s32.totalorder %s307, %s310
    %p316 = scmp.eq.s32.totalorder %s19, 0
    %p317 = por %p315, %p316
    %p318 = scmp.ne.s32.totalorder %s307, %s310
    %p319 = scmp.eq.s32.totalorder %s24, 1
    %p320 = por %p318, %p319
    %p321 = scmp.ne.s32.totalorder %s310, %s311
    %p322 = scmp.eq.s32.totalorder %s24, 0
    %p323 = por %p321, %p322
    %p324 = scmp.ne.s32.totalorder %s310, %s311
    %p325 = scmp.eq.s32.totalorder %s25, 1
    %p326 = por %p324, %p325
    %p328 = scmp.ne.s32.totalorder %s311, %s327
    %p329 = scmp.eq.s32.totalorder %s25, 0
    %p330 = por %p328, %p329
    %p331 = scmp.le.s32.totalorder 1, %s19
    %p332 = scmp.lt.s32.totalorder %s19, 3
    %p333 = pnand %p331, %p332
    %p334 = pneg %p333
    // Predicated region
    $region9: #{tpu_custom_call.1} parent=5 // pred_check
      _
    $region10: #{tpu_custom_call.1} parent=5 // pred_check_branch
      %336 = sbr.rel (%p333) target = $region12
    $region11: #{tpu_custom_call.1} parent=5 // pred_region
      %s337 = ssub.s32 %s19, 1
      // Predicated region
      $region13: #{tpu_custom_call.1} parent=11 // pred_check
        %p338 = pneg %p66
      $region14: #{tpu_custom_call.1} parent=11 // pred_check_branch
        %340 = sbr.rel (%p338) target = $region16
      $region15: #{tpu_custom_call.1} parent=11 // pred_region
        _
      $region16: #{tpu_custom_call.1} parent=11 // pred_fallthru
        _
      // Predicated region
      $region17: #{tpu_custom_call.1} parent=11 // pred_check
        %p341 = pneg %p87
      $region18: #{tpu_custom_call.1} parent=11 // pred_check_branch
        %343 = sbr.rel (%p341) target = $region20
      $region19: #{tpu_custom_call.1} parent=11 // pred_region
        _
      $region20: #{tpu_custom_call.1} parent=11 // pred_fallthru
        _
      // Predicated region
      $region21: #{tpu_custom_call.1} parent=11 // pred_check
        %p344 = pneg %p108
      $region22: #{tpu_custom_call.1} parent=11 // pred_check_branch
        %346 = sbr.rel (%p344) target = $region24
      $region23: #{tpu_custom_call.1} parent=11 // pred_region
        _
      $region24: #{tpu_custom_call.1} parent=11 // pred_fallthru
        _
      // Predicated region
      $region25: #{tpu_custom_call.1} parent=11 // pred_check
        %p347 = pneg %p129
      $region26: #{tpu_custom_call.1} parent=11 // pred_check_branch
        %349 = sbr.rel (%p347) target = $region28
      $region27: #{tpu_custom_call.1} parent=11 // pred_region
        _
      $region28: #{tpu_custom_call.1} parent=11 // pred_fallthru
        _
      // Predicated region
      $region29: #{tpu_custom_call.1} parent=11 // pred_check
        %p350 = pneg %p150
      $region30: #{tpu_custom_call.1} parent=11 // pred_check_branch
        %352 = sbr.rel (%p350) target = $region32
      $region31: #{tpu_custom_call.1} parent=11 // pred_region
        _
      $region32: #{tpu_custom_call.1} parent=11 // pred_fallthru
        _
      // Predicated region
      $region33: #{tpu_custom_call.1} parent=11 // pred_check
        %p353 = pneg %p171
      $region34: #{tpu_custom_call.1} parent=11 // pred_check_branch
        %355 = sbr.rel (%p353) target = $region36
      $region35: #{tpu_custom_call.1} parent=11 // pred_region
        _
      $region36: #{tpu_custom_call.1} parent=11 // pred_fallthru
        _
      // Predicated region
      $region37: #{tpu_custom_call.1} parent=11 // pred_check
        %p356 = pneg %p192
      $region38: #{tpu_custom_call.1} parent=11 // pred_check_branch
        %358 = sbr.rel (%p356) target = $region40
      $region39: #{tpu_custom_call.1} parent=11 // pred_region
        _
      $region40: #{tpu_custom_call.1} parent=11 // pred_fallthru
        _
      // Predicated region
      $region41: #{tpu_custom_call.1} parent=11 // pred_check
        %p359 = pneg %p213
      $region42: #{tpu_custom_call.1} parent=11 // pred_check_branch
        %361 = sbr.rel (%p359) target = $region44
      $region43: #{tpu_custom_call.1} parent=11 // pred_region
        _
      $region44: #{tpu_custom_call.1} parent=11 // pred_fallthru
        _
      // Predicated region
      $region45: #{tpu_custom_call.1} parent=11 // pred_check
        %p362 = pneg %p234
      $region46: #{tpu_custom_call.1} parent=11 // pred_check_branch
        %364 = sbr.rel (%p362) target = $region48
      $region47: #{tpu_custom_call.1} parent=11 // pred_region
        _
      $region48: #{tpu_custom_call.1} parent=11 // pred_fallthru
        _
      // Predicated region
      $region49: #{tpu_custom_call.1} parent=11 // pred_check
        %p365 = pneg %p255
      $region50: #{tpu_custom_call.1} parent=11 // pred_check_branch
        %367 = sbr.rel (%p365) target = $region52
      $region51: #{tpu_custom_call.1} parent=11 // pred_region
        _
      $region52: #{tpu_custom_call.1} parent=11 // pred_fallthru
        _
      // Predicated region
      $region53: #{tpu_custom_call.1} parent=11 // pred_check
        %p368 = pneg %p276
      $region54: #{tpu_custom_call.1} parent=11 // pred_check_branch
        %370 = sbr.rel (%p368) target = $region56
      $region55: #{tpu_custom_call.1} parent=11 // pred_region
        _
      $region56: #{tpu_custom_call.1} parent=11 // pred_fallthru
        _
      // Predicated region
      $region57: #{tpu_custom_call.1} parent=11 // pred_check
        %p371 = pneg %p297
      $region58: #{tpu_custom_call.1} parent=11 // pred_check_branch
        %373 = sbr.rel (%p371) target = $region60
      $region59: #{tpu_custom_call.1} parent=11 // pred_region
        _
      $region60: #{tpu_custom_call.1} parent=11 // pred_fallthru
        _
    $region12: #{tpu_custom_call.1} parent=5 // pred_fallthru
      _
    %p374 = scmp.lt.s32.totalorder %s19, 2
    // Predicated region
    $region61: #{tpu_custom_call.1} parent=5 // pred_check
      %p375 = pneg %p374
    $region62: #{tpu_custom_call.1} parent=5 // pred_check_branch
      %377 = sbr.rel (%p375) target = $region64
    $region63: #{tpu_custom_call.1} parent=5 // pred_region
      // Predicated region
      $region65: #{tpu_custom_call.1} parent=63 // pred_check
        %p378 = pneg %p39
      $region66: #{tpu_custom_call.1} parent=63 // pred_check_branch
        %380 = sbr.rel (%p378) target = $region68
      $region67: #{tpu_custom_call.1} parent=63 // pred_region
        %p381 = scmp.lt.s32.totalorder %s19, 1
        %s382 = scalar_select %p381, %s19, 1
        %s383 = smul.addr %s382, 8
        %s384 = scalar_lea.vmem %s0, %s383
      $region68: #{tpu_custom_call.1} parent=63 // pred_fallthru
        _
    $region64: #{tpu_custom_call.1} parent=5 // pred_fallthru
      _
    %p385 = scmp.le.s32.totalorder 1, %s19
    %p386 = scmp.lt.s32.totalorder %s19, 3
    %p387 = pnand %p385, %p386
    %p388 = pneg %p387
    // Predicated region
    $region69: #{tpu_custom_call.1} parent=5 // pred_check
      _
    $region70: #{tpu_custom_call.1} parent=5 // pred_check_branch
      %390 = sbr.rel (%p387) target = $region72
    $region71: #{tpu_custom_call.1} parent=5 // pred_region
      %s391 = ssub.s32 %s19, 1
      %p392 = scmp.lt.s32.totalorder %s24, 1
      %s393 = scalar_select %p392, %s24, 1
      %s394 = smul.addr %s393, 8
      %s395 = scalar_lea.vmem %s0, %s394
      %p396 = pneg %p45
      %p397 = pneg %p42
      %p398 = pneg %p66
      %p399 = pneg %p63
      %p400 = pneg %p87
      %p401 = pneg %p84
      %p402 = pneg %p108
      %p403 = pneg %p105
      %p404 = pneg %p129
      %p405 = pneg %p126
      %p406 = pneg %p150
      %p407 = pneg %p147
      %p408 = pneg %p171
      %p409 = pneg %p168
      %p410 = pneg %p192
      %p411 = pneg %p189
      %p412 = pneg %p213
      %p413 = pneg %p210
      %p414 = pneg %p234
      %p415 = pneg %p231
      %p416 = pneg %p255
      %p417 = pneg %p252
      %p418 = pneg %p276
      %p419 = pneg %p273
      %p420 = pneg %p297
      %p421 = pneg %p294
      %p422 = pneg %p323
      %p423 = pneg %p320
      %p424 = scmp.lt.s32.totalorder %s24, 1
      %s425 = scalar_select %p424, %s24, 1
      %s426 = smul.addr %s425, 8
      %s427 = scalar_lea.vmem %s13, %s426
      %p428 = scmp.lt.s32.totalorder %s24, 1
      %s429 = scalar_select %p428, %s24, 1
      %s430 = smul.addr %s429, 8
      %s431 = scalar_lea.vmem %s0, %s430
      %p432 = scmp.lt.s32.totalorder %s24, 1
      %s433 = scalar_select %p432, %s24, 1
      %s434 = smul.addr %s433, 8
      %s435 = scalar_lea.vmem %s13, %s434
      %v436 = vld [vmem:[%s431] sm:$0xff]
      %v437 = vld [vmem:[%s1] sm:$0xff]
      %v438 = vld [vmem:[%s1 + $0x8] sm:$0xff]
      %v439 = vld [vmem:[%s1 + $0x10] sm:$0xff]
      %v440 = vld [vmem:[%s1 + $0x18] sm:$0xff]
      %v441 = vld [vmem:[%s1 + $0x20] sm:$0xff]
      %v442 = vld [vmem:[%s1 + $0x28] sm:$0xff]
      %v443 = vld [vmem:[%s1 + $0x30] sm:$0xff]
      %v444 = vld [vmem:[%s1 + $0x38] sm:$0xff]
      %v445 = vld [vmem:[%s1 + $0x40] sm:$0xff]
      %v446 = vld [vmem:[%s1 + $0x48] sm:$0xff]
      %v447 = vld [vmem:[%s1 + $0x50] sm:$0xff]
      %v448 = vld [vmem:[%s1 + $0x58] sm:$0xff]
      %v449 = vld [vmem:[%s1 + $0x60] sm:$0xff]
      %v450 = vld [vmem:[%s1 + $0x68] sm:$0xff]
      %v451 = vld [vmem:[%s1 + $0x70] sm:$0xff]
      %v452 = vld [vmem:[%s2] sm:$0x7]
      %v454 = vlaneseq
      %v455 = vshrl.u32 %v454, 7
      %v456 = vsub.s32 0, %v455
      %v457 = vrot.slane %v452, %v456
      %v458 = vlaneseq
      %v459 = vshrl.u32 %v458, 7
      %v460 = vsub.s32 1, %v459
      %v461 = vrot.slane %v452, %v460
      %v462 = vlaneseq
      %v463 = vshrl.u32 %v462, 7
      %v464 = vsub.s32 2, %v463
      %v465 = vrot.slane %v452, %v464
      %vm469 = vcmask 326656
      %v471 = vsel %vm469, %v436, 0
      %473 = vmatprep.subr.mxu0 0.0
      %474 = vmatpush1.msra.mxu0 0.0
      %475 = vmatprep.subr.mxu0 0.0
      %476 = vmatpush1.msra.mxu0 0.0
      %477 = vmatprep.subr.mxu0 0.0
      %478 = vmatpush1.msra.mxu0 0.0
      %479 = vmatprep.subr.mxu0 0.0
      %480 = vmatpush1.msra.mxu0 0.0
      %481 = vmatprep.subr.mxu0 0.0
      %482 = vmatpush1.msra.mxu0 0.0
      %483 = vmatprep.subr.mxu0 0.0
      %484 = vmatpush1.msra.mxu0 0.0
      %485 = vmatprep.subr.mxu0 0.0
      %486 = vmatpush1.msra.mxu0 0.0
      %487 = vmatprep.subr.mxu0 0.0
      %488 = vmatpush1.msra.mxu0 0.0
      %489 = vmatprep.subr.mxu0 0.0
      %490 = vmatpush1.msra.mxu0 0.0
      %491 = vmatprep.subr.mxu0 0.0
      %492 = vmatpush1.msra.mxu0 0.0
      %493 = vmatprep.subr.mxu0 0.0
      %494 = vmatpush1.msra.mxu0 0.0
      %495 = vmatprep.subr.mxu0 %v450
      %496 = vmatpush1.msra.mxu0 %v449
      %497 = vmatprep.subr.mxu0 %v447
      %498 = vmatpush1.msra.mxu0 %v446
      %499 = vmatprep.subr.mxu0 %v444
      %500 = vmatpush1.msra.mxu0 %v443
      %501 = vmatprep.subr.mxu0 %v441
      %502 = vmatpush1.msra.mxu0 %v440
      %503 = vmatprep.subr.mxu0 %v438
      %504 = vmatpush1.msra.mxu0 %v437
      %505 = vmatprep.subr.mxu0 0.0
      %506 = vmatpush2.msra.mxu0 0.0
      %507 = vmatprep.subr.mxu0 0.0
      %508 = vmatpush2.msra.mxu0 0.0
      %509 = vmatprep.subr.mxu0 0.0
      %510 = vmatpush2.msra.mxu0 0.0
      %511 = vmatprep.subr.mxu0 0.0
      %512 = vmatpush2.msra.mxu0 0.0
      %513 = vmatprep.subr.mxu0 0.0
      %514 = vmatpush2.msra.mxu0 0.0
      %515 = vmatprep.subr.mxu0 0.0
      %516 = vmatpush2.msra.mxu0 0.0
      %517 = vmatprep.subr.mxu0 0.0
      %518 = vmatpush2.msra.mxu0 0.0
      %519 = vmatprep.subr.mxu0 0.0
      %520 = vmatpush2.msra.mxu0 0.0
      %521 = vmatprep.subr.mxu0 0.0
      %522 = vmatpush2.msra.mxu0 0.0
      %523 = vmatprep.subr.mxu0 0.0
      %524 = vmatpush2.msra.mxu0 0.0
      %525 = vmatprep.subr.mxu0 0.0
      %526 = vmatpush2.msra.mxu0 0.0
      %527 = vmatprep.subr.mxu0 0.0
      %528 = vmatpush2.msra.mxu0 0.0
      %529 = vmatprep.subr.mxu0 0.0
      %530 = vmatpush2.msra.mxu0 0.0
      %531 = vmatprep.subr.mxu0 0.0
      %532 = vmatpush2.msra.mxu0 0.0
      %533 = vmatprep.subr.mxu0 0.0
      %534 = vmatpush2.msra.mxu0 0.0
      %535 = vmatprep.subr.mxu0 0.0
      %536 = vmatpush2.msra.mxu0 0.0
      %537 = vmatprep.mubr.f32.mxu0 0.0
      %538 = vmatmul.mubr.f32.gmra.mxu0 %v471
      %v539 = vpop.f32.mrf.mxu0
      %v540 = vadd.f32 %v457, %v539
      %v541 = vpop.f32.mrf.mxu0
      %v542 = vadd.f32 %v461, %v541
      %543 = vdwg.mxu0
      %544 = vmatprep.subr.mxu0 0.0
      %545 = vmatpush1.msra.mxu0 0.0
      %546 = vmatprep.subr.mxu0 0.0
      %547 = vmatpush1.msra.mxu0 0.0
      %548 = vmatprep.subr.mxu0 0.0
      %549 = vmatpush1.msra.mxu0 0.0
      %550 = vmatprep.subr.mxu0 0.0
      %551 = vmatpush1.msra.mxu0 0.0
      %552 = vmatprep.subr.mxu0 0.0
      %553 = vmatpush1.msra.mxu0 0.0
      %554 = vmatprep.subr.mxu0 0.0
      %555 = vmatpush1.msra.mxu0 0.0
      %556 = vmatprep.subr.mxu0 0.0
      %557 = vmatpush1.msra.mxu0 0.0
      %558 = vmatprep.subr.mxu0 0.0
      %559 = vmatpush1.msra.mxu0 0.0
      %560 = vmatprep.subr.mxu0 0.0
      %561 = vmatpush1.msra.mxu0 0.0
      %562 = vmatprep.subr.mxu0 0.0
      %563 = vmatpush1.msra.mxu0 0.0
      %564 = vmatprep.subr.mxu0 0.0
      %565 = vmatpush1.msra.mxu0 0.0
      %566 = vmatprep.subr.mxu0 0.0
      %567 = vmatpush1.msra.mxu0 %v451
      %568 = vmatprep.subr.mxu0 0.0
      %569 = vmatpush1.msra.mxu0 %v448
      %570 = vmatprep.subr.mxu0 0.0
      %571 = vmatpush1.msra.mxu0 %v445
      %572 = vmatprep.subr.mxu0 0.0
      %573 = vmatpush1.msra.mxu0 %v442
      %574 = vmatprep.subr.mxu0 0.0
      %575 = vmatpush1.msra.mxu0 %v439
      %576 = vmatprep.subr.mxu0 0.0
      %577 = vmatpush2.msra.mxu0 0.0
      %578 = vmatprep.subr.mxu0 0.0
      %579 = vmatpush2.msra.mxu0 0.0
      %580 = vmatprep.subr.mxu0 0.0
      %581 = vmatpush2.msra.mxu0 0.0
      %582 = vmatprep.subr.mxu0 0.0
      %583 = vmatpush2.msra.mxu0 0.0
      %584 = vmatprep.subr.mxu0 0.0
      %585 = vmatpush2.msra.mxu0 0.0
      %586 = vmatprep.subr.mxu0 0.0
      %587 = vmatpush2.msra.mxu0 0.0
      %588 = vmatprep.subr.mxu0 0.0
      %589 = vmatpush2.msra.mxu0 0.0
      %590 = vmatprep.subr.mxu0 0.0
      %591 = vmatpush2.msra.mxu0 0.0
      %592 = vmatprep.subr.mxu0 0.0
      %593 = vmatpush2.msra.mxu0 0.0
      %594 = vmatprep.subr.mxu0 0.0
      %595 = vmatpush2.msra.mxu0 0.0
      %596 = vmatprep.subr.mxu0 0.0
      %597 = vmatpush2.msra.mxu0 0.0
      %598 = vmatprep.subr.mxu0 0.0
      %599 = vmatpush2.msra.mxu0 0.0
      %600 = vmatprep.subr.mxu0 0.0
      %601 = vmatpush2.msra.mxu0 0.0
      %602 = vmatprep.subr.mxu0 0.0
      %603 = vmatpush2.msra.mxu0 0.0
      %604 = vmatprep.subr.mxu0 0.0
      %605 = vmatpush2.msra.mxu0 0.0
      %606 = vmatprep.subr.mxu0 0.0
      %607 = vmatpush2.msra.mxu0 0.0
      %608 = vmatprep.mubr.f32.mxu0 0.0
      %609 = vmatmul.mubr.f32.gmra.mxu0 %v471
      %v610 = vpop.f32.mrf.mxu0
      %v611 = vadd.f32 %v465, %v610
      %v612 = vpop.f32.mrf.mxu0
      %613 = vdwg.mxu0
      %v614 = vmax.f32 %v540, 0.0
      %v615 = vmax.f32 %v542, 0.0
      %v616 = vmax.f32 %v611, 0.0
      %v617 = vld [vmem:[%s3] sm:$0xff]
      %v618 = vld [vmem:[%s3 + $0x8] sm:$0xff]
      %v619 = vld [vmem:[%s3 + $0x10] sm:$0xff]
      %v620 = vld [vmem:[%s3 + $0x18] sm:$0xff]
      %v621 = vld [vmem:[%s3 + $0x20] sm:$0xff]
      %v622 = vld [vmem:[%s3 + $0x28] sm:$0xff]
      %v623 = vld [vmem:[%s3 + $0x30] sm:$0xff]
      %v624 = vld [vmem:[%s3 + $0x38] sm:$0xff]
      %v625 = vld [vmem:[%s3 + $0x40] sm:$0xff]
      %v626 = vld [vmem:[%s3 + $0x48] sm:$0xff]
      %v627 = vld [vmem:[%s3 + $0x50] sm:$0xff]
      %v628 = vld [vmem:[%s3 + $0x58] sm:$0xff]
      %v629 = vld [vmem:[%s3 + $0x60] sm:$0xff]
      %v630 = vld [vmem:[%s3 + $0x68] sm:$0xff]
      %v631 = vld [vmem:[%s3 + $0x70] sm:$0xff]
      %v632 = vld [vmem:[%s3 + $0x78] sm:$0xff]
      %v633 = vld [vmem:[%s3 + $0x80] sm:$0xff]
      %v634 = vld [vmem:[%s3 + $0x88] sm:$0xff]
      %v635 = vld [vmem:[%s3 + $0x90] sm:$0xff]
      %v636 = vld [vmem:[%s3 + $0x98] sm:$0xff]
      %v637 = vld [vmem:[%s3 + $0xa0] sm:$0xff]
      %v638 = vld [vmem:[%s3 + $0xa8] sm:$0xff]
      %v639 = vld [vmem:[%s3 + $0xb0] sm:$0xff]
      %v640 = vld [vmem:[%s3 + $0xb8] sm:$0xff]
      %v641 = vld [vmem:[%s3 + $0xc0] sm:$0xff]
      %v642 = vld [vmem:[%s3 + $0xc8] sm:$0xff]
      %v643 = vld [vmem:[%s3 + $0xd0] sm:$0xff]
      %v644 = vld [vmem:[%s3 + $0xd8] sm:$0xff]
      %v645 = vld [vmem:[%s3 + $0xe0] sm:$0xff]
      %v646 = vld [vmem:[%s3 + $0xe8] sm:$0xff]
      %v647 = vld [vmem:[%s3 + $0xf0] sm:$0xff]
      %v648 = vld [vmem:[%s3 + $0xf8] sm:$0xff]
      %v649 = vld [vmem:[%s3 + $0x100] sm:$0xff]
      %v650 = vld [vmem:[%s3 + $0x108] sm:$0xff]
      %v651 = vld [vmem:[%s3 + $0x110] sm:$0xff]
      %v652 = vld [vmem:[%s3 + $0x118] sm:$0xff]
      %v653 = vld [vmem:[%s3 + $0x120] sm:$0xff]
      %v654 = vld [vmem:[%s3 + $0x128] sm:$0xff]
      %v655 = vld [vmem:[%s3 + $0x130] sm:$0xff]
      %v656 = vld [vmem:[%s3 + $0x138] sm:$0xff]
      %v657 = vld [vmem:[%s4] sm:$0x1]
      %v659 = vlaneseq
      %v660 = vshrl.u32 %v659, 7
      %v661 = vsub.s32 0, %v660
      %v662 = vrot.slane %v657, %v661
      %vm664 = vcmask 523264
      %v666 = vsel %vm664, %v616, 0
      %668 = vmatprep.subr.mxu0 0.0
      %669 = vmatpush1.msra.mxu0 %v632
      %670 = vmatprep.subr.mxu0 0.0
      %671 = vmatpush1.msra.mxu0 %v631
      %672 = vmatprep.subr.mxu0 0.0
      %673 = vmatpush1.msra.mxu0 %v630
      %674 = vmatprep.subr.mxu0 0.0
      %675 = vmatpush1.msra.mxu0 %v629
      %676 = vmatprep.subr.mxu0 0.0
      %677 = vmatpush1.msra.mxu0 %v628
      %678 = vmatprep.subr.mxu0 0.0
      %679 = vmatpush1.msra.mxu0 %v627
      %680 = vmatprep.subr.mxu0 0.0
      %681 = vmatpush1.msra.mxu0 %v626
      %682 = vmatprep.subr.mxu0 0.0
      %683 = vmatpush1.msra.mxu0 %v625
      %684 = vmatprep.subr.mxu0 0.0
      %685 = vmatpush1.msra.mxu0 %v624
      %686 = vmatprep.subr.mxu0 0.0
      %687 = vmatpush1.msra.mxu0 %v623
      %688 = vmatprep.subr.mxu0 0.0
      %689 = vmatpush1.msra.mxu0 %v622
      %690 = vmatprep.subr.mxu0 0.0
      %691 = vmatpush1.msra.mxu0 %v621
      %692 = vmatprep.subr.mxu0 0.0
      %693 = vmatpush1.msra.mxu0 %v620
      %694 = vmatprep.subr.mxu0 0.0
      %695 = vmatpush1.msra.mxu0 %v619
      %696 = vmatprep.subr.mxu0 0.0
      %697 = vmatpush1.msra.mxu0 %v618
      %698 = vmatprep.subr.mxu0 0.0
      %699 = vmatpush1.msra.mxu0 %v617
      %700 = vmatprep.subr.mxu0 0.0
      %701 = vmatpush2.msra.mxu0 %v648
      %702 = vmatprep.subr.mxu0 0.0
      %703 = vmatpush2.msra.mxu0 %v647
      %704 = vmatprep.subr.mxu0 0.0
      %705 = vmatpush2.msra.mxu0 %v646
      %706 = vmatprep.subr.mxu0 0.0
      %707 = vmatpush2.msra.mxu0 %v645
      %708 = vmatprep.subr.mxu0 0.0
      %709 = vmatpush2.msra.mxu0 %v644
      %710 = vmatprep.subr.mxu0 0.0
      %711 = vmatpush2.msra.mxu0 %v643
      %712 = vmatprep.subr.mxu0 0.0
      %713 = vmatpush2.msra.mxu0 %v642
      %714 = vmatprep.subr.mxu0 0.0
      %715 = vmatpush2.msra.mxu0 %v641
      %716 = vmatprep.subr.mxu0 0.0
      %717 = vmatpush2.msra.mxu0 %v640
      %718 = vmatprep.subr.mxu0 0.0
      %719 = vmatpush2.msra.mxu0 %v639
      %720 = vmatprep.subr.mxu0 0.0
      %721 = vmatpush2.msra.mxu0 %v638
      %722 = vmatprep.subr.mxu0 0.0
      %723 = vmatpush2.msra.mxu0 %v637
      %724 = vmatprep.subr.mxu0 0.0
      %725 = vmatpush2.msra.mxu0 %v636
      %726 = vmatprep.subr.mxu0 0.0
      %727 = vmatpush2.msra.mxu0 %v635
      %728 = vmatprep.subr.mxu0 0.0
      %729 = vmatpush2.msra.mxu0 %v634
      %730 = vmatprep.subr.mxu0 0.0
      %731 = vmatpush2.msra.mxu0 %v633
      %732 = vmatprep.mubr.f32.mxu0 %v615
      %733 = vmatmul.mubr.f32.gmra.mxu0 %v614
      %v734 = vpop.f32.mrf.mxu0
      %v735 = vadd.f32 %v662, %v734
      %v736 = vpop.f32.mrf.mxu0
      %737 = vdwg.mxu0
      %738 = vmatprep.subr.mxu0 0.0
      %739 = vmatpush1.msra.mxu0 0.0
      %740 = vmatprep.subr.mxu0 0.0
      %741 = vmatpush1.msra.mxu0 0.0
      %742 = vmatprep.subr.mxu0 0.0
      %743 = vmatpush1.msra.mxu0 0.0
      %744 = vmatprep.subr.mxu0 0.0
      %745 = vmatpush1.msra.mxu0 0.0
      %746 = vmatprep.subr.mxu0 0.0
      %747 = vmatpush1.msra.mxu0 0.0
      %748 = vmatprep.subr.mxu0 0.0
      %749 = vmatpush1.msra.mxu0 0.0
      %750 = vmatprep.subr.mxu0 0.0
      %751 = vmatpush1.msra.mxu0 0.0
      %752 = vmatprep.subr.mxu0 0.0
      %753 = vmatpush1.msra.mxu0 0.0
      %754 = vmatprep.subr.mxu0 0.0
      %755 = vmatpush1.msra.mxu0 %v656
      %756 = vmatprep.subr.mxu0 0.0
      %757 = vmatpush1.msra.mxu0 %v655
      %758 = vmatprep.subr.mxu0 0.0
      %759 = vmatpush1.msra.mxu0 %v654
      %760 = vmatprep.subr.mxu0 0.0
      %761 = vmatpush1.msra.mxu0 %v653
      %762 = vmatprep.subr.mxu0 0.0
      %763 = vmatpush1.msra.mxu0 %v652
      %764 = vmatprep.subr.mxu0 0.0
      %765 = vmatpush1.msra.mxu0 %v651
      %766 = vmatprep.subr.mxu0 0.0
      %767 = vmatpush1.msra.mxu0 %v650
      %768 = vmatprep.subr.mxu0 0.0
      %769 = vmatpush1.msra.mxu0 %v649
      %770 = vmatprep.subr.mxu0 0.0
      %771 = vmatpush2.msra.mxu0 0.0
      %772 = vmatprep.subr.mxu0 0.0
      %773 = vmatpush2.msra.mxu0 0.0
      %774 = vmatprep.subr.mxu0 0.0
      %775 = vmatpush2.msra.mxu0 0.0
      %776 = vmatprep.subr.mxu0 0.0
      %777 = vmatpush2.msra.mxu0 0.0
      %778 = vmatprep.subr.mxu0 0.0
      %779 = vmatpush2.msra.mxu0 0.0
      %780 = vmatprep.subr.mxu0 0.0
      %781 = vmatpush2.msra.mxu0 0.0
      %782 = vmatprep.subr.mxu0 0.0
      %783 = vmatpush2.msra.mxu0 0.0
      %784 = vmatprep.subr.mxu0 0.0
      %785 = vmatpush2.msra.mxu0 0.0
      %786 = vmatprep.subr.mxu0 0.0
      %787 = vmatpush2.msra.mxu0 0.0
      %788 = vmatprep.subr.mxu0 0.0
      %789 = vmatpush2.msra.mxu0 0.0
      %790 = vmatprep.subr.mxu0 0.0
      %791 = vmatpush2.msra.mxu0 0.0
      %792 = vmatprep.subr.mxu0 0.0
      %793 = vmatpush2.msra.mxu0 0.0
      %794 = vmatprep.subr.mxu0 0.0
      %795 = vmatpush2.msra.mxu0 0.0
      %796 = vmatprep.subr.mxu0 0.0
      %797 = vmatpush2.msra.mxu0 0.0
      %798 = vmatprep.subr.mxu0 0.0
      %799 = vmatpush2.msra.mxu0 0.0
      %800 = vmatprep.subr.mxu0 0.0
      %801 = vmatpush2.msra.mxu0 0.0
      %802 = vmatprep.mubr.f32.mxu0 0.0
      %803 = vmatmul.mubr.f32.gmra.mxu0 %v666
      %v804 = vpop.f32.mrf.mxu0
      %v805 = vadd.f32 %v735, %v804
      %v806 = vpop.f32.mrf.mxu0
      %807 = vdwg.mxu0
      %v808 = vmax.f32 %v805, 0.0
      %v809 = vld [vmem:[%s5] sm:$0xff]
      %v810 = vld [vmem:[%s5 + $0x8] sm:$0xff]
      %v811 = vld [vmem:[%s5 + $0x10] sm:$0xff]
      %v812 = vld [vmem:[%s5 + $0x18] sm:$0xff]
      %v813 = vld [vmem:[%s7] sm:$0x1]
      %v815 = vlaneseq
      %v816 = vshrl.u32 %v815, 7
      %v817 = vsub.s32 0, %v816
      %v818 = vrot.slane %v813, %v817
      %vm820 = vcmask 261120
      %v822 = vsel %vm820, %v808, 0
      %824 = vmatprep.subr.mxu0 0.0
      %825 = vmatpush1.msra.mxu0 0.0
      %826 = vmatprep.subr.mxu0 0.0
      %827 = vmatpush1.msra.mxu0 0.0
      %828 = vmatprep.subr.mxu0 0.0
      %829 = vmatpush1.msra.mxu0 0.0
      %830 = vmatprep.subr.mxu0 0.0
      %831 = vmatpush1.msra.mxu0 0.0
      %832 = vmatprep.subr.mxu0 0.0
      %833 = vmatpush1.msra.mxu0 0.0
      %834 = vmatprep.subr.mxu0 0.0
      %835 = vmatpush1.msra.mxu0 0.0
      %836 = vmatprep.subr.mxu0 0.0
      %837 = vmatpush1.msra.mxu0 0.0
      %838 = vmatprep.subr.mxu0 0.0
      %839 = vmatpush1.msra.mxu0 0.0
      %840 = vmatprep.subr.mxu0 0.0
      %841 = vmatpush1.msra.mxu0 0.0
      %842 = vmatprep.subr.mxu0 0.0
      %843 = vmatpush1.msra.mxu0 0.0
      %844 = vmatprep.subr.mxu0 0.0
      %845 = vmatpush1.msra.mxu0 0.0
      %846 = vmatprep.subr.mxu0 0.0
      %847 = vmatpush1.msra.mxu0 0.0
      %848 = vmatprep.subr.mxu0 0.0
      %849 = vmatpush1.msra.mxu0 %v812
      %850 = vmatprep.subr.mxu0 0.0
      %851 = vmatpush1.msra.mxu0 %v811
      %852 = vmatprep.subr.mxu0 0.0
      %853 = vmatpush1.msra.mxu0 %v810
      %854 = vmatprep.subr.mxu0 0.0
      %855 = vmatpush1.msra.mxu0 %v809
      %856 = vmatprep.subr.mxu0 0.0
      %857 = vmatpush2.msra.mxu0 0.0
      %858 = vmatprep.subr.mxu0 0.0
      %859 = vmatpush2.msra.mxu0 0.0
      %860 = vmatprep.subr.mxu0 0.0
      %861 = vmatpush2.msra.mxu0 0.0
      %862 = vmatprep.subr.mxu0 0.0
      %863 = vmatpush2.msra.mxu0 0.0
      %864 = vmatprep.subr.mxu0 0.0
      %865 = vmatpush2.msra.mxu0 0.0
      %866 = vmatprep.subr.mxu0 0.0
      %867 = vmatpush2.msra.mxu0 0.0
      %868 = vmatprep.subr.mxu0 0.0
      %869 = vmatpush2.msra.mxu0 0.0
      %870 = vmatprep.subr.mxu0 0.0
      %871 = vmatpush2.msra.mxu0 0.0
      %872 = vmatprep.subr.mxu0 0.0
      %873 = vmatpush2.msra.mxu0 0.0
      %874 = vmatprep.subr.mxu0 0.0
      %875 = vmatpush2.msra.mxu0 0.0
      %876 = vmatprep.subr.mxu0 0.0
      %877 = vmatpush2.msra.mxu0 0.0
      %878 = vmatprep.subr.mxu0 0.0
      %879 = vmatpush2.msra.mxu0 0.0
      %880 = vmatprep.subr.mxu0 0.0
      %881 = vmatpush2.msra.mxu0 0.0
      %882 = vmatprep.subr.mxu0 0.0
      %883 = vmatpush2.msra.mxu0 0.0
      %884 = vmatprep.subr.mxu0 0.0
      %885 = vmatpush2.msra.mxu0 0.0
      %886 = vmatprep.subr.mxu0 0.0
      %887 = vmatpush2.msra.mxu0 0.0
      %888 = vmatprep.mubr.f32.mxu0 0.0
      %889 = vmatmul.mubr.f32.gmra.mxu0 %v822
      %v890 = vpop.f32.mrf.mxu0
      %v891 = vadd.f32 %v818, %v890
      %v892 = vpop.f32.mrf.mxu0
      %893 = vdwg.mxu0
      %v894 = vld [vmem:[%s6] sm:$0xff]
      %v895 = vld [vmem:[%s6 + $0x8] sm:$0xff]
      %v896 = vld [vmem:[%s6 + $0x10] sm:$0xff]
      %v897 = vld [vmem:[%s6 + $0x18] sm:$0xff]
      %v898 = vld [vmem:[%s8] sm:$0xff]
      %v899 = vld [vmem:[%s8 + $0x8] sm:$0xff]
      %v900 = vld [vmem:[%s8 + $0x10] sm:$0xff]
      %v901 = vld [vmem:[%s8 + $0x18] sm:$0xff]
      %v902 = vld [vmem:[%s9] sm:$0xff]
      %v903 = vld [vmem:[%s9 + $0x8] sm:$0xff]
      %v904 = vld [vmem:[%s9 + $0x10] sm:$0xff]
      %v905 = vld [vmem:[%s9 + $0x18] sm:$0xff]
      %v906 = vld [vmem:[%s10] sm:$0x1]
      %v908 = vsel %vm820, 0.0, 0
      %910 = vmatprep.subr.mxu0 0.0
      %911 = vmatpush1.msra.mxu0 0.0
      %912 = vmatprep.subr.mxu0 0.0
      %913 = vmatpush1.msra.mxu0 0.0
      %914 = vmatprep.subr.mxu0 0.0
      %915 = vmatpush1.msra.mxu0 0.0
      %916 = vmatprep.subr.mxu0 0.0
      %917 = vmatpush1.msra.mxu0 0.0
      %918 = vmatprep.subr.mxu0 0.0
      %919 = vmatpush1.msra.mxu0 0.0
      %920 = vmatprep.subr.mxu0 0.0
      %921 = vmatpush1.msra.mxu0 0.0
      %922 = vmatprep.subr.mxu0 0.0
      %923 = vmatpush1.msra.mxu0 0.0
      %924 = vmatprep.subr.mxu0 0.0
      %925 = vmatpush1.msra.mxu0 0.0
      %926 = vmatprep.subr.mxu0 0.0
      %927 = vmatpush1.msra.mxu0 0.0
      %928 = vmatprep.subr.mxu0 0.0
      %929 = vmatpush1.msra.mxu0 0.0
      %930 = vmatprep.subr.mxu0 0.0
      %931 = vmatpush1.msra.mxu0 0.0
      %932 = vmatprep.subr.mxu0 0.0
      %933 = vmatpush1.msra.mxu0 0.0
      %934 = vmatprep.subr.mxu0 0.0
      %935 = vmatpush1.msra.mxu0 %v897
      %936 = vmatprep.subr.mxu0 0.0
      %937 = vmatpush1.msra.mxu0 %v896
      %938 = vmatprep.subr.mxu0 0.0
      %939 = vmatpush1.msra.mxu0 %v895
      %940 = vmatprep.subr.mxu0 0.0
      %941 = vmatpush1.msra.mxu0 %v894
      %942 = vmatprep.subr.mxu0 0.0
      %943 = vmatpush2.msra.mxu0 0.0
      %944 = vmatprep.subr.mxu0 0.0
      %945 = vmatpush2.msra.mxu0 0.0
      %946 = vmatprep.subr.mxu0 0.0
      %947 = vmatpush2.msra.mxu0 0.0
      %948 = vmatprep.subr.mxu0 0.0
      %949 = vmatpush2.msra.mxu0 0.0
      %950 = vmatprep.subr.mxu0 0.0
      %951 = vmatpush2.msra.mxu0 0.0
      %952 = vmatprep.subr.mxu0 0.0
      %953 = vmatpush2.msra.mxu0 0.0
      %954 = vmatprep.subr.mxu0 0.0
      %955 = vmatpush2.msra.mxu0 0.0
      %956 = vmatprep.subr.mxu0 0.0
      %957 = vmatpush2.msra.mxu0 0.0
      %958 = vmatprep.subr.mxu0 0.0
      %959 = vmatpush2.msra.mxu0 0.0
      %960 = vmatprep.subr.mxu0 0.0
      %961 = vmatpush2.msra.mxu0 0.0
      %962 = vmatprep.subr.mxu0 0.0
      %963 = vmatpush2.msra.mxu0 0.0
      %964 = vmatprep.subr.mxu0 0.0
      %965 = vmatpush2.msra.mxu0 0.0
      %966 = vmatprep.subr.mxu0 0.0
      %967 = vmatpush2.msra.mxu0 0.0
      %968 = vmatprep.subr.mxu0 0.0
      %969 = vmatpush2.msra.mxu0 0.0
      %970 = vmatprep.subr.mxu0 0.0
      %971 = vmatpush2.msra.mxu0 0.0
      %972 = vmatprep.subr.mxu0 0.0
      %973 = vmatpush2.msra.mxu0 0.0
      %974 = vmatprep.mubr.f32.mxu0 0.0
      %975 = vmatmul.mubr.f32.gmra.mxu0 %v908
      %v976 = vpop.f32.mrf.mxu0
      %v977 = vadd.f32 0.0, %v976
      %v978 = vpop.f32.mrf.mxu0
      %979 = vdwg.mxu0
      %v980 = vadd.f32 %v891, %v977
      %v981 = vxor.u32 %v980, 2147483648
      %v982 = vmul.f32 %v981, 1.442695
      %v983 = vpow.pop %v982
      %v984 = vadd.f32 %v983, 1.0
      %v985 = vrcp.pop %v984
      %v986 = vmul.f32 1.0, %v985
      %v987 = vtanh.pop %v980
      %v988 = vmul.f32 %v986, 0.0
      %990 = vrot.lane.b32.xlu0 %v987, 64
      %v991 = vpop.permute.xlu0 %990
      %v993 = vmul.f32 %v986, %v991
      %995 = vrot.lane.b32.xlu0 %v993, 32
      %v996 = vpop.permute.xlu0 %995
      %v998 = vadd.f32 %v988, %v996
      %v999 = vtanh.pop %v998
      %1001 = vrot.lane.b32.xlu0 %v999, 64
      %v1002 = vpop.permute.xlu0 %1001
      %v1004 = vmul.f32 %v986, %v1002
      %1005 = vmatprep.subr.mxu0 0.0
      %1006 = vmatpush1.msra.mxu0 0.0
      %1007 = vmatprep.subr.mxu0 0.0
      %1008 = vmatpush1.msra.mxu0 0.0
      %1009 = vmatprep.subr.mxu0 0.0
      %1010 = vmatpush1.msra.mxu0 0.0
      %1011 = vmatprep.subr.mxu0 0.0
      %1012 = vmatpush1.msra.mxu0 0.0
      %1013 = vmatprep.subr.mxu0 0.0
      %1014 = vmatpush1.msra.mxu0 0.0
      %1015 = vmatprep.subr.mxu0 0.0
      %1016 = vmatpush1.msra.mxu0 0.0
      %1017 = vmatprep.subr.mxu0 0.0
      %1018 = vmatpush1.msra.mxu0 0.0
      %1019 = vmatprep.subr.mxu0 0.0
      %1020 = vmatpush1.msra.mxu0 0.0
      %1021 = vmatprep.subr.mxu0 0.0
      %1022 = vmatpush1.msra.mxu0 0.0
      %1023 = vmatprep.subr.mxu0 0.0
      %1024 = vmatpush1.msra.mxu0 0.0
      %1025 = vmatprep.subr.mxu0 0.0
      %1026 = vmatpush1.msra.mxu0 0.0
      %1027 = vmatprep.subr.mxu0 0.0
      %1028 = vmatpush1.msra.mxu0 0.0
      %1029 = vmatprep.subr.mxu0 0.0
      %1030 = vmatpush1.msra.mxu0 %v905
      %1031 = vmatprep.subr.mxu0 0.0
      %1032 = vmatpush1.msra.mxu0 %v904
      %1033 = vmatprep.subr.mxu0 0.0
      %1034 = vmatpush1.msra.mxu0 %v903
      %1035 = vmatprep.subr.mxu0 0.0
      %1036 = vmatpush1.msra.mxu0 %v902
      %1037 = vmatprep.subr.mxu0 0.0
      %1038 = vmatpush2.msra.mxu0 0.0
      %1039 = vmatprep.subr.mxu0 0.0
      %1040 = vmatpush2.msra.mxu0 0.0
      %1041 = vmatprep.subr.mxu0 0.0
      %1042 = vmatpush2.msra.mxu0 0.0
      %1043 = vmatprep.subr.mxu0 0.0
      %1044 = vmatpush2.msra.mxu0 0.0
      %1045 = vmatprep.subr.mxu0 0.0
      %1046 = vmatpush2.msra.mxu0 0.0
      %1047 = vmatprep.subr.mxu0 0.0
      %1048 = vmatpush2.msra.mxu0 0.0
      %1049 = vmatprep.subr.mxu0 0.0
      %1050 = vmatpush2.msra.mxu0 0.0
      %1051 = vmatprep.subr.mxu0 0.0
      %1052 = vmatpush2.msra.mxu0 0.0
      %1053 = vmatprep.subr.mxu0 0.0
      %1054 = vmatpush2.msra.mxu0 0.0
      %1055 = vmatprep.subr.mxu0 0.0
      %1056 = vmatpush2.msra.mxu0 0.0
      %1057 = vmatprep.subr.mxu0 0.0
      %1058 = vmatpush2.msra.mxu0 0.0
      %1059 = vmatprep.subr.mxu0 0.0
      %1060 = vmatpush2.msra.mxu0 0.0
      %1061 = vmatprep.subr.mxu0 0.0
      %1062 = vmatpush2.msra.mxu0 0.0
      %1063 = vmatprep.subr.mxu0 0.0
      %1064 = vmatpush2.msra.mxu0 0.0
      %1065 = vmatprep.subr.mxu0 0.0
      %1066 = vmatpush2.msra.mxu0 0.0
      %1067 = vmatprep.subr.mxu0 0.0
      %1068 = vmatpush2.msra.mxu0 0.0
      %1069 = vmatprep.mubr.f32.mxu0 0.0
      %1070 = vmatmul.mubr.f32.gmra.mxu0 %v908
      %v1071 = vpop.f32.mrf.mxu0
      %v1072 = vadd.f32 0.0, %v1071
      %v1073 = vpop.f32.mrf.mxu0
      %1074 = vdwg.mxu0
      %1076 = vrot.lane.b32.xlu0 %v1004, 32
      %v1077 = vpop.permute.xlu0 %1076
      %v1078 = vsel %vm820, %v1077, 0
      %1080 = vmatprep.subr.mxu0 0.0
      %1081 = vmatpush1.msra.mxu0 0.0
      %1082 = vmatprep.subr.mxu0 0.0
      %1083 = vmatpush1.msra.mxu0 0.0
      %1084 = vmatprep.subr.mxu0 0.0
      %1085 = vmatpush1.msra.mxu0 0.0
      %1086 = vmatprep.subr.mxu0 0.0
      %1087 = vmatpush1.msra.mxu0 0.0
      %1088 = vmatprep.subr.mxu0 0.0
      %1089 = vmatpush1.msra.mxu0 0.0
      %1090 = vmatprep.subr.mxu0 0.0
      %1091 = vmatpush1.msra.mxu0 0.0
      %1092 = vmatprep.subr.mxu0 0.0
      %1093 = vmatpush1.msra.mxu0 0.0
      %1094 = vmatprep.subr.mxu0 0.0
      %1095 = vmatpush1.msra.mxu0 0.0
      %1096 = vmatprep.subr.mxu0 0.0
      %1097 = vmatpush1.msra.mxu0 0.0
      %1098 = vmatprep.subr.mxu0 0.0
      %1099 = vmatpush1.msra.mxu0 0.0
      %1100 = vmatprep.subr.mxu0 0.0
      %1101 = vmatpush1.msra.mxu0 0.0
      %1102 = vmatprep.subr.mxu0 0.0
      %1103 = vmatpush1.msra.mxu0 0.0
      %1104 = vmatprep.subr.mxu0 0.0
      %1105 = vmatpush1.msra.mxu0 %v901
      %1106 = vmatprep.subr.mxu0 0.0
      %1107 = vmatpush1.msra.mxu0 %v900
      %1108 = vmatprep.subr.mxu0 0.0
      %1109 = vmatpush1.msra.mxu0 %v899
      %1110 = vmatprep.subr.mxu0 0.0
      %1111 = vmatpush1.msra.mxu0 %v898
      %1112 = vmatprep.subr.mxu0 0.0
      %1113 = vmatpush2.msra.mxu0 0.0
      %1114 = vmatprep.subr.mxu0 0.0
      %1115 = vmatpush2.msra.mxu0 0.0
      %1116 = vmatprep.subr.mxu0 0.0
      %1117 = vmatpush2.msra.mxu0 0.0
      %1118 = vmatprep.subr.mxu0 0.0
      %1119 = vmatpush2.msra.mxu0 0.0
      %1120 = vmatprep.subr.mxu0 0.0
      %1121 = vmatpush2.msra.mxu0 0.0
      %1122 = vmatprep.subr.mxu0 0.0
      %1123 = vmatpush2.msra.mxu0 0.0
      %1124 = vmatprep.subr.mxu0 0.0
      %1125 = vmatpush2.msra.mxu0 0.0
      %1126 = vmatprep.subr.mxu0 0.0
      %1127 = vmatpush2.msra.mxu0 0.0
      %1128 = vmatprep.subr.mxu0 0.0
      %1129 = vmatpush2.msra.mxu0 0.0
      %1130 = vmatprep.subr.mxu0 0.0
      %1131 = vmatpush2.msra.mxu0 0.0
      %1132 = vmatprep.subr.mxu0 0.0
      %1133 = vmatpush2.msra.mxu0 0.0
      %1134 = vmatprep.subr.mxu0 0.0
      %1135 = vmatpush2.msra.mxu0 0.0
      %1136 = vmatprep.subr.mxu0 0.0
      %1137 = vmatpush2.msra.mxu0 0.0
      %1138 = vmatprep.subr.mxu0 0.0
      %1139 = vmatpush2.msra.mxu0 0.0
      %1140 = vmatprep.subr.mxu0 0.0
      %1141 = vmatpush2.msra.mxu0 0.0
      %1142 = vmatprep.subr.mxu0 0.0
      %1143 = vmatpush2.msra.mxu0 0.0
      %1144 = vmatprep.mubr.f32.mxu0 0.0
      %1145 = vmatmul.mubr.f32.gmra.mxu0 %v1078
      %v1146 = vpop.f32.mrf.mxu0
      %v1147 = vadd.f32 %v1072, %v1146
      %v1148 = vpop.f32.mrf.mxu0
      %1149 = vdwg.mxu0
      %v1150 = vadd.f32 %v1147, %v906
      %v1151 = vxor.u32 %v1150, 2147483648
      %v1152 = vmul.f32 %v1151, 1.442695
      %v1153 = vpow.pop %v1152
      %v1154 = vadd.f32 %v1153, 1.0
      %v1155 = vrcp.pop %v1154
      %v1156 = vmul.f32 1.0, %v1155
      %v1157 = vtanh.pop %v1150
      %v1158 = vmul.f32 %v1156, 0.0
      %1160 = vrot.lane.b32.xlu0 %v1157, 64
      %v1161 = vpop.permute.xlu0 %1160
      %v1163 = vmul.f32 %v1156, %v1161
      %1165 = vrot.lane.b32.xlu0 %v1163, 32
      %v1166 = vpop.permute.xlu0 %1165
      %v1168 = vadd.f32 %v1158, %v1166
      %v1169 = vtanh.pop %v1168
      %1171 = vrot.lane.b32.xlu0 %v1169, 64
      %v1172 = vpop.permute.xlu0 %1171
      %v1174 = vmul.f32 %v1156, %v1172
      %1176 = vrot.lane.b32.xlu0 %v1174, 32
      %v1177 = vpop.permute.xlu0 %1176
      %vm1179 = vcmask 253952
      %1180 = vst.msk [vmem:[#allocation2] sm:$0x1] %vm1179, %v1177
      %1181 = vmatprep.subr.mxu0 0.0
      %1182 = vmatpush1.msra.mxu0 0.0
      %1183 = vmatprep.subr.mxu0 0.0
      %1184 = vmatpush1.msra.mxu0 0.0
      %1185 = vmatprep.subr.mxu0 0.0
      %1186 = vmatpush1.msra.mxu0 0.0
      %1187 = vmatprep.subr.mxu0 0.0
      %1188 = vmatpush1.msra.mxu0 0.0
      %1189 = vmatprep.subr.mxu0 0.0
      %1190 = vmatpush1.msra.mxu0 0.0
      %1191 = vmatprep.subr.mxu0 0.0
      %1192 = vmatpush1.msra.mxu0 0.0
      %1193 = vmatprep.subr.mxu0 0.0
      %1194 = vmatpush1.msra.mxu0 0.0
      %1195 = vmatprep.subr.mxu0 0.0
      %1196 = vmatpush1.msra.mxu0 0.0
      %1197 = vmatprep.subr.mxu0 0.0
      %1198 = vmatpush1.msra.mxu0 0.0
      %1199 = vmatprep.subr.mxu0 0.0
      %1200 = vmatpush1.msra.mxu0 0.0
      %1201 = vmatprep.subr.mxu0 0.0
      %1202 = vmatpush1.msra.mxu0 0.0
      %1203 = vmatprep.subr.mxu0 0.0
      %1204 = vmatpush1.msra.mxu0 0.0
      %1205 = vmatprep.subr.mxu0 0.0
      %1206 = vmatpush1.msra.mxu0 %v897
      %1207 = vmatprep.subr.mxu0 0.0
      %1208 = vmatpush1.msra.mxu0 %v896
      %1209 = vmatprep.subr.mxu0 0.0
      %1210 = vmatpush1.msra.mxu0 %v895
      %1211 = vmatprep.subr.mxu0 0.0
      %1212 = vmatpush1.msra.mxu0 %v894
      %1213 = vmatprep.subr.mxu0 0.0
      %1214 = vmatpush2.msra.mxu0 0.0
      %1215 = vmatprep.subr.mxu0 0.0
      %1216 = vmatpush2.msra.mxu0 0.0
      %1217 = vmatprep.subr.mxu0 0.0
      %1218 = vmatpush2.msra.mxu0 0.0
      %1219 = vmatprep.subr.mxu0 0.0
      %1220 = vmatpush2.msra.mxu0 0.0
      %1221 = vmatprep.subr.mxu0 0.0
      %1222 = vmatpush2.msra.mxu0 0.0
      %1223 = vmatprep.subr.mxu0 0.0
      %1224 = vmatpush2.msra.mxu0 0.0
      %1225 = vmatprep.subr.mxu0 0.0
      %1226 = vmatpush2.msra.mxu0 0.0
      %1227 = vmatprep.subr.mxu0 0.0
      %1228 = vmatpush2.msra.mxu0 0.0
      %1229 = vmatprep.subr.mxu0 0.0
      %1230 = vmatpush2.msra.mxu0 0.0
      %1231 = vmatprep.subr.mxu0 0.0
      %1232 = vmatpush2.msra.mxu0 0.0
      %1233 = vmatprep.subr.mxu0 0.0
      %1234 = vmatpush2.msra.mxu0 0.0
      %1235 = vmatprep.subr.mxu0 0.0
      %1236 = vmatpush2.msra.mxu0 0.0
      %1237 = vmatprep.subr.mxu0 0.0
      %1238 = vmatpush2.msra.mxu0 0.0
      %1239 = vmatprep.subr.mxu0 0.0
      %1240 = vmatpush2.msra.mxu0 0.0
      %1241 = vmatprep.subr.mxu0 0.0
      %1242 = vmatpush2.msra.mxu0 0.0
      %1243 = vmatprep.subr.mxu0 0.0
      %1244 = vmatpush2.msra.mxu0 0.0
      %1245 = vmatprep.mubr.f32.mxu0 0.0
      %1246 = vmatmul.mubr.f32.gmra.mxu0 %v1078
      %v1247 = vpop.f32.mrf.mxu0
      %v1248 = vadd.f32 0.0, %v1247
      %v1249 = vpop.f32.mrf.mxu0
      %1250 = vdwg.mxu0
      %v1252 = vrot.slane %v1248, 7
      %v1254 = vadd.f32 %v891, %v1252
      %v1255 = vxor.u32 %v1254, 2147483648
      %v1256 = vmul.f32 %v1255, 1.442695
      %v1257 = vpow.pop %v1256
      %v1258 = vadd.f32 %v1257, 1.0
      %v1259 = vrcp.pop %v1258
      %v1260 = vmul.f32 1.0, %v1259
      %v1261 = vtanh.pop %v1254
      %v1263 = vrot.slane %v998, 7
      %v1265 = vmul.f32 %v1260, %v1263
      %1267 = vrot.lane.b32.xlu0 %v1261, 64
      %v1268 = vpop.permute.xlu0 %1267
      %v1270 = vmul.f32 %v1260, %v1268
      %1272 = vrot.lane.b32.xlu0 %v1270, 32
      %v1273 = vpop.permute.xlu0 %1272
      %v1275 = vadd.f32 %v1265, %v1273
      %v1276 = vtanh.pop %v1275
      %1278 = vrot.lane.b32.xlu0 %v1276, 64
      %v1279 = vpop.permute.xlu0 %1278
      %v1281 = vmul.f32 %v1260, %v1279
      %v1282 = vsel %vm820, %v1177, 0
      %1284 = vmatprep.subr.mxu0 0.0
      %1285 = vmatpush1.msra.mxu0 0.0
      %1286 = vmatprep.subr.mxu0 0.0
      %1287 = vmatpush1.msra.mxu0 0.0
      %1288 = vmatprep.subr.mxu0 0.0
      %1289 = vmatpush1.msra.mxu0 0.0
      %1290 = vmatprep.subr.mxu0 0.0
      %1291 = vmatpush1.msra.mxu0 0.0
      %1292 = vmatprep.subr.mxu0 0.0
      %1293 = vmatpush1.msra.mxu0 0.0
      %1294 = vmatprep.subr.mxu0 0.0
      %1295 = vmatpush1.msra.mxu0 0.0
      %1296 = vmatprep.subr.mxu0 0.0
      %1297 = vmatpush1.msra.mxu0 0.0
      %1298 = vmatprep.subr.mxu0 0.0
      %1299 = vmatpush1.msra.mxu0 0.0
      %1300 = vmatprep.subr.mxu0 0.0
      %1301 = vmatpush1.msra.mxu0 0.0
      %1302 = vmatprep.subr.mxu0 0.0
      %1303 = vmatpush1.msra.mxu0 0.0
      %1304 = vmatprep.subr.mxu0 0.0
      %1305 = vmatpush1.msra.mxu0 0.0
      %1306 = vmatprep.subr.mxu0 0.0
      %1307 = vmatpush1.msra.mxu0 0.0
      %1308 = vmatprep.subr.mxu0 0.0
      %1309 = vmatpush1.msra.mxu0 %v905
      %1310 = vmatprep.subr.mxu0 0.0
      %1311 = vmatpush1.msra.mxu0 %v904
      %1312 = vmatprep.subr.mxu0 0.0
      %1313 = vmatpush1.msra.mxu0 %v903
      %1314 = vmatprep.subr.mxu0 0.0
      %1315 = vmatpush1.msra.mxu0 %v902
      %1316 = vmatprep.subr.mxu0 0.0
      %1317 = vmatpush2.msra.mxu0 0.0
      %1318 = vmatprep.subr.mxu0 0.0
      %1319 = vmatpush2.msra.mxu0 0.0
      %1320 = vmatprep.subr.mxu0 0.0
      %1321 = vmatpush2.msra.mxu0 0.0
      %1322 = vmatprep.subr.mxu0 0.0
      %1323 = vmatpush2.msra.mxu0 0.0
      %1324 = vmatprep.subr.mxu0 0.0
      %1325 = vmatpush2.msra.mxu0 0.0
      %1326 = vmatprep.subr.mxu0 0.0
      %1327 = vmatpush2.msra.mxu0 0.0
      %1328 = vmatprep.subr.mxu0 0.0
      %1329 = vmatpush2.msra.mxu0 0.0
      %1330 = vmatprep.subr.mxu0 0.0
      %1331 = vmatpush2.msra.mxu0 0.0
      %1332 = vmatprep.subr.mxu0 0.0
      %1333 = vmatpush2.msra.mxu0 0.0
      %1334 = vmatprep.subr.mxu0 0.0
      %1335 = vmatpush2.msra.mxu0 0.0
      %1336 = vmatprep.subr.mxu0 0.0
      %1337 = vmatpush2.msra.mxu0 0.0
      %1338 = vmatprep.subr.mxu0 0.0
      %1339 = vmatpush2.msra.mxu0 0.0
      %1340 = vmatprep.subr.mxu0 0.0
      %1341 = vmatpush2.msra.mxu0 0.0
      %1342 = vmatprep.subr.mxu0 0.0
      %1343 = vmatpush2.msra.mxu0 0.0
      %1344 = vmatprep.subr.mxu0 0.0
      %1345 = vmatpush2.msra.mxu0 0.0
      %1346 = vmatprep.subr.mxu0 0.0
      %1347 = vmatpush2.msra.mxu0 0.0
      %1348 = vmatprep.mubr.f32.mxu0 0.0
      %1349 = vmatmul.mubr.f32.gmra.mxu0 %v1282
      %v1350 = vpop.f32.mrf.mxu0
      %v1351 = vadd.f32 0.0, %v1350
      %v1352 = vpop.f32.mrf.mxu0
      %1353 = vdwg.mxu0
      %v1355 = vrot.slane %v1281, 1
      %1356 = vrot.lane.b32.xlu0 %v1355, 32
      %v1357 = vpop.permute.xlu0 %1356
      %v1358 = vsel %vm820, %v1357, 0
      %1360 = vmatprep.subr.mxu0 0.0
      %1361 = vmatpush1.msra.mxu0 0.0
      %1362 = vmatprep.subr.mxu0 0.0
      %1363 = vmatpush1.msra.mxu0 0.0
      %1364 = vmatprep.subr.mxu0 0.0
      %1365 = vmatpush1.msra.mxu0 0.0
      %1366 = vmatprep.subr.mxu0 0.0
      %1367 = vmatpush1.msra.mxu0 0.0
      %1368 = vmatprep.subr.mxu0 0.0
      %1369 = vmatpush1.msra.mxu0 0.0
      %1370 = vmatprep.subr.mxu0 0.0
      %1371 = vmatpush1.msra.mxu0 0.0
      %1372 = vmatprep.subr.mxu0 0.0
      %1373 = vmatpush1.msra.mxu0 0.0
      %1374 = vmatprep.subr.mxu0 0.0
      %1375 = vmatpush1.msra.mxu0 0.0
      %1376 = vmatprep.subr.mxu0 0.0
      %1377 = vmatpush1.msra.mxu0 0.0
      %1378 = vmatprep.subr.mxu0 0.0
      %1379 = vmatpush1.msra.mxu0 0.0
      %1380 = vmatprep.subr.mxu0 0.0
      %1381 = vmatpush1.msra.mxu0 0.0
      %1382 = vmatprep.subr.mxu0 0.0
      %1383 = vmatpush1.msra.mxu0 0.0
      %1384 = vmatprep.subr.mxu0 0.0
      %1385 = vmatpush1.msra.mxu0 %v901
      %1386 = vmatprep.subr.mxu0 0.0
      %1387 = vmatpush1.msra.mxu0 %v900
      %1388 = vmatprep.subr.mxu0 0.0
      %1389 = vmatpush1.msra.mxu0 %v899
      %1390 = vmatprep.subr.mxu0 0.0
      %1391 = vmatpush1.msra.mxu0 %v898
      %1392 = vmatprep.subr.mxu0 0.0
      %1393 = vmatpush2.msra.mxu0 0.0
      %1394 = vmatprep.subr.mxu0 0.0
      %1395 = vmatpush2.msra.mxu0 0.0
      %1396 = vmatprep.subr.mxu0 0.0
      %1397 = vmatpush2.msra.mxu0 0.0
      %1398 = vmatprep.subr.mxu0 0.0
      %1399 = vmatpush2.msra.mxu0 0.0
      %1400 = vmatprep.subr.mxu0 0.0
      %1401 = vmatpush2.msra.mxu0 0.0
      %1402 = vmatprep.subr.mxu0 0.0
      %1403 = vmatpush2.msra.mxu0 0.0
      %1404 = vmatprep.subr.mxu0 0.0
      %1405 = vmatpush2.msra.mxu0 0.0
      %1406 = vmatprep.subr.mxu0 0.0
      %1407 = vmatpush2.msra.mxu0 0.0
      %1408 = vmatprep.subr.mxu0 0.0
      %1409 = vmatpush2.msra.mxu0 0.0
      %1410 = vmatprep.subr.mxu0 0.0
      %1411 = vmatpush2.msra.mxu0 0.0
      %1412 = vmatprep.subr.mxu0 0.0
      %1413 = vmatpush2.msra.mxu0 0.0
      %1414 = vmatprep.subr.mxu0 0.0
      %1415 = vmatpush2.msra.mxu0 0.0
      %1416 = vmatprep.subr.mxu0 0.0
      %1417 = vmatpush2.msra.mxu0 0.0
      %1418 = vmatprep.subr.mxu0 0.0
      %1419 = vmatpush2.msra.mxu0 0.0
      %1420 = vmatprep.subr.mxu0 0.0
      %1421 = vmatpush2.msra.mxu0 0.0
      %1422 = vmatprep.subr.mxu0 0.0
      %1423 = vmatpush2.msra.mxu0 0.0
      %1424 = vmatprep.mubr.f32.mxu0 0.0
      %1425 = vmatmul.mubr.f32.gmra.mxu0 %v1358
      %v1426 = vpop.f32.mrf.mxu0
      %v1427 = vadd.f32 %v1351, %v1426
      %v1428 = vpop.f32.mrf.mxu0
      %1429 = vdwg.mxu0
      %v1430 = vadd.f32 %v1427, %v906
      %v1431 = vxor.u32 %v1430, 2147483648
      %v1432 = vmul.f32 %v1431, 1.442695
      %v1433 = vpow.pop %v1432
      %v1434 = vadd.f32 %v1433, 1.0
      %v1435 = vrcp.pop %v1434
      %v1436 = vmul.f32 1.0, %v1435
      %v1437 = vtanh.pop %v1430
      %v1438 = vmul.f32 %v1436, %v1168
      %1440 = vrot.lane.b32.xlu0 %v1437, 64
      %v1441 = vpop.permute.xlu0 %1440
      %v1443 = vmul.f32 %v1436, %v1441
      %1445 = vrot.lane.b32.xlu0 %v1443, 32
      %v1446 = vpop.permute.xlu0 %1445
      %v1448 = vadd.f32 %v1438, %v1446
      %v1449 = vtanh.pop %v1448
      %1451 = vrot.lane.b32.xlu0 %v1449, 64
      %v1452 = vpop.permute.xlu0 %1451
      %v1454 = vmul.f32 %v1436, %v1452
      %1456 = vrot.lane.b32.xlu0 %v1454, 32
      %v1457 = vpop.permute.xlu0 %1456
      %1459 = vst.msk [vmem:[#allocation2 + $0x1] sm:$0x1] %vm1179, %v1457
      %1460 = vmatprep.subr.mxu0 0.0
      %1461 = vmatpush1.msra.mxu0 0.0
      %1462 = vmatprep.subr.mxu0 0.0
      %1463 = vmatpush1.msra.mxu0 0.0
      %1464 = vmatprep.subr.mxu0 0.0
      %1465 = vmatpush1.msra.mxu0 0.0
      %1466 = vmatprep.subr.mxu0 0.0
      %1467 = vmatpush1.msra.mxu0 0.0
      %1468 = vmatprep.subr.mxu0 0.0
      %1469 = vmatpush1.msra.mxu0 0.0
      %1470 = vmatprep.subr.mxu0 0.0
      %1471 = vmatpush1.msra.mxu0 0.0
      %1472 = vmatprep.subr.mxu0 0.0
      %1473 = vmatpush1.msra.mxu0 0.0
      %1474 = vmatprep.subr.mxu0 0.0
      %1475 = vmatpush1.msra.mxu0 0.0
      %1476 = vmatprep.subr.mxu0 0.0
      %1477 = vmatpush1.msra.mxu0 0.0
      %1478 = vmatprep.subr.mxu0 0.0
      %1479 = vmatpush1.msra.mxu0 0.0
      %1480 = vmatprep.subr.mxu0 0.0
      %1481 = vmatpush1.msra.mxu0 0.0
      %1482 = vmatprep.subr.mxu0 0.0
      %1483 = vmatpush1.msra.mxu0 0.0
      %1484 = vmatprep.subr.mxu0 0.0
      %1485 = vmatpush1.msra.mxu0 %v897
      %1486 = vmatprep.subr.mxu0 0.0
      %1487 = vmatpush1.msra.mxu0 %v896
      %1488 = vmatprep.subr.mxu0 0.0
      %1489 = vmatpush1.msra.mxu0 %v895
      %1490 = vmatprep.subr.mxu0 0.0
      %1491 = vmatpush1.msra.mxu0 %v894
      %1492 = vmatprep.subr.mxu0 0.0
      %1493 = vmatpush2.msra.mxu0 0.0
      %1494 = vmatprep.subr.mxu0 0.0
      %1495 = vmatpush2.msra.mxu0 0.0
      %1496 = vmatprep.subr.mxu0 0.0
      %1497 = vmatpush2.msra.mxu0 0.0
      %1498 = vmatprep.subr.mxu0 0.0
      %1499 = vmatpush2.msra.mxu0 0.0
      %1500 = vmatprep.subr.mxu0 0.0
      %1501 = vmatpush2.msra.mxu0 0.0
      %1502 = vmatprep.subr.mxu0 0.0
      %1503 = vmatpush2.msra.mxu0 0.0
      %1504 = vmatprep.subr.mxu0 0.0
      %1505 = vmatpush2.msra.mxu0 0.0
      %1506 = vmatprep.subr.mxu0 0.0
      %1507 = vmatpush2.msra.mxu0 0.0
      %1508 = vmatprep.subr.mxu0 0.0
      %1509 = vmatpush2.msra.mxu0 0.0
      %1510 = vmatprep.subr.mxu0 0.0
      %1511 = vmatpush2.msra.mxu0 0.0
      %1512 = vmatprep.subr.mxu0 0.0
      %1513 = vmatpush2.msra.mxu0 0.0
      %1514 = vmatprep.subr.mxu0 0.0
      %1515 = vmatpush2.msra.mxu0 0.0
      %1516 = vmatprep.subr.mxu0 0.0
      %1517 = vmatpush2.msra.mxu0 0.0
      %1518 = vmatprep.subr.mxu0 0.0
      %1519 = vmatpush2.msra.mxu0 0.0
      %1520 = vmatprep.subr.mxu0 0.0
      %1521 = vmatpush2.msra.mxu0 0.0
      %1522 = vmatprep.subr.mxu0 0.0
      %1523 = vmatpush2.msra.mxu0 0.0
      %1524 = vmatprep.mubr.f32.mxu0 0.0
      %1525 = vmatmul.mubr.f32.gmra.mxu0 %v1358
      %v1526 = vpop.f32.mrf.mxu0
      %v1527 = vadd.f32 0.0, %v1526
      %v1528 = vpop.f32.mrf.mxu0
      %1529 = vdwg.mxu0
      %v1531 = vrot.slane %v1527, 6
      %v1533 = vadd.f32 %v891, %v1531
      %v1534 = vxor.u32 %v1533, 2147483648
      %v1535 = vmul.f32 %v1534, 1.442695
      %v1536 = vpow.pop %v1535
      %v1537 = vadd.f32 %v1536, 1.0
      %v1538 = vrcp.pop %v1537
      %v1539 = vmul.f32 1.0, %v1538
      %v1540 = vtanh.pop %v1533
      %v1542 = vrot.slane %v1275, 7
      %v1544 = vmul.f32 %v1539, %v1542
      %1546 = vrot.lane.b32.xlu0 %v1540, 64
      %v1547 = vpop.permute.xlu0 %1546
      %v1549 = vmul.f32 %v1539, %v1547
      %1551 = vrot.lane.b32.xlu0 %v1549, 32
      %v1552 = vpop.permute.xlu0 %1551
      %v1554 = vadd.f32 %v1544, %v1552
      %v1555 = vtanh.pop %v1554
      %1557 = vrot.lane.b32.xlu0 %v1555, 64
      %v1558 = vpop.permute.xlu0 %1557
      %v1560 = vmul.f32 %v1539, %v1558
      %v1561 = vsel %vm820, %v1457, 0
      %1563 = vmatprep.subr.mxu0 0.0
      %1564 = vmatpush1.msra.mxu0 0.0
      %1565 = vmatprep.subr.mxu0 0.0
      %1566 = vmatpush1.msra.mxu0 0.0
      %1567 = vmatprep.subr.mxu0 0.0
      %1568 = vmatpush1.msra.mxu0 0.0
      %1569 = vmatprep.subr.mxu0 0.0
      %1570 = vmatpush1.msra.mxu0 0.0
      %1571 = vmatprep.subr.mxu0 0.0
      %1572 = vmatpush1.msra.mxu0 0.0
      %1573 = vmatprep.subr.mxu0 0.0
      %1574 = vmatpush1.msra.mxu0 0.0
      %1575 = vmatprep.subr.mxu0 0.0
      %1576 = vmatpush1.msra.mxu0 0.0
      %1577 = vmatprep.subr.mxu0 0.0
      %1578 = vmatpush1.msra.mxu0 0.0
      %1579 = vmatprep.subr.mxu0 0.0
      %1580 = vmatpush1.msra.mxu0 0.0
      %1581 = vmatprep.subr.mxu0 0.0
      %1582 = vmatpush1.msra.mxu0 0.0
      %1583 = vmatprep.subr.mxu0 0.0
      %1584 = vmatpush1.msra.mxu0 0.0
      %1585 = vmatprep.subr.mxu0 0.0
      %1586 = vmatpush1.msra.mxu0 0.0
      %1587 = vmatprep.subr.mxu0 0.0
      %1588 = vmatpush1.msra.mxu0 %v905
      %1589 = vmatprep.subr.mxu0 0.0
      %1590 = vmatpush1.msra.mxu0 %v904
      %1591 = vmatprep.subr.mxu0 0.0
      %1592 = vmatpush1.msra.mxu0 %v903
      %1593 = vmatprep.subr.mxu0 0.0
      %1594 = vmatpush1.msra.mxu0 %v902
      %1595 = vmatprep.subr.mxu0 0.0
      %1596 = vmatpush2.msra.mxu0 0.0
      %1597 = vmatprep.subr.mxu0 0.0
      %1598 = vmatpush2.msra.mxu0 0.0
      %1599 = vmatprep.subr.mxu0 0.0
      %1600 = vmatpush2.msra.mxu0 0.0
      %1601 = vmatprep.subr.mxu0 0.0
      %1602 = vmatpush2.msra.mxu0 0.0
      %1603 = vmatprep.subr.mxu0 0.0
      %1604 = vmatpush2.msra.mxu0 0.0
      %1605 = vmatprep.subr.mxu0 0.0
      %1606 = vmatpush2.msra.mxu0 0.0
      %1607 = vmatprep.subr.mxu0 0.0
      %1608 = vmatpush2.msra.mxu0 0.0
      %1609 = vmatprep.subr.mxu0 0.0
      %1610 = vmatpush2.msra.mxu0 0.0
      %1611 = vmatprep.subr.mxu0 0.0
      %1612 = vmatpush2.msra.mxu0 0.0
      %1613 = vmatprep.subr.mxu0 0.0
      %1614 = vmatpush2.msra.mxu0 0.0
      %1615 = vmatprep.subr.mxu0 0.0
      %1616 = vmatpush2.msra.mxu0 0.0
      %1617 = vmatprep.subr.mxu0 0.0
      %1618 = vmatpush2.msra.mxu0 0.0
      %1619 = vmatprep.subr.mxu0 0.0
      %1620 = vmatpush2.msra.mxu0 0.0
      %1621 = vmatprep.subr.mxu0 0.0
      %1622 = vmatpush2.msra.mxu0 0.0
      %1623 = vmatprep.subr.mxu0 0.0
      %1624 = vmatpush2.msra.mxu0 0.0
      %1625 = vmatprep.subr.mxu0 0.0
      %1626 = vmatpush2.msra.mxu0 0.0
      %1627 = vmatprep.mubr.f32.mxu0 0.0
      %1628 = vmatmul.mubr.f32.gmra.mxu0 %v1561
      %v1629 = vpop.f32.mrf.mxu0
      %v1630 = vadd.f32 0.0, %v1629
      %v1631 = vpop.f32.mrf.mxu0
      %1632 = vdwg.mxu0
      %v1634 = vrot.slane %v1560, 2
      %1635 = vrot.lane.b32.xlu0 %v1634, 32
      %v1636 = vpop.permute.xlu0 %1635
      %v1637 = vsel %vm820, %v1636, 0
      %1639 = vmatprep.subr.mxu0 0.0
      %1640 = vmatpush1.msra.mxu0 0.0
      %1641 = vmatprep.subr.mxu0 0.0
      %1642 = vmatpush1.msra.mxu0 0.0
      %1643 = vmatprep.subr.mxu0 0.0
      %1644 = vmatpush1.msra.mxu0 0.0
      %1645 = vmatprep.subr.mxu0 0.0
      %1646 = vmatpush1.msra.mxu0 0.0
      %1647 = vmatprep.subr.mxu0 0.0
      %1648 = vmatpush1.msra.mxu0 0.0
      %1649 = vmatprep.subr.mxu0 0.0
      %1650 = vmatpush1.msra.mxu0 0.0
      %1651 = vmatprep.subr.mxu0 0.0
      %1652 = vmatpush1.msra.mxu0 0.0
      %1653 = vmatprep.subr.mxu0 0.0
      %1654 = vmatpush1.msra.mxu0 0.0
      %1655 = vmatprep.subr.mxu0 0.0
      %1656 = vmatpush1.msra.mxu0 0.0
      %1657 = vmatprep.subr.mxu0 0.0
      %1658 = vmatpush1.msra.mxu0 0.0
      %1659 = vmatprep.subr.mxu0 0.0
      %1660 = vmatpush1.msra.mxu0 0.0
      %1661 = vmatprep.subr.mxu0 0.0
      %1662 = vmatpush1.msra.mxu0 0.0
      %1663 = vmatprep.subr.mxu0 0.0
      %1664 = vmatpush1.msra.mxu0 %v901
      %1665 = vmatprep.subr.mxu0 0.0
      %1666 = vmatpush1.msra.mxu0 %v900
      %1667 = vmatprep.subr.mxu0 0.0
      %1668 = vmatpush1.msra.mxu0 %v899
      %1669 = vmatprep.subr.mxu0 0.0
      %1670 = vmatpush1.msra.mxu0 %v898
      %1671 = vmatprep.subr.mxu0 0.0
      %1672 = vmatpush2.msra.mxu0 0.0
      %1673 = vmatprep.subr.mxu0 0.0
      %1674 = vmatpush2.msra.mxu0 0.0
      %1675 = vmatprep.subr.mxu0 0.0
      %1676 = vmatpush2.msra.mxu0 0.0
      %1677 = vmatprep.subr.mxu0 0.0
      %1678 = vmatpush2.msra.mxu0 0.0
      %1679 = vmatprep.subr.mxu0 0.0
      %1680 = vmatpush2.msra.mxu0 0.0
      %1681 = vmatprep.subr.mxu0 0.0
      %1682 = vmatpush2.msra.mxu0 0.0
      %1683 = vmatprep.subr.mxu0 0.0
      %1684 = vmatpush2.msra.mxu0 0.0
      %1685 = vmatprep.subr.mxu0 0.0
      %1686 = vmatpush2.msra.mxu0 0.0
      %1687 = vmatprep.subr.mxu0 0.0
      %1688 = vmatpush2.msra.mxu0 0.0
      %1689 = vmatprep.subr.mxu0 0.0
      %1690 = vmatpush2.msra.mxu0 0.0
      %1691 = vmatprep.subr.mxu0 0.0
      %1692 = vmatpush2.msra.mxu0 0.0
      %1693 = vmatprep.subr.mxu0 0.0
      %1694 = vmatpush2.msra.mxu0 0.0
      %1695 = vmatprep.subr.mxu0 0.0
      %1696 = vmatpush2.msra.mxu0 0.0
      %1697 = vmatprep.subr.mxu0 0.0
      %1698 = vmatpush2.msra.mxu0 0.0
      %1699 = vmatprep.subr.mxu0 0.0
      %1700 = vmatpush2.msra.mxu0 0.0
      %1701 = vmatprep.subr.mxu0 0.0
      %1702 = vmatpush2.msra.mxu0 0.0
      %1703 = vmatprep.mubr.f32.mxu0 0.0
      %1704 = vmatmul.mubr.f32.gmra.mxu0 %v1637
      %v1705 = vpop.f32.mrf.mxu0
      %v1706 = vadd.f32 %v1630, %v1705
      %v1707 = vpop.f32.mrf.mxu0
      %1708 = vdwg.mxu0
      %v1709 = vadd.f32 %v1706, %v906
      %v1710 = vxor.u32 %v1709, 2147483648
      %v1711 = vmul.f32 %v1710, 1.442695
      %v1712 = vpow.pop %v1711
      %v1713 = vadd.f32 %v1712, 1.0
      %v1714 = vrcp.pop %v1713
      %v1715 = vmul.f32 1.0, %v1714
      %v1716 = vtanh.pop %v1709
      %v1717 = vmul.f32 %v1715, %v1448
      %1719 = vrot.lane.b32.xlu0 %v1716, 64
      %v1720 = vpop.permute.xlu0 %1719
      %v1722 = vmul.f32 %v1715, %v1720
      %1724 = vrot.lane.b32.xlu0 %v1722, 32
      %v1725 = vpop.permute.xlu0 %1724
      %v1727 = vadd.f32 %v1717, %v1725
      %v1728 = vtanh.pop %v1727
      %1730 = vrot.lane.b32.xlu0 %v1728, 64
      %v1731 = vpop.permute.xlu0 %1730
      %v1733 = vmul.f32 %v1715, %v1731
      %1735 = vrot.lane.b32.xlu0 %v1733, 32
      %v1736 = vpop.permute.xlu0 %1735
      %1738 = vst.msk [vmem:[#allocation2 + $0x2] sm:$0x1] %vm1179, %v1736
      %1739 = vmatprep.subr.mxu0 0.0
      %1740 = vmatpush1.msra.mxu0 0.0
      %1741 = vmatprep.subr.mxu0 0.0
      %1742 = vmatpush1.msra.mxu0 0.0
      %1743 = vmatprep.subr.mxu0 0.0
      %1744 = vmatpush1.msra.mxu0 0.0
      %1745 = vmatprep.subr.mxu0 0.0
      %1746 = vmatpush1.msra.mxu0 0.0
      %1747 = vmatprep.subr.mxu0 0.0
      %1748 = vmatpush1.msra.mxu0 0.0
      %1749 = vmatprep.subr.mxu0 0.0
      %1750 = vmatpush1.msra.mxu0 0.0
      %1751 = vmatprep.subr.mxu0 0.0
      %1752 = vmatpush1.msra.mxu0 0.0
      %1753 = vmatprep.subr.mxu0 0.0
      %1754 = vmatpush1.msra.mxu0 0.0
      %1755 = vmatprep.subr.mxu0 0.0
      %1756 = vmatpush1.msra.mxu0 0.0
      %1757 = vmatprep.subr.mxu0 0.0
      %1758 = vmatpush1.msra.mxu0 0.0
      %1759 = vmatprep.subr.mxu0 0.0
      %1760 = vmatpush1.msra.mxu0 0.0
      %1761 = vmatprep.subr.mxu0 0.0
      %1762 = vmatpush1.msra.mxu0 0.0
      %1763 = vmatprep.subr.mxu0 0.0
      %1764 = vmatpush1.msra.mxu0 %v897
      %1765 = vmatprep.subr.mxu0 0.0
      %1766 = vmatpush1.msra.mxu0 %v896
      %1767 = vmatprep.subr.mxu0 0.0
      %1768 = vmatpush1.msra.mxu0 %v895
      %1769 = vmatprep.subr.mxu0 0.0
      %1770 = vmatpush1.msra.mxu0 %v894
      %1771 = vmatprep.subr.mxu0 0.0
      %1772 = vmatpush2.msra.mxu0 0.0
      %1773 = vmatprep.subr.mxu0 0.0
      %1774 = vmatpush2.msra.mxu0 0.0
      %1775 = vmatprep.subr.mxu0 0.0
      %1776 = vmatpush2.msra.mxu0 0.0
      %1777 = vmatprep.subr.mxu0 0.0
      %1778 = vmatpush2.msra.mxu0 0.0
      %1779 = vmatprep.subr.mxu0 0.0
      %1780 = vmatpush2.msra.mxu0 0.0
      %1781 = vmatprep.subr.mxu0 0.0
      %1782 = vmatpush2.msra.mxu0 0.0
      %1783 = vmatprep.subr.mxu0 0.0
      %1784 = vmatpush2.msra.mxu0 0.0
      %1785 = vmatprep.subr.mxu0 0.0
      %1786 = vmatpush2.msra.mxu0 0.0
      %1787 = vmatprep.subr.mxu0 0.0
      %1788 = vmatpush2.msra.mxu0 0.0
      %1789 = vmatprep.subr.mxu0 0.0
      %1790 = vmatpush2.msra.mxu0 0.0
      %1791 = vmatprep.subr.mxu0 0.0
      %1792 = vmatpush2.msra.mxu0 0.0
      %1793 = vmatprep.subr.mxu0 0.0
      %1794 = vmatpush2.msra.mxu0 0.0
      %1795 = vmatprep.subr.mxu0 0.0
      %1796 = vmatpush2.msra.mxu0 0.0
      %1797 = vmatprep.subr.mxu0 0.0
      %1798 = vmatpush2.msra.mxu0 0.0
      %1799 = vmatprep.subr.mxu0 0.0
      %1800 = vmatpush2.msra.mxu0 0.0
      %1801 = vmatprep.subr.mxu0 0.0
      %1802 = vmatpush2.msra.mxu0 0.0
      %1803 = vmatprep.mubr.f32.mxu0 0.0
      %1804 = vmatmul.mubr.f32.gmra.mxu0 %v1637
      %v1805 = vpop.f32.mrf.mxu0
      %v1806 = vadd.f32 0.0, %v1805
      %v1807 = vpop.f32.mrf.mxu0
      %1808 = vdwg.mxu0
      %v1810 = vrot.slane %v1806, 5
      %v1812 = vadd.f32 %v891, %v1810
      %v1813 = vxor.u32 %v1812, 2147483648
      %v1814 = vmul.f32 %v1813, 1.442695
      %v1815 = vpow.pop %v1814
      %v1816 = vadd.f32 %v1815, 1.0
      %v1817 = vrcp.pop %v1816
      %v1818 = vmul.f32 1.0, %v1817
      %v1819 = vtanh.pop %v1812
      %v1821 = vrot.slane %v1554, 7
      %v1823 = vmul.f32 %v1818, %v1821
      %1825 = vrot.lane.b32.xlu0 %v1819, 64
      %v1826 = vpop.permute.xlu0 %1825
      %v1828 = vmul.f32 %v1818, %v1826
      %1830 = vrot.lane.b32.xlu0 %v1828, 32
      %v1831 = vpop.permute.xlu0 %1830
      %v1833 = vadd.f32 %v1823, %v1831
      %v1834 = vtanh.pop %v1833
      %1836 = vrot.lane.b32.xlu0 %v1834, 64
      %v1837 = vpop.permute.xlu0 %1836
      %v1839 = vmul.f32 %v1818, %v1837
      %v1840 = vsel %vm820, %v1736, 0
      %1842 = vmatprep.subr.mxu0 0.0
      %1843 = vmatpush1.msra.mxu0 0.0
      %1844 = vmatprep.subr.mxu0 0.0
      %1845 = vmatpush1.msra.mxu0 0.0
      %1846 = vmatprep.subr.mxu0 0.0
      %1847 = vmatpush1.msra.mxu0 0.0
      %1848 = vmatprep.subr.mxu0 0.0
      %1849 = vmatpush1.msra.mxu0 0.0
      %1850 = vmatprep.subr.mxu0 0.0
      %1851 = vmatpush1.msra.mxu0 0.0
      %1852 = vmatprep.subr.mxu0 0.0
      %1853 = vmatpush1.msra.mxu0 0.0
      %1854 = vmatprep.subr.mxu0 0.0
      %1855 = vmatpush1.msra.mxu0 0.0
      %1856 = vmatprep.subr.mxu0 0.0
      %1857 = vmatpush1.msra.mxu0 0.0
      %1858 = vmatprep.subr.mxu0 0.0
      %1859 = vmatpush1.msra.mxu0 0.0
      %1860 = vmatprep.subr.mxu0 0.0
      %1861 = vmatpush1.msra.mxu0 0.0
      %1862 = vmatprep.subr.mxu0 0.0
      %1863 = vmatpush1.msra.mxu0 0.0
      %1864 = vmatprep.subr.mxu0 0.0
      %1865 = vmatpush1.msra.mxu0 0.0
      %1866 = vmatprep.subr.mxu0 0.0
      %1867 = vmatpush1.msra.mxu0 %v905
      %1868 = vmatprep.subr.mxu0 0.0
      %1869 = vmatpush1.msra.mxu0 %v904
      %1870 = vmatprep.subr.mxu0 0.0
      %1871 = vmatpush1.msra.mxu0 %v903
      %1872 = vmatprep.subr.mxu0 0.0
      %1873 = vmatpush1.msra.mxu0 %v902
      %1874 = vmatprep.subr.mxu0 0.0
      %1875 = vmatpush2.msra.mxu0 0.0
      %1876 = vmatprep.subr.mxu0 0.0
      %1877 = vmatpush2.msra.mxu0 0.0
      %1878 = vmatprep.subr.mxu0 0.0
      %1879 = vmatpush2.msra.mxu0 0.0
      %1880 = vmatprep.subr.mxu0 0.0
      %1881 = vmatpush2.msra.mxu0 0.0
      %1882 = vmatprep.subr.mxu0 0.0
      %1883 = vmatpush2.msra.mxu0 0.0
      %1884 = vmatprep.subr.mxu0 0.0
      %1885 = vmatpush2.msra.mxu0 0.0
      %1886 = vmatprep.subr.mxu0 0.0
      %1887 = vmatpush2.msra.mxu0 0.0
      %1888 = vmatprep.subr.mxu0 0.0
      %1889 = vmatpush2.msra.mxu0 0.0
      %1890 = vmatprep.subr.mxu0 0.0
      %1891 = vmatpush2.msra.mxu0 0.0
      %1892 = vmatprep.subr.mxu0 0.0
      %1893 = vmatpush2.msra.mxu0 0.0
      %1894 = vmatprep.subr.mxu0 0.0
      %1895 = vmatpush2.msra.mxu0 0.0
      %1896 = vmatprep.subr.mxu0 0.0
      %1897 = vmatpush2.msra.mxu0 0.0
      %1898 = vmatprep.subr.mxu0 0.0
      %1899 = vmatpush2.msra.mxu0 0.0
      %1900 = vmatprep.subr.mxu0 0.0
      %1901 = vmatpush2.msra.mxu0 0.0
      %1902 = vmatprep.subr.mxu0 0.0
      %1903 = vmatpush2.msra.mxu0 0.0
      %1904 = vmatprep.subr.mxu0 0.0
      %1905 = vmatpush2.msra.mxu0 0.0
      %1906 = vmatprep.mubr.f32.mxu0 0.0
      %1907 = vmatmul.mubr.f32.gmra.mxu0 %v1840
      %v1908 = vpop.f32.mrf.mxu0
      %v1909 = vadd.f32 0.0, %v1908
      %v1910 = vpop.f32.mrf.mxu0
      %1911 = vdwg.mxu0
      %v1913 = vrot.slane %v1839, 3
      %1914 = vrot.lane.b32.xlu0 %v1913, 32
      %v1915 = vpop.permute.xlu0 %1914
      %v1916 = vsel %vm820, %v1915, 0
      %1918 = vmatprep.subr.mxu0 0.0
      %1919 = vmatpush1.msra.mxu0 0.0
      %1920 = vmatprep.subr.mxu0 0.0
      %1921 = vmatpush1.msra.mxu0 0.0
      %1922 = vmatprep.subr.mxu0 0.0
      %1923 = vmatpush1.msra.mxu0 0.0
      %1924 = vmatprep.subr.mxu0 0.0
      %1925 = vmatpush1.msra.mxu0 0.0
      %1926 = vmatprep.subr.mxu0 0.0
      %1927 = vmatpush1.msra.mxu0 0.0
      %1928 = vmatprep.subr.mxu0 0.0
      %1929 = vmatpush1.msra.mxu0 0.0
      %1930 = vmatprep.subr.mxu0 0.0
      %1931 = vmatpush1.msra.mxu0 0.0
      %1932 = vmatprep.subr.mxu0 0.0
      %1933 = vmatpush1.msra.mxu0 0.0
      %1934 = vmatprep.subr.mxu0 0.0
      %1935 = vmatpush1.msra.mxu0 0.0
      %1936 = vmatprep.subr.mxu0 0.0
      %1937 = vmatpush1.msra.mxu0 0.0
      %1938 = vmatprep.subr.mxu0 0.0
      %1939 = vmatpush1.msra.mxu0 0.0
      %1940 = vmatprep.subr.mxu0 0.0
      %1941 = vmatpush1.msra.mxu0 0.0
      %1942 = vmatprep.subr.mxu0 0.0
      %1943 = vmatpush1.msra.mxu0 %v901
      %1944 = vmatprep.subr.mxu0 0.0
      %1945 = vmatpush1.msra.mxu0 %v900
      %1946 = vmatprep.subr.mxu0 0.0
      %1947 = vmatpush1.msra.mxu0 %v899
      %1948 = vmatprep.subr.mxu0 0.0
      %1949 = vmatpush1.msra.mxu0 %v898
      %1950 = vmatprep.subr.mxu0 0.0
      %1951 = vmatpush2.msra.mxu0 0.0
      %1952 = vmatprep.subr.mxu0 0.0
      %1953 = vmatpush2.msra.mxu0 0.0
      %1954 = vmatprep.subr.mxu0 0.0
      %1955 = vmatpush2.msra.mxu0 0.0
      %1956 = vmatprep.subr.mxu0 0.0
      %1957 = vmatpush2.msra.mxu0 0.0
      %1958 = vmatprep.subr.mxu0 0.0
      %1959 = vmatpush2.msra.mxu0 0.0
      %1960 = vmatprep.subr.mxu0 0.0
      %1961 = vmatpush2.msra.mxu0 0.0
      %1962 = vmatprep.subr.mxu0 0.0
      %1963 = vmatpush2.msra.mxu0 0.0
      %1964 = vmatprep.subr.mxu0 0.0
      %1965 = vmatpush2.msra.mxu0 0.0
      %1966 = vmatprep.subr.mxu0 0.0
      %1967 = vmatpush2.msra.mxu0 0.0
      %1968 = vmatprep.subr.mxu0 0.0
      %1969 = vmatpush2.msra.mxu0 0.0
      %1970 = vmatprep.subr.mxu0 0.0
      %1971 = vmatpush2.msra.mxu0 0.0
      %1972 = vmatprep.subr.mxu0 0.0
      %1973 = vmatpush2.msra.mxu0 0.0
      %1974 = vmatprep.subr.mxu0 0.0
      %1975 = vmatpush2.msra.mxu0 0.0
      %1976 = vmatprep.subr.mxu0 0.0
      %1977 = vmatpush2.msra.mxu0 0.0
      %1978 = vmatprep.subr.mxu0 0.0
      %1979 = vmatpush2.msra.mxu0 0.0
      %1980 = vmatprep.subr.mxu0 0.0
      %1981 = vmatpush2.msra.mxu0 0.0
      %1982 = vmatprep.mubr.f32.mxu0 0.0
      %1983 = vmatmul.mubr.f32.gmra.mxu0 %v1916
      %v1984 = vpop.f32.mrf.mxu0
      %v1985 = vadd.f32 %v1909, %v1984
      %v1986 = vpop.f32.mrf.mxu0
      %1987 = vdwg.mxu0
      %v1988 = vadd.f32 %v1985, %v906
      %v1989 = vxor.u32 %v1988, 2147483648
      %v1990 = vmul.f32 %v1989, 1.442695
      %v1991 = vpow.pop %v1990
      %v1992 = vadd.f32 %v1991, 1.0
      %v1993 = vrcp.pop %v1992
      %v1994 = vmul.f32 1.0, %v1993
      %v1995 = vtanh.pop %v1988
      %v1996 = vmul.f32 %v1994, %v1727
      %1998 = vrot.lane.b32.xlu0 %v1995, 64
      %v1999 = vpop.permute.xlu0 %1998
      %v2001 = vmul.f32 %v1994, %v1999
      %2003 = vrot.lane.b32.xlu0 %v2001, 32
      %v2004 = vpop.permute.xlu0 %2003
      %v2006 = vadd.f32 %v1996, %v2004
      %v2007 = vtanh.pop %v2006
      %2009 = vrot.lane.b32.xlu0 %v2007, 64
      %v2010 = vpop.permute.xlu0 %2009
      %v2012 = vmul.f32 %v1994, %v2010
      %2014 = vrot.lane.b32.xlu0 %v2012, 32
      %v2015 = vpop.permute.xlu0 %2014
      %2017 = vst.msk [vmem:[#allocation2 + $0x3] sm:$0x1] %vm1179, %v2015
      %2018 = vmatprep.subr.mxu0 0.0
      %2019 = vmatpush1.msra.mxu0 0.0
      %2020 = vmatprep.subr.mxu0 0.0
      %2021 = vmatpush1.msra.mxu0 0.0
      %2022 = vmatprep.subr.mxu0 0.0
      %2023 = vmatpush1.msra.mxu0 0.0
      %2024 = vmatprep.subr.mxu0 0.0
      %2025 = vmatpush1.msra.mxu0 0.0
      %2026 = vmatprep.subr.mxu0 0.0
      %2027 = vmatpush1.msra.mxu0 0.0
      %2028 = vmatprep.subr.mxu0 0.0
      %2029 = vmatpush1.msra.mxu0 0.0
      %2030 = vmatprep.subr.mxu0 0.0
      %2031 = vmatpush1.msra.mxu0 0.0
      %2032 = vmatprep.subr.mxu0 0.0
      %2033 = vmatpush1.msra.mxu0 0.0
      %2034 = vmatprep.subr.mxu0 0.0
      %2035 = vmatpush1.msra.mxu0 0.0
      %2036 = vmatprep.subr.mxu0 0.0
      %2037 = vmatpush1.msra.mxu0 0.0
      %2038 = vmatprep.subr.mxu0 0.0
      %2039 = vmatpush1.msra.mxu0 0.0
      %2040 = vmatprep.subr.mxu0 0.0
      %2041 = vmatpush1.msra.mxu0 0.0
      %2042 = vmatprep.subr.mxu0 0.0
      %2043 = vmatpush1.msra.mxu0 %v897
      %2044 = vmatprep.subr.mxu0 0.0
      %2045 = vmatpush1.msra.mxu0 %v896
      %2046 = vmatprep.subr.mxu0 0.0
      %2047 = vmatpush1.msra.mxu0 %v895
      %2048 = vmatprep.subr.mxu0 0.0
      %2049 = vmatpush1.msra.mxu0 %v894
      %2050 = vmatprep.subr.mxu0 0.0
      %2051 = vmatpush2.msra.mxu0 0.0
      %2052 = vmatprep.subr.mxu0 0.0
      %2053 = vmatpush2.msra.mxu0 0.0
      %2054 = vmatprep.subr.mxu0 0.0
      %2055 = vmatpush2.msra.mxu0 0.0
      %2056 = vmatprep.subr.mxu0 0.0
      %2057 = vmatpush2.msra.mxu0 0.0
      %2058 = vmatprep.subr.mxu0 0.0
      %2059 = vmatpush2.msra.mxu0 0.0
      %2060 = vmatprep.subr.mxu0 0.0
      %2061 = vmatpush2.msra.mxu0 0.0
      %2062 = vmatprep.subr.mxu0 0.0
      %2063 = vmatpush2.msra.mxu0 0.0
      %2064 = vmatprep.subr.mxu0 0.0
      %2065 = vmatpush2.msra.mxu0 0.0
      %2066 = vmatprep.subr.mxu0 0.0
      %2067 = vmatpush2.msra.mxu0 0.0
      %2068 = vmatprep.subr.mxu0 0.0
      %2069 = vmatpush2.msra.mxu0 0.0
      %2070 = vmatprep.subr.mxu0 0.0
      %2071 = vmatpush2.msra.mxu0 0.0
      %2072 = vmatprep.subr.mxu0 0.0
      %2073 = vmatpush2.msra.mxu0 0.0
      %2074 = vmatprep.subr.mxu0 0.0
      %2075 = vmatpush2.msra.mxu0 0.0
      %2076 = vmatprep.subr.mxu0 0.0
      %2077 = vmatpush2.msra.mxu0 0.0
      %2078 = vmatprep.subr.mxu0 0.0
      %2079 = vmatpush2.msra.mxu0 0.0
      %2080 = vmatprep.subr.mxu0 0.0
      %2081 = vmatpush2.msra.mxu0 0.0
      %2082 = vmatprep.mubr.f32.mxu0 0.0
      %2083 = vmatmul.mubr.f32.gmra.mxu0 %v1916
      %v2084 = vpop.f32.mrf.mxu0
      %v2085 = vadd.f32 0.0, %v2084
      %v2086 = vpop.f32.mrf.mxu0
      %2087 = vdwg.mxu0
      %v2089 = vrot.slane %v2085, 4
      %v2091 = vadd.f32 %v891, %v2089
      %v2092 = vxor.u32 %v2091, 2147483648
      %v2093 = vmul.f32 %v2092, 1.442695
      %v2094 = vpow.pop %v2093
      %v2095 = vadd.f32 %v2094, 1.0
      %v2096 = vrcp.pop %v2095
      %v2097 = vmul.f32 1.0, %v2096
      %v2098 = vtanh.pop %v2091
      %v2100 = vrot.slane %v1833, 7
      %v2102 = vmul.f32 %v2097, %v2100
      %2104 = vrot.lane.b32.xlu0 %v2098, 64
      %v2105 = vpop.permute.xlu0 %2104
      %v2107 = vmul.f32 %v2097, %v2105
      %2109 = vrot.lane.b32.xlu0 %v2107, 32
      %v2110 = vpop.permute.xlu0 %2109
      %v2112 = vadd.f32 %v2102, %v2110
      %v2113 = vtanh.pop %v2112
      %2115 = vrot.lane.b32.xlu0 %v2113, 64
      %v2116 = vpop.permute.xlu0 %2115
      %v2118 = vmul.f32 %v2097, %v2116
      %v2119 = vsel %vm820, %v2015, 0
      %2121 = vmatprep.subr.mxu0 0.0
      %2122 = vmatpush1.msra.mxu0 0.0
      %2123 = vmatprep.subr.mxu0 0.0
      %2124 = vmatpush1.msra.mxu0 0.0
      %2125 = vmatprep.subr.mxu0 0.0
      %2126 = vmatpush1.msra.mxu0 0.0
      %2127 = vmatprep.subr.mxu0 0.0
      %2128 = vmatpush1.msra.mxu0 0.0
      %2129 = vmatprep.subr.mxu0 0.0
      %2130 = vmatpush1.msra.mxu0 0.0
      %2131 = vmatprep.subr.mxu0 0.0
      %2132 = vmatpush1.msra.mxu0 0.0
      %2133 = vmatprep.subr.mxu0 0.0
      %2134 = vmatpush1.msra.mxu0 0.0
      %2135 = vmatprep.subr.mxu0 0.0
      %2136 = vmatpush1.msra.mxu0 0.0
      %2137 = vmatprep.subr.mxu0 0.0
      %2138 = vmatpush1.msra.mxu0 0.0
      %2139 = vmatprep.subr.mxu0 0.0
      %2140 = vmatpush1.msra.mxu0 0.0
      %2141 = vmatprep.subr.mxu0 0.0
      %2142 = vmatpush1.msra.mxu0 0.0
      %2143 = vmatprep.subr.mxu0 0.0
      %2144 = vmatpush1.msra.mxu0 0.0
      %2145 = vmatprep.subr.mxu0 0.0
      %2146 = vmatpush1.msra.mxu0 %v905
      %2147 = vmatprep.subr.mxu0 0.0
      %2148 = vmatpush1.msra.mxu0 %v904
      %2149 = vmatprep.subr.mxu0 0.0
      %2150 = vmatpush1.msra.mxu0 %v903
      %2151 = vmatprep.subr.mxu0 0.0
      %2152 = vmatpush1.msra.mxu0 %v902
      %2153 = vmatprep.subr.mxu0 0.0
      %2154 = vmatpush2.msra.mxu0 0.0
      %2155 = vmatprep.subr.mxu0 0.0
      %2156 = vmatpush2.msra.mxu0 0.0
      %2157 = vmatprep.subr.mxu0 0.0
      %2158 = vmatpush2.msra.mxu0 0.0
      %2159 = vmatprep.subr.mxu0 0.0
      %2160 = vmatpush2.msra.mxu0 0.0
      %2161 = vmatprep.subr.mxu0 0.0
      %2162 = vmatpush2.msra.mxu0 0.0
      %2163 = vmatprep.subr.mxu0 0.0
      %2164 = vmatpush2.msra.mxu0 0.0
      %2165 = vmatprep.subr.mxu0 0.0
      %2166 = vmatpush2.msra.mxu0 0.0
      %2167 = vmatprep.subr.mxu0 0.0
      %2168 = vmatpush2.msra.mxu0 0.0
      %2169 = vmatprep.subr.mxu0 0.0
      %2170 = vmatpush2.msra.mxu0 0.0
      %2171 = vmatprep.subr.mxu0 0.0
      %2172 = vmatpush2.msra.mxu0 0.0
      %2173 = vmatprep.subr.mxu0 0.0
      %2174 = vmatpush2.msra.mxu0 0.0
      %2175 = vmatprep.subr.mxu0 0.0
      %2176 = vmatpush2.msra.mxu0 0.0
      %2177 = vmatprep.subr.mxu0 0.0
      %2178 = vmatpush2.msra.mxu0 0.0
      %2179 = vmatprep.subr.mxu0 0.0
      %2180 = vmatpush2.msra.mxu0 0.0
      %2181 = vmatprep.subr.mxu0 0.0
      %2182 = vmatpush2.msra.mxu0 0.0
      %2183 = vmatprep.subr.mxu0 0.0
      %2184 = vmatpush2.msra.mxu0 0.0
      %2185 = vmatprep.mubr.f32.mxu0 0.0
      %2186 = vmatmul.mubr.f32.gmra.mxu0 %v2119
      %v2187 = vpop.f32.mrf.mxu0
      %v2188 = vadd.f32 0.0, %v2187
      %v2189 = vpop.f32.mrf.mxu0
      %2190 = vdwg.mxu0
      %v2192 = vrot.slane %v2118, 4
      %2193 = vrot.lane.b32.xlu0 %v2192, 32
      %v2194 = vpop.permute.xlu0 %2193
      %v2195 = vsel %vm820, %v2194, 0
      %2197 = vmatprep.subr.mxu0 0.0
      %2198 = vmatpush1.msra.mxu0 0.0
      %2199 = vmatprep.subr.mxu0 0.0
      %2200 = vmatpush1.msra.mxu0 0.0
      %2201 = vmatprep.subr.mxu0 0.0
      %2202 = vmatpush1.msra.mxu0 0.0
      %2203 = vmatprep.subr.mxu0 0.0
      %2204 = vmatpush1.msra.mxu0 0.0
      %2205 = vmatprep.subr.mxu0 0.0
      %2206 = vmatpush1.msra.mxu0 0.0
      %2207 = vmatprep.subr.mxu0 0.0
      %2208 = vmatpush1.msra.mxu0 0.0
      %2209 = vmatprep.subr.mxu0 0.0
      %2210 = vmatpush1.msra.mxu0 0.0
      %2211 = vmatprep.subr.mxu0 0.0
      %2212 = vmatpush1.msra.mxu0 0.0
      %2213 = vmatprep.subr.mxu0 0.0
      %2214 = vmatpush1.msra.mxu0 0.0
      %2215 = vmatprep.subr.mxu0 0.0
      %2216 = vmatpush1.msra.mxu0 0.0
      %2217 = vmatprep.subr.mxu0 0.0
      %2218 = vmatpush1.msra.mxu0 0.0
      %2219 = vmatprep.subr.mxu0 0.0
      %2220 = vmatpush1.msra.mxu0 0.0
      %2221 = vmatprep.subr.mxu0 0.0
      %2222 = vmatpush1.msra.mxu0 %v901
      %2223 = vmatprep.subr.mxu0 0.0
      %2224 = vmatpush1.msra.mxu0 %v900
      %2225 = vmatprep.subr.mxu0 0.0
      %2226 = vmatpush1.msra.mxu0 %v899
      %2227 = vmatprep.subr.mxu0 0.0
      %2228 = vmatpush1.msra.mxu0 %v898
      %2229 = vmatprep.subr.mxu0 0.0
      %2230 = vmatpush2.msra.mxu0 0.0
      %2231 = vmatprep.subr.mxu0 0.0
      %2232 = vmatpush2.msra.mxu0 0.0
      %2233 = vmatprep.subr.mxu0 0.0
      %2234 = vmatpush2.msra.mxu0 0.0
      %2235 = vmatprep.subr.mxu0 0.0
      %2236 = vmatpush2.msra.mxu0 0.0
      %2237 = vmatprep.subr.mxu0 0.0
      %2238 = vmatpush2.msra.mxu0 0.0
      %2239 = vmatprep.subr.mxu0 0.0
      %2240 = vmatpush2.msra.mxu0 0.0
      %2241 = vmatprep.subr.mxu0 0.0
      %2242 = vmatpush2.msra.mxu0 0.0
      %2243 = vmatprep.subr.mxu0 0.0
      %2244 = vmatpush2.msra.mxu0 0.0
      %2245 = vmatprep.subr.mxu0 0.0
      %2246 = vmatpush2.msra.mxu0 0.0
      %2247 = vmatprep.subr.mxu0 0.0
      %2248 = vmatpush2.msra.mxu0 0.0
      %2249 = vmatprep.subr.mxu0 0.0
      %2250 = vmatpush2.msra.mxu0 0.0
      %2251 = vmatprep.subr.mxu0 0.0
      %2252 = vmatpush2.msra.mxu0 0.0
      %2253 = vmatprep.subr.mxu0 0.0
      %2254 = vmatpush2.msra.mxu0 0.0
      %2255 = vmatprep.subr.mxu0 0.0
      %2256 = vmatpush2.msra.mxu0 0.0
      %2257 = vmatprep.subr.mxu0 0.0
      %2258 = vmatpush2.msra.mxu0 0.0
      %2259 = vmatprep.subr.mxu0 0.0
      %2260 = vmatpush2.msra.mxu0 0.0
      %2261 = vmatprep.mubr.f32.mxu0 0.0
      %2262 = vmatmul.mubr.f32.gmra.mxu0 %v2195
      %v2263 = vpop.f32.mrf.mxu0
      %v2264 = vadd.f32 %v2188, %v2263
      %v2265 = vpop.f32.mrf.mxu0
      %2266 = vdwg.mxu0
      %v2267 = vadd.f32 %v2264, %v906
      %v2268 = vxor.u32 %v2267, 2147483648
      %v2269 = vmul.f32 %v2268, 1.442695
      %v2270 = vpow.pop %v2269
      %v2271 = vadd.f32 %v2270, 1.0
      %v2272 = vrcp.pop %v2271
      %v2273 = vmul.f32 1.0, %v2272
      %v2274 = vtanh.pop %v2267
      %v2275 = vmul.f32 %v2273, %v2006
      %2277 = vrot.lane.b32.xlu0 %v2274, 64
      %v2278 = vpop.permute.xlu0 %2277
      %v2280 = vmul.f32 %v2273, %v2278
      %2282 = vrot.lane.b32.xlu0 %v2280, 32
      %v2283 = vpop.permute.xlu0 %2282
      %v2285 = vadd.f32 %v2275, %v2283
      %v2286 = vtanh.pop %v2285
      %2288 = vrot.lane.b32.xlu0 %v2286, 64
      %v2289 = vpop.permute.xlu0 %2288
      %v2291 = vmul.f32 %v2273, %v2289
      %2293 = vrot.lane.b32.xlu0 %v2291, 32
      %v2294 = vpop.permute.xlu0 %2293
      %2296 = vst.msk [vmem:[#allocation2 + $0x4] sm:$0x1] %vm1179, %v2294
      %2297 = vmatprep.subr.mxu0 0.0
      %2298 = vmatpush1.msra.mxu0 0.0
      %2299 = vmatprep.subr.mxu0 0.0
      %2300 = vmatpush1.msra.mxu0 0.0
      %2301 = vmatprep.subr.mxu0 0.0
      %2302 = vmatpush1.msra.mxu0 0.0
      %2303 = vmatprep.subr.mxu0 0.0
      %2304 = vmatpush1.msra.mxu0 0.0
      %2305 = vmatprep.subr.mxu0 0.0
      %2306 = vmatpush1.msra.mxu0 0.0
      %2307 = vmatprep.subr.mxu0 0.0
      %2308 = vmatpush1.msra.mxu0 0.0
      %2309 = vmatprep.subr.mxu0 0.0
      %2310 = vmatpush1.msra.mxu0 0.0
      %2311 = vmatprep.subr.mxu0 0.0
      %2312 = vmatpush1.msra.mxu0 0.0
      %2313 = vmatprep.subr.mxu0 0.0
      %2314 = vmatpush1.msra.mxu0 0.0
      %2315 = vmatprep.subr.mxu0 0.0
      %2316 = vmatpush1.msra.mxu0 0.0
      %2317 = vmatprep.subr.mxu0 0.0
      %2318 = vmatpush1.msra.mxu0 0.0
      %2319 = vmatprep.subr.mxu0 0.0
      %2320 = vmatpush1.msra.mxu0 0.0
      %2321 = vmatprep.subr.mxu0 0.0
      %2322 = vmatpush1.msra.mxu0 %v897
      %2323 = vmatprep.subr.mxu0 0.0
      %2324 = vmatpush1.msra.mxu0 %v896
      %2325 = vmatprep.subr.mxu0 0.0
      %2326 = vmatpush1.msra.mxu0 %v895
      %2327 = vmatprep.subr.mxu0 0.0
      %2328 = vmatpush1.msra.mxu0 %v894
      %2329 = vmatprep.subr.mxu0 0.0
      %2330 = vmatpush2.msra.mxu0 0.0
      %2331 = vmatprep.subr.mxu0 0.0
      %2332 = vmatpush2.msra.mxu0 0.0
      %2333 = vmatprep.subr.mxu0 0.0
      %2334 = vmatpush2.msra.mxu0 0.0
      %2335 = vmatprep.subr.mxu0 0.0
      %2336 = vmatpush2.msra.mxu0 0.0
      %2337 = vmatprep.subr.mxu0 0.0
      %2338 = vmatpush2.msra.mxu0 0.0
      %2339 = vmatprep.subr.mxu0 0.0
      %2340 = vmatpush2.msra.mxu0 0.0
      %2341 = vmatprep.subr.mxu0 0.0
      %2342 = vmatpush2.msra.mxu0 0.0
      %2343 = vmatprep.subr.mxu0 0.0
      %2344 = vmatpush2.msra.mxu0 0.0
      %2345 = vmatprep.subr.mxu0 0.0
      %2346 = vmatpush2.msra.mxu0 0.0
      %2347 = vmatprep.subr.mxu0 0.0
      %2348 = vmatpush2.msra.mxu0 0.0
      %2349 = vmatprep.subr.mxu0 0.0
      %2350 = vmatpush2.msra.mxu0 0.0
      %2351 = vmatprep.subr.mxu0 0.0
      %2352 = vmatpush2.msra.mxu0 0.0
      %2353 = vmatprep.subr.mxu0 0.0
      %2354 = vmatpush2.msra.mxu0 0.0
      %2355 = vmatprep.subr.mxu0 0.0
      %2356 = vmatpush2.msra.mxu0 0.0
      %2357 = vmatprep.subr.mxu0 0.0
      %2358 = vmatpush2.msra.mxu0 0.0
      %2359 = vmatprep.subr.mxu0 0.0
      %2360 = vmatpush2.msra.mxu0 0.0
      %2361 = vmatprep.mubr.f32.mxu0 0.0
      %2362 = vmatmul.mubr.f32.gmra.mxu0 %v2195
      %v2363 = vpop.f32.mrf.mxu0
      %v2364 = vadd.f32 0.0, %v2363
      %v2365 = vpop.f32.mrf.mxu0
      %2366 = vdwg.mxu0
      %v2368 = vrot.slane %v2364, 3
      %v2370 = vadd.f32 %v891, %v2368
      %v2371 = vxor.u32 %v2370, 2147483648
      %v2372 = vmul.f32 %v2371, 1.442695
      %v2373 = vpow.pop %v2372
      %v2374 = vadd.f32 %v2373, 1.0
      %v2375 = vrcp.pop %v2374
      %v2376 = vmul.f32 1.0, %v2375
      %v2377 = vtanh.pop %v2370
      %v2379 = vrot.slane %v2112, 7
      %v2381 = vmul.f32 %v2376, %v2379
      %2383 = vrot.lane.b32.xlu0 %v2377, 64
      %v2384 = vpop.permute.xlu0 %2383
      %v2386 = vmul.f32 %v2376, %v2384
      %2388 = vrot.lane.b32.xlu0 %v2386, 32
      %v2389 = vpop.permute.xlu0 %2388
      %v2391 = vadd.f32 %v2381, %v2389
      %v2392 = vtanh.pop %v2391
      %2394 = vrot.lane.b32.xlu0 %v2392, 64
      %v2395 = vpop.permute.xlu0 %2394
      %v2397 = vmul.f32 %v2376, %v2395
      %v2398 = vsel %vm820, %v2294, 0
      %2400 = vmatprep.subr.mxu0 0.0
      %2401 = vmatpush1.msra.mxu0 0.0
      %2402 = vmatprep.subr.mxu0 0.0
      %2403 = vmatpush1.msra.mxu0 0.0
      %2404 = vmatprep.subr.mxu0 0.0
      %2405 = vmatpush1.msra.mxu0 0.0
      %2406 = vmatprep.subr.mxu0 0.0
      %2407 = vmatpush1.msra.mxu0 0.0
      %2408 = vmatprep.subr.mxu0 0.0
      %2409 = vmatpush1.msra.mxu0 0.0
      %2410 = vmatprep.subr.mxu0 0.0
      %2411 = vmatpush1.msra.mxu0 0.0
      %2412 = vmatprep.subr.mxu0 0.0
      %2413 = vmatpush1.msra.mxu0 0.0
      %2414 = vmatprep.subr.mxu0 0.0
      %2415 = vmatpush1.msra.mxu0 0.0
      %2416 = vmatprep.subr.mxu0 0.0
      %2417 = vmatpush1.msra.mxu0 0.0
      %2418 = vmatprep.subr.mxu0 0.0
      %2419 = vmatpush1.msra.mxu0 0.0
      %2420 = vmatprep.subr.mxu0 0.0
      %2421 = vmatpush1.msra.mxu0 0.0
      %2422 = vmatprep.subr.mxu0 0.0
      %2423 = vmatpush1.msra.mxu0 0.0
      %2424 = vmatprep.subr.mxu0 0.0
      %2425 = vmatpush1.msra.mxu0 %v905
      %2426 = vmatprep.subr.mxu0 0.0
      %2427 = vmatpush1.msra.mxu0 %v904
      %2428 = vmatprep.subr.mxu0 0.0
      %2429 = vmatpush1.msra.mxu0 %v903
      %2430 = vmatprep.subr.mxu0 0.0
      %2431 = vmatpush1.msra.mxu0 %v902
      %2432 = vmatprep.subr.mxu0 0.0
      %2433 = vmatpush2.msra.mxu0 0.0
      %2434 = vmatprep.subr.mxu0 0.0
      %2435 = vmatpush2.msra.mxu0 0.0
      %2436 = vmatprep.subr.mxu0 0.0
      %2437 = vmatpush2.msra.mxu0 0.0
      %2438 = vmatprep.subr.mxu0 0.0
      %2439 = vmatpush2.msra.mxu0 0.0
      %2440 = vmatprep.subr.mxu0 0.0
      %2441 = vmatpush2.msra.mxu0 0.0
      %2442 = vmatprep.subr.mxu0 0.0
      %2443 = vmatpush2.msra.mxu0 0.0
      %2444 = vmatprep.subr.mxu0 0.0
      %2445 = vmatpush2.msra.mxu0 0.0
      %2446 = vmatprep.subr.mxu0 0.0
      %2447 = vmatpush2.msra.mxu0 0.0
      %2448 = vmatprep.subr.mxu0 0.0
      %2449 = vmatpush2.msra.mxu0 0.0
      %2450 = vmatprep.subr.mxu0 0.0
      %2451 = vmatpush2.msra.mxu0 0.0
      %2452 = vmatprep.subr.mxu0 0.0
      %2453 = vmatpush2.msra.mxu0 0.0
      %2454 = vmatprep.subr.mxu0 0.0
      %2455 = vmatpush2.msra.mxu0 0.0
      %2456 = vmatprep.subr.mxu0 0.0
      %2457 = vmatpush2.msra.mxu0 0.0
      %2458 = vmatprep.subr.mxu0 0.0
      %2459 = vmatpush2.msra.mxu0 0.0
      %2460 = vmatprep.subr.mxu0 0.0
      %2461 = vmatpush2.msra.mxu0 0.0
      %2462 = vmatprep.subr.mxu0 0.0
      %2463 = vmatpush2.msra.mxu0 0.0
      %2464 = vmatprep.mubr.f32.mxu0 0.0
      %2465 = vmatmul.mubr.f32.gmra.mxu0 %v2398
      %v2466 = vpop.f32.mrf.mxu0
      %v2467 = vadd.f32 0.0, %v2466
      %v2468 = vpop.f32.mrf.mxu0
      %2469 = vdwg.mxu0
      %v2471 = vrot.slane %v2397, 5
      %2472 = vrot.lane.b32.xlu0 %v2471, 32
      %v2473 = vpop.permute.xlu0 %2472
      %v2474 = vsel %vm820, %v2473, 0
      %2476 = vmatprep.subr.mxu0 0.0
      %2477 = vmatpush1.msra.mxu0 0.0
      %2478 = vmatprep.subr.mxu0 0.0
      %2479 = vmatpush1.msra.mxu0 0.0
      %2480 = vmatprep.subr.mxu0 0.0
      %2481 = vmatpush1.msra.mxu0 0.0
      %2482 = vmatprep.subr.mxu0 0.0
      %2483 = vmatpush1.msra.mxu0 0.0
      %2484 = vmatprep.subr.mxu0 0.0
      %2485 = vmatpush1.msra.mxu0 0.0
      %2486 = vmatprep.subr.mxu0 0.0
      %2487 = vmatpush1.msra.mxu0 0.0
      %2488 = vmatprep.subr.mxu0 0.0
      %2489 = vmatpush1.msra.mxu0 0.0
      %2490 = vmatprep.subr.mxu0 0.0
      %2491 = vmatpush1.msra.mxu0 0.0
      %2492 = vmatprep.subr.mxu0 0.0
      %2493 = vmatpush1.msra.mxu0 0.0
      %2494 = vmatprep.subr.mxu0 0.0
      %2495 = vmatpush1.msra.mxu0 0.0
      %2496 = vmatprep.subr.mxu0 0.0
      %2497 = vmatpush1.msra.mxu0 0.0
      %2498 = vmatprep.subr.mxu0 0.0
      %2499 = vmatpush1.msra.mxu0 0.0
      %2500 = vmatprep.subr.mxu0 0.0
      %2501 = vmatpush1.msra.mxu0 %v901
      %2502 = vmatprep.subr.mxu0 0.0
      %2503 = vmatpush1.msra.mxu0 %v900
      %2504 = vmatprep.subr.mxu0 0.0
      %2505 = vmatpush1.msra.mxu0 %v899
      %2506 = vmatprep.subr.mxu0 0.0
      %2507 = vmatpush1.msra.mxu0 %v898
      %2508 = vmatprep.subr.mxu0 0.0
      %2509 = vmatpush2.msra.mxu0 0.0
      %2510 = vmatprep.subr.mxu0 0.0
      %2511 = vmatpush2.msra.mxu0 0.0
      %2512 = vmatprep.subr.mxu0 0.0
      %2513 = vmatpush2.msra.mxu0 0.0
      %2514 = vmatprep.subr.mxu0 0.0
      %2515 = vmatpush2.msra.mxu0 0.0
      %2516 = vmatprep.subr.mxu0 0.0
      %2517 = vmatpush2.msra.mxu0 0.0
      %2518 = vmatprep.subr.mxu0 0.0
      %2519 = vmatpush2.msra.mxu0 0.0
      %2520 = vmatprep.subr.mxu0 0.0
      %2521 = vmatpush2.msra.mxu0 0.0
      %2522 = vmatprep.subr.mxu0 0.0
      %2523 = vmatpush2.msra.mxu0 0.0
      %2524 = vmatprep.subr.mxu0 0.0
      %2525 = vmatpush2.msra.mxu0 0.0
      %2526 = vmatprep.subr.mxu0 0.0
      %2527 = vmatpush2.msra.mxu0 0.0
      %2528 = vmatprep.subr.mxu0 0.0
      %2529 = vmatpush2.msra.mxu0 0.0
      %2530 = vmatprep.subr.mxu0 0.0
      %2531 = vmatpush2.msra.mxu0 0.0
      %2532 = vmatprep.subr.mxu0 0.0
      %2533 = vmatpush2.msra.mxu0 0.0
      %2534 = vmatprep.subr.mxu0 0.0
      %2535 = vmatpush2.msra.mxu0 0.0
      %2536 = vmatprep.subr.mxu0 0.0
      %2537 = vmatpush2.msra.mxu0 0.0
      %2538 = vmatprep.subr.mxu0 0.0
      %2539 = vmatpush2.msra.mxu0 0.0
      %2540 = vmatprep.mubr.f32.mxu0 0.0
      %2541 = vmatmul.mubr.f32.gmra.mxu0 %v2474
      %v2542 = vpop.f32.mrf.mxu0
      %v2543 = vadd.f32 %v2467, %v2542
      %v2544 = vpop.f32.mrf.mxu0
      %2545 = vdwg.mxu0
      %v2546 = vadd.f32 %v2543, %v906
      %v2547 = vxor.u32 %v2546, 2147483648
      %v2548 = vmul.f32 %v2547, 1.442695
      %v2549 = vpow.pop %v2548
      %v2550 = vadd.f32 %v2549, 1.0
      %v2551 = vrcp.pop %v2550
      %v2552 = vmul.f32 1.0, %v2551
      %v2553 = vtanh.pop %v2546
      %v2554 = vmul.f32 %v2552, %v2285
      %2556 = vrot.lane.b32.xlu0 %v2553, 64
      %v2557 = vpop.permute.xlu0 %2556
      %v2559 = vmul.f32 %v2552, %v2557
      %2561 = vrot.lane.b32.xlu0 %v2559, 32
      %v2562 = vpop.permute.xlu0 %2561
      %v2564 = vadd.f32 %v2554, %v2562
      %v2565 = vtanh.pop %v2564
      %2567 = vrot.lane.b32.xlu0 %v2565, 64
      %v2568 = vpop.permute.xlu0 %2567
      %v2570 = vmul.f32 %v2552, %v2568
      %2572 = vrot.lane.b32.xlu0 %v2570, 32
      %v2573 = vpop.permute.xlu0 %2572
      %2575 = vst.msk [vmem:[#allocation2 + $0x5] sm:$0x1] %vm1179, %v2573
      %2576 = vmatprep.subr.mxu0 0.0
      %2577 = vmatpush1.msra.mxu0 0.0
      %2578 = vmatprep.subr.mxu0 0.0
      %2579 = vmatpush1.msra.mxu0 0.0
      %2580 = vmatprep.subr.mxu0 0.0
      %2581 = vmatpush1.msra.mxu0 0.0
      %2582 = vmatprep.subr.mxu0 0.0
      %2583 = vmatpush1.msra.mxu0 0.0
      %2584 = vmatprep.subr.mxu0 0.0
      %2585 = vmatpush1.msra.mxu0 0.0
      %2586 = vmatprep.subr.mxu0 0.0
      %2587 = vmatpush1.msra.mxu0 0.0
      %2588 = vmatprep.subr.mxu0 0.0
      %2589 = vmatpush1.msra.mxu0 0.0
      %2590 = vmatprep.subr.mxu0 0.0
      %2591 = vmatpush1.msra.mxu0 0.0
      %2592 = vmatprep.subr.mxu0 0.0
      %2593 = vmatpush1.msra.mxu0 0.0
      %2594 = vmatprep.subr.mxu0 0.0
      %2595 = vmatpush1.msra.mxu0 0.0
      %2596 = vmatprep.subr.mxu0 0.0
      %2597 = vmatpush1.msra.mxu0 0.0
      %2598 = vmatprep.subr.mxu0 0.0
      %2599 = vmatpush1.msra.mxu0 0.0
      %2600 = vmatprep.subr.mxu0 0.0
      %2601 = vmatpush1.msra.mxu0 %v897
      %2602 = vmatprep.subr.mxu0 0.0
      %2603 = vmatpush1.msra.mxu0 %v896
      %2604 = vmatprep.subr.mxu0 0.0
      %2605 = vmatpush1.msra.mxu0 %v895
      %2606 = vmatprep.subr.mxu0 0.0
      %2607 = vmatpush1.msra.mxu0 %v894
      %2608 = vmatprep.subr.mxu0 0.0
      %2609 = vmatpush2.msra.mxu0 0.0
      %2610 = vmatprep.subr.mxu0 0.0
      %2611 = vmatpush2.msra.mxu0 0.0
      %2612 = vmatprep.subr.mxu0 0.0
      %2613 = vmatpush2.msra.mxu0 0.0
      %2614 = vmatprep.subr.mxu0 0.0
      %2615 = vmatpush2.msra.mxu0 0.0
      %2616 = vmatprep.subr.mxu0 0.0
      %2617 = vmatpush2.msra.mxu0 0.0
      %2618 = vmatprep.subr.mxu0 0.0
      %2619 = vmatpush2.msra.mxu0 0.0
      %2620 = vmatprep.subr.mxu0 0.0
      %2621 = vmatpush2.msra.mxu0 0.0
      %2622 = vmatprep.subr.mxu0 0.0
      %2623 = vmatpush2.msra.mxu0 0.0
      %2624 = vmatprep.subr.mxu0 0.0
      %2625 = vmatpush2.msra.mxu0 0.0
      %2626 = vmatprep.subr.mxu0 0.0
      %2627 = vmatpush2.msra.mxu0 0.0
      %2628 = vmatprep.subr.mxu0 0.0
      %2629 = vmatpush2.msra.mxu0 0.0
      %2630 = vmatprep.subr.mxu0 0.0
      %2631 = vmatpush2.msra.mxu0 0.0
      %2632 = vmatprep.subr.mxu0 0.0
      %2633 = vmatpush2.msra.mxu0 0.0
      %2634 = vmatprep.subr.mxu0 0.0
      %2635 = vmatpush2.msra.mxu0 0.0
      %2636 = vmatprep.subr.mxu0 0.0
      %2637 = vmatpush2.msra.mxu0 0.0
      %2638 = vmatprep.subr.mxu0 0.0
      %2639 = vmatpush2.msra.mxu0 0.0
      %2640 = vmatprep.mubr.f32.mxu0 0.0
      %2641 = vmatmul.mubr.f32.gmra.mxu0 %v2474
      %v2642 = vpop.f32.mrf.mxu0
      %v2643 = vadd.f32 0.0, %v2642
      %v2644 = vpop.f32.mrf.mxu0
      %2645 = vdwg.mxu0
      %v2647 = vrot.slane %v2643, 2
      %v2649 = vadd.f32 %v891, %v2647
      %v2650 = vxor.u32 %v2649, 2147483648
      %v2651 = vmul.f32 %v2650, 1.442695
      %v2652 = vpow.pop %v2651
      %v2653 = vadd.f32 %v2652, 1.0
      %v2654 = vrcp.pop %v2653
      %v2655 = vmul.f32 1.0, %v2654
      %v2656 = vtanh.pop %v2649
      %v2658 = vrot.slane %v2391, 7
      %v2660 = vmul.f32 %v2655, %v2658
      %2662 = vrot.lane.b32.xlu0 %v2656, 64
      %v2663 = vpop.permute.xlu0 %2662
      %v2665 = vmul.f32 %v2655, %v2663
      %2667 = vrot.lane.b32.xlu0 %v2665, 32
      %v2668 = vpop.permute.xlu0 %2667
      %v2670 = vadd.f32 %v2660, %v2668
      %v2671 = vtanh.pop %v2670
      %2673 = vrot.lane.b32.xlu0 %v2671, 64
      %v2674 = vpop.permute.xlu0 %2673
      %v2676 = vmul.f32 %v2655, %v2674
      %v2677 = vsel %vm820, %v2573, 0
      %2679 = vmatprep.subr.mxu0 0.0
      %2680 = vmatpush1.msra.mxu0 0.0
      %2681 = vmatprep.subr.mxu0 0.0
      %2682 = vmatpush1.msra.mxu0 0.0
      %2683 = vmatprep.subr.mxu0 0.0
      %2684 = vmatpush1.msra.mxu0 0.0
      %2685 = vmatprep.subr.mxu0 0.0
      %2686 = vmatpush1.msra.mxu0 0.0
      %2687 = vmatprep.subr.mxu0 0.0
      %2688 = vmatpush1.msra.mxu0 0.0
      %2689 = vmatprep.subr.mxu0 0.0
      %2690 = vmatpush1.msra.mxu0 0.0
      %2691 = vmatprep.subr.mxu0 0.0
      %2692 = vmatpush1.msra.mxu0 0.0
      %2693 = vmatprep.subr.mxu0 0.0
      %2694 = vmatpush1.msra.mxu0 0.0
      %2695 = vmatprep.subr.mxu0 0.0
      %2696 = vmatpush1.msra.mxu0 0.0
      %2697 = vmatprep.subr.mxu0 0.0
      %2698 = vmatpush1.msra.mxu0 0.0
      %2699 = vmatprep.subr.mxu0 0.0
      %2700 = vmatpush1.msra.mxu0 0.0
      %2701 = vmatprep.subr.mxu0 0.0
      %2702 = vmatpush1.msra.mxu0 0.0
      %2703 = vmatprep.subr.mxu0 0.0
      %2704 = vmatpush1.msra.mxu0 %v905
      %2705 = vmatprep.subr.mxu0 0.0
      %2706 = vmatpush1.msra.mxu0 %v904
      %2707 = vmatprep.subr.mxu0 0.0
      %2708 = vmatpush1.msra.mxu0 %v903
      %2709 = vmatprep.subr.mxu0 0.0
      %2710 = vmatpush1.msra.mxu0 %v902
      %2711 = vmatprep.subr.mxu0 0.0
      %2712 = vmatpush2.msra.mxu0 0.0
      %2713 = vmatprep.subr.mxu0 0.0
      %2714 = vmatpush2.msra.mxu0 0.0
      %2715 = vmatprep.subr.mxu0 0.0
      %2716 = vmatpush2.msra.mxu0 0.0
      %2717 = vmatprep.subr.mxu0 0.0
      %2718 = vmatpush2.msra.mxu0 0.0
      %2719 = vmatprep.subr.mxu0 0.0
      %2720 = vmatpush2.msra.mxu0 0.0
      %2721 = vmatprep.subr.mxu0 0.0
      %2722 = vmatpush2.msra.mxu0 0.0
      %2723 = vmatprep.subr.mxu0 0.0
      %2724 = vmatpush2.msra.mxu0 0.0
      %2725 = vmatprep.subr.mxu0 0.0
      %2726 = vmatpush2.msra.mxu0 0.0
      %2727 = vmatprep.subr.mxu0 0.0
      %2728 = vmatpush2.msra.mxu0 0.0
      %2729 = vmatprep.subr.mxu0 0.0
      %2730 = vmatpush2.msra.mxu0 0.0
      %2731 = vmatprep.subr.mxu0 0.0
      %2732 = vmatpush2.msra.mxu0 0.0
      %2733 = vmatprep.subr.mxu0 0.0
      %2734 = vmatpush2.msra.mxu0 0.0
      %2735 = vmatprep.subr.mxu0 0.0
      %2736 = vmatpush2.msra.mxu0 0.0
      %2737 = vmatprep.subr.mxu0 0.0
      %2738 = vmatpush2.msra.mxu0 0.0
      %2739 = vmatprep.subr.mxu0 0.0
      %2740 = vmatpush2.msra.mxu0 0.0
      %2741 = vmatprep.subr.mxu0 0.0
      %2742 = vmatpush2.msra.mxu0 0.0
      %2743 = vmatprep.mubr.f32.mxu0 0.0
      %2744 = vmatmul.mubr.f32.gmra.mxu0 %v2677
      %v2745 = vpop.f32.mrf.mxu0
      %v2746 = vadd.f32 0.0, %v2745
      %v2747 = vpop.f32.mrf.mxu0
      %2748 = vdwg.mxu0
      %v2750 = vrot.slane %v2676, 6
      %2751 = vrot.lane.b32.xlu0 %v2750, 32
      %v2752 = vpop.permute.xlu0 %2751
      %v2753 = vsel %vm820, %v2752, 0
      %2755 = vmatprep.subr.mxu0 0.0
      %2756 = vmatpush1.msra.mxu0 0.0
      %2757 = vmatprep.subr.mxu0 0.0
      %2758 = vmatpush1.msra.mxu0 0.0
      %2759 = vmatprep.subr.mxu0 0.0
      %2760 = vmatpush1.msra.mxu0 0.0
      %2761 = vmatprep.subr.mxu0 0.0
      %2762 = vmatpush1.msra.mxu0 0.0
      %2763 = vmatprep.subr.mxu0 0.0
      %2764 = vmatpush1.msra.mxu0 0.0
      %2765 = vmatprep.subr.mxu0 0.0
      %2766 = vmatpush1.msra.mxu0 0.0
      %2767 = vmatprep.subr.mxu0 0.0
      %2768 = vmatpush1.msra.mxu0 0.0
      %2769 = vmatprep.subr.mxu0 0.0
      %2770 = vmatpush1.msra.mxu0 0.0
      %2771 = vmatprep.subr.mxu0 0.0
      %2772 = vmatpush1.msra.mxu0 0.0
      %2773 = vmatprep.subr.mxu0 0.0
      %2774 = vmatpush1.msra.mxu0 0.0
      %2775 = vmatprep.subr.mxu0 0.0
      %2776 = vmatpush1.msra.mxu0 0.0
      %2777 = vmatprep.subr.mxu0 0.0
      %2778 = vmatpush1.msra.mxu0 0.0
      %2779 = vmatprep.subr.mxu0 0.0
      %2780 = vmatpush1.msra.mxu0 %v901
      %2781 = vmatprep.subr.mxu0 0.0
      %2782 = vmatpush1.msra.mxu0 %v900
      %2783 = vmatprep.subr.mxu0 0.0
      %2784 = vmatpush1.msra.mxu0 %v899
      %2785 = vmatprep.subr.mxu0 0.0
      %2786 = vmatpush1.msra.mxu0 %v898
      %2787 = vmatprep.subr.mxu0 0.0
      %2788 = vmatpush2.msra.mxu0 0.0
      %2789 = vmatprep.subr.mxu0 0.0
      %2790 = vmatpush2.msra.mxu0 0.0
      %2791 = vmatprep.subr.mxu0 0.0
      %2792 = vmatpush2.msra.mxu0 0.0
      %2793 = vmatprep.subr.mxu0 0.0
      %2794 = vmatpush2.msra.mxu0 0.0
      %2795 = vmatprep.subr.mxu0 0.0
      %2796 = vmatpush2.msra.mxu0 0.0
      %2797 = vmatprep.subr.mxu0 0.0
      %2798 = vmatpush2.msra.mxu0 0.0
      %2799 = vmatprep.subr.mxu0 0.0
      %2800 = vmatpush2.msra.mxu0 0.0
      %2801 = vmatprep.subr.mxu0 0.0
      %2802 = vmatpush2.msra.mxu0 0.0
      %2803 = vmatprep.subr.mxu0 0.0
      %2804 = vmatpush2.msra.mxu0 0.0
      %2805 = vmatprep.subr.mxu0 0.0
      %2806 = vmatpush2.msra.mxu0 0.0
      %2807 = vmatprep.subr.mxu0 0.0
      %2808 = vmatpush2.msra.mxu0 0.0
      %2809 = vmatprep.subr.mxu0 0.0
      %2810 = vmatpush2.msra.mxu0 0.0
      %2811 = vmatprep.subr.mxu0 0.0
      %2812 = vmatpush2.msra.mxu0 0.0
      %2813 = vmatprep.subr.mxu0 0.0
      %2814 = vmatpush2.msra.mxu0 0.0
      %2815 = vmatprep.subr.mxu0 0.0
      %2816 = vmatpush2.msra.mxu0 0.0
      %2817 = vmatprep.subr.mxu0 0.0
      %2818 = vmatpush2.msra.mxu0 0.0
      %2819 = vmatprep.mubr.f32.mxu0 0.0
      %2820 = vmatmul.mubr.f32.gmra.mxu0 %v2753
      %v2821 = vpop.f32.mrf.mxu0
      %v2822 = vadd.f32 %v2746, %v2821
      %v2823 = vpop.f32.mrf.mxu0
      %2824 = vdwg.mxu0
      %v2825 = vadd.f32 %v2822, %v906
      %v2826 = vxor.u32 %v2825, 2147483648
      %v2827 = vmul.f32 %v2826, 1.442695
      %v2828 = vpow.pop %v2827
      %v2829 = vadd.f32 %v2828, 1.0
      %v2830 = vrcp.pop %v2829
      %v2831 = vmul.f32 1.0, %v2830
      %v2832 = vtanh.pop %v2825
      %v2833 = vmul.f32 %v2831, %v2564
      %2835 = vrot.lane.b32.xlu0 %v2832, 64
      %v2836 = vpop.permute.xlu0 %2835
      %v2838 = vmul.f32 %v2831, %v2836
      %2840 = vrot.lane.b32.xlu0 %v2838, 32
      %v2841 = vpop.permute.xlu0 %2840
      %v2843 = vadd.f32 %v2833, %v2841
      %v2844 = vtanh.pop %v2843
      %2846 = vrot.lane.b32.xlu0 %v2844, 64
      %v2847 = vpop.permute.xlu0 %2846
      %v2849 = vmul.f32 %v2831, %v2847
      %2851 = vrot.lane.b32.xlu0 %v2849, 32
      %v2852 = vpop.permute.xlu0 %2851
      %2854 = vst.msk [vmem:[#allocation2 + $0x6] sm:$0x1] %vm1179, %v2852
      %2855 = vmatprep.subr.mxu0 0.0
      %2856 = vmatpush1.msra.mxu0 0.0
      %2857 = vmatprep.subr.mxu0 0.0
      %2858 = vmatpush1.msra.mxu0 0.0
      %2859 = vmatprep.subr.mxu0 0.0
      %2860 = vmatpush1.msra.mxu0 0.0
      %2861 = vmatprep.subr.mxu0 0.0
      %2862 = vmatpush1.msra.mxu0 0.0
      %2863 = vmatprep.subr.mxu0 0.0
      %2864 = vmatpush1.msra.mxu0 0.0
      %2865 = vmatprep.subr.mxu0 0.0
      %2866 = vmatpush1.msra.mxu0 0.0
      %2867 = vmatprep.subr.mxu0 0.0
      %2868 = vmatpush1.msra.mxu0 0.0
      %2869 = vmatprep.subr.mxu0 0.0
      %2870 = vmatpush1.msra.mxu0 0.0
      %2871 = vmatprep.subr.mxu0 0.0
      %2872 = vmatpush1.msra.mxu0 0.0
      %2873 = vmatprep.subr.mxu0 0.0
      %2874 = vmatpush1.msra.mxu0 0.0
      %2875 = vmatprep.subr.mxu0 0.0
      %2876 = vmatpush1.msra.mxu0 0.0
      %2877 = vmatprep.subr.mxu0 0.0
      %2878 = vmatpush1.msra.mxu0 0.0
      %2879 = vmatprep.subr.mxu0 0.0
      %2880 = vmatpush1.msra.mxu0 %v897
      %2881 = vmatprep.subr.mxu0 0.0
      %2882 = vmatpush1.msra.mxu0 %v896
      %2883 = vmatprep.subr.mxu0 0.0
      %2884 = vmatpush1.msra.mxu0 %v895
      %2885 = vmatprep.subr.mxu0 0.0
      %2886 = vmatpush1.msra.mxu0 %v894
      %2887 = vmatprep.subr.mxu0 0.0
      %2888 = vmatpush2.msra.mxu0 0.0
      %2889 = vmatprep.subr.mxu0 0.0
      %2890 = vmatpush2.msra.mxu0 0.0
      %2891 = vmatprep.subr.mxu0 0.0
      %2892 = vmatpush2.msra.mxu0 0.0
      %2893 = vmatprep.subr.mxu0 0.0
      %2894 = vmatpush2.msra.mxu0 0.0
      %2895 = vmatprep.subr.mxu0 0.0
      %2896 = vmatpush2.msra.mxu0 0.0
      %2897 = vmatprep.subr.mxu0 0.0
      %2898 = vmatpush2.msra.mxu0 0.0
      %2899 = vmatprep.subr.mxu0 0.0
      %2900 = vmatpush2.msra.mxu0 0.0
      %2901 = vmatprep.subr.mxu0 0.0
      %2902 = vmatpush2.msra.mxu0 0.0
      %2903 = vmatprep.subr.mxu0 0.0
      %2904 = vmatpush2.msra.mxu0 0.0
      %2905 = vmatprep.subr.mxu0 0.0
      %2906 = vmatpush2.msra.mxu0 0.0
      %2907 = vmatprep.subr.mxu0 0.0
      %2908 = vmatpush2.msra.mxu0 0.0
      %2909 = vmatprep.subr.mxu0 0.0
      %2910 = vmatpush2.msra.mxu0 0.0
      %2911 = vmatprep.subr.mxu0 0.0
      %2912 = vmatpush2.msra.mxu0 0.0
      %2913 = vmatprep.subr.mxu0 0.0
      %2914 = vmatpush2.msra.mxu0 0.0
      %2915 = vmatprep.subr.mxu0 0.0
      %2916 = vmatpush2.msra.mxu0 0.0
      %2917 = vmatprep.subr.mxu0 0.0
      %2918 = vmatpush2.msra.mxu0 0.0
      %2919 = vmatprep.mubr.f32.mxu0 0.0
      %2920 = vmatmul.mubr.f32.gmra.mxu0 %v2753
      %v2921 = vpop.f32.mrf.mxu0
      %v2922 = vadd.f32 0.0, %v2921
      %v2923 = vpop.f32.mrf.mxu0
      %2924 = vdwg.mxu0
      %v2926 = vrot.slane %v2922, 1
      %v2928 = vadd.f32 %v891, %v2926
      %v2929 = vxor.u32 %v2928, 2147483648
      %v2930 = vmul.f32 %v2929, 1.442695
      %v2931 = vpow.pop %v2930
      %v2932 = vadd.f32 %v2931, 1.0
      %v2933 = vrcp.pop %v2932
      %v2934 = vmul.f32 1.0, %v2933
      %v2935 = vtanh.pop %v2928
      %v2937 = vrot.slane %v2670, 7
      %v2939 = vmul.f32 %v2934, %v2937
      %2941 = vrot.lane.b32.xlu0 %v2935, 64
      %v2942 = vpop.permute.xlu0 %2941
      %v2944 = vmul.f32 %v2934, %v2942
      %2946 = vrot.lane.b32.xlu0 %v2944, 32
      %v2947 = vpop.permute.xlu0 %2946
      %v2949 = vadd.f32 %v2939, %v2947
      %v2950 = vtanh.pop %v2949
      %2952 = vrot.lane.b32.xlu0 %v2950, 64
      %v2953 = vpop.permute.xlu0 %2952
      %v2955 = vmul.f32 %v2934, %v2953
      %v2956 = vsel %vm820, %v2852, 0
      %2958 = vmatprep.subr.mxu0 0.0
      %2959 = vmatpush1.msra.mxu0 0.0
      %2960 = vmatprep.subr.mxu0 0.0
      %2961 = vmatpush1.msra.mxu0 0.0
      %2962 = vmatprep.subr.mxu0 0.0
      %2963 = vmatpush1.msra.mxu0 0.0
      %2964 = vmatprep.subr.mxu0 0.0
      %2965 = vmatpush1.msra.mxu0 0.0
      %2966 = vmatprep.subr.mxu0 0.0
      %2967 = vmatpush1.msra.mxu0 0.0
      %2968 = vmatprep.subr.mxu0 0.0
      %2969 = vmatpush1.msra.mxu0 0.0
      %2970 = vmatprep.subr.mxu0 0.0
      %2971 = vmatpush1.msra.mxu0 0.0
      %2972 = vmatprep.subr.mxu0 0.0
      %2973 = vmatpush1.msra.mxu0 0.0
      %2974 = vmatprep.subr.mxu0 0.0
      %2975 = vmatpush1.msra.mxu0 0.0
      %2976 = vmatprep.subr.mxu0 0.0
      %2977 = vmatpush1.msra.mxu0 0.0
      %2978 = vmatprep.subr.mxu0 0.0
      %2979 = vmatpush1.msra.mxu0 0.0
      %2980 = vmatprep.subr.mxu0 0.0
      %2981 = vmatpush1.msra.mxu0 0.0
      %2982 = vmatprep.subr.mxu0 0.0
      %2983 = vmatpush1.msra.mxu0 %v905
      %2984 = vmatprep.subr.mxu0 0.0
      %2985 = vmatpush1.msra.mxu0 %v904
      %2986 = vmatprep.subr.mxu0 0.0
      %2987 = vmatpush1.msra.mxu0 %v903
      %2988 = vmatprep.subr.mxu0 0.0
      %2989 = vmatpush1.msra.mxu0 %v902
      %2990 = vmatprep.subr.mxu0 0.0
      %2991 = vmatpush2.msra.mxu0 0.0
      %2992 = vmatprep.subr.mxu0 0.0
      %2993 = vmatpush2.msra.mxu0 0.0
      %2994 = vmatprep.subr.mxu0 0.0
      %2995 = vmatpush2.msra.mxu0 0.0
      %2996 = vmatprep.subr.mxu0 0.0
      %2997 = vmatpush2.msra.mxu0 0.0
      %2998 = vmatprep.subr.mxu0 0.0
      %2999 = vmatpush2.msra.mxu0 0.0
      %3000 = vmatprep.subr.mxu0 0.0
      %3001 = vmatpush2.msra.mxu0 0.0
      %3002 = vmatprep.subr.mxu0 0.0
      %3003 = vmatpush2.msra.mxu0 0.0
      %3004 = vmatprep.subr.mxu0 0.0
      %3005 = vmatpush2.msra.mxu0 0.0
      %3006 = vmatprep.subr.mxu0 0.0
      %3007 = vmatpush2.msra.mxu0 0.0
      %3008 = vmatprep.subr.mxu0 0.0
      %3009 = vmatpush2.msra.mxu0 0.0
      %3010 = vmatprep.subr.mxu0 0.0
      %3011 = vmatpush2.msra.mxu0 0.0
      %3012 = vmatprep.subr.mxu0 0.0
      %3013 = vmatpush2.msra.mxu0 0.0
      %3014 = vmatprep.subr.mxu0 0.0
      %3015 = vmatpush2.msra.mxu0 0.0
      %3016 = vmatprep.subr.mxu0 0.0
      %3017 = vmatpush2.msra.mxu0 0.0
      %3018 = vmatprep.subr.mxu0 0.0
      %3019 = vmatpush2.msra.mxu0 0.0
      %3020 = vmatprep.subr.mxu0 0.0
      %3021 = vmatpush2.msra.mxu0 0.0
      %3022 = vmatprep.mubr.f32.mxu0 0.0
      %3023 = vmatmul.mubr.f32.gmra.mxu0 %v2956
      %v3024 = vpop.f32.mrf.mxu0
      %v3025 = vadd.f32 0.0, %v3024
      %v3026 = vpop.f32.mrf.mxu0
      %3027 = vdwg.mxu0
      %v3029 = vrot.slane %v2955, 7
      %3030 = vrot.lane.b32.xlu0 %v3029, 32
      %v3031 = vpop.permute.xlu0 %3030
      %v3032 = vsel %vm820, %v3031, 0
      %3034 = vmatprep.subr.mxu0 0.0
      %3035 = vmatpush1.msra.mxu0 0.0
      %3036 = vmatprep.subr.mxu0 0.0
      %3037 = vmatpush1.msra.mxu0 0.0
      %3038 = vmatprep.subr.mxu0 0.0
      %3039 = vmatpush1.msra.mxu0 0.0
      %3040 = vmatprep.subr.mxu0 0.0
      %3041 = vmatpush1.msra.mxu0 0.0
      %3042 = vmatprep.subr.mxu0 0.0
      %3043 = vmatpush1.msra.mxu0 0.0
      %3044 = vmatprep.subr.mxu0 0.0
      %3045 = vmatpush1.msra.mxu0 0.0
      %3046 = vmatprep.subr.mxu0 0.0
      %3047 = vmatpush1.msra.mxu0 0.0
      %3048 = vmatprep.subr.mxu0 0.0
      %3049 = vmatpush1.msra.mxu0 0.0
      %3050 = vmatprep.subr.mxu0 0.0
      %3051 = vmatpush1.msra.mxu0 0.0
      %3052 = vmatprep.subr.mxu0 0.0
      %3053 = vmatpush1.msra.mxu0 0.0
      %3054 = vmatprep.subr.mxu0 0.0
      %3055 = vmatpush1.msra.mxu0 0.0
      %3056 = vmatprep.subr.mxu0 0.0
      %3057 = vmatpush1.msra.mxu0 0.0
      %3058 = vmatprep.subr.mxu0 0.0
      %3059 = vmatpush1.msra.mxu0 %v901
      %3060 = vmatprep.subr.mxu0 0.0
      %3061 = vmatpush1.msra.mxu0 %v900
      %3062 = vmatprep.subr.mxu0 0.0
      %3063 = vmatpush1.msra.mxu0 %v899
      %3064 = vmatprep.subr.mxu0 0.0
      %3065 = vmatpush1.msra.mxu0 %v898
      %3066 = vmatprep.subr.mxu0 0.0
      %3067 = vmatpush2.msra.mxu0 0.0
      %3068 = vmatprep.subr.mxu0 0.0
      %3069 = vmatpush2.msra.mxu0 0.0
      %3070 = vmatprep.subr.mxu0 0.0
      %3071 = vmatpush2.msra.mxu0 0.0
      %3072 = vmatprep.subr.mxu0 0.0
      %3073 = vmatpush2.msra.mxu0 0.0
      %3074 = vmatprep.subr.mxu0 0.0
      %3075 = vmatpush2.msra.mxu0 0.0
      %3076 = vmatprep.subr.mxu0 0.0
      %3077 = vmatpush2.msra.mxu0 0.0
      %3078 = vmatprep.subr.mxu0 0.0
      %3079 = vmatpush2.msra.mxu0 0.0
      %3080 = vmatprep.subr.mxu0 0.0
      %3081 = vmatpush2.msra.mxu0 0.0
      %3082 = vmatprep.subr.mxu0 0.0
      %3083 = vmatpush2.msra.mxu0 0.0
      %3084 = vmatprep.subr.mxu0 0.0
      %3085 = vmatpush2.msra.mxu0 0.0
      %3086 = vmatprep.subr.mxu0 0.0
      %3087 = vmatpush2.msra.mxu0 0.0
      %3088 = vmatprep.subr.mxu0 0.0
      %3089 = vmatpush2.msra.mxu0 0.0
      %3090 = vmatprep.subr.mxu0 0.0
      %3091 = vmatpush2.msra.mxu0 0.0
      %3092 = vmatprep.subr.mxu0 0.0
      %3093 = vmatpush2.msra.mxu0 0.0
      %3094 = vmatprep.subr.mxu0 0.0
      %3095 = vmatpush2.msra.mxu0 0.0
      %3096 = vmatprep.subr.mxu0 0.0
      %3097 = vmatpush2.msra.mxu0 0.0
      %3098 = vmatprep.mubr.f32.mxu0 0.0
      %3099 = vmatmul.mubr.f32.gmra.mxu0 %v3032
      %v3100 = vpop.f32.mrf.mxu0
      %v3101 = vadd.f32 %v3025, %v3100
      %v3102 = vpop.f32.mrf.mxu0
      %3103 = vdwg.mxu0
      %v3104 = vadd.f32 %v3101, %v906
      %v3105 = vxor.u32 %v3104, 2147483648
      %v3106 = vmul.f32 %v3105, 1.442695
      %v3107 = vpow.pop %v3106
      %v3108 = vadd.f32 %v3107, 1.0
      %v3109 = vrcp.pop %v3108
      %v3110 = vmul.f32 1.0, %v3109
      %v3111 = vtanh.pop %v3104
      %v3112 = vmul.f32 %v3110, %v2843
      %3114 = vrot.lane.b32.xlu0 %v3111, 64
      %v3115 = vpop.permute.xlu0 %3114
      %v3117 = vmul.f32 %v3110, %v3115
      %3119 = vrot.lane.b32.xlu0 %v3117, 32
      %v3120 = vpop.permute.xlu0 %3119
      %v3122 = vadd.f32 %v3112, %v3120
      %v3123 = vtanh.pop %v3122
      %3125 = vrot.lane.b32.xlu0 %v3123, 64
      %v3126 = vpop.permute.xlu0 %3125
      %v3128 = vmul.f32 %v3110, %v3126
      %3130 = vrot.lane.b32.xlu0 %v3128, 32
      %v3131 = vpop.permute.xlu0 %3130
      %3133 = vst.msk [vmem:[#allocation2 + $0x7] sm:$0x1] %vm1179, %v3131
      %v3134 = vld [vmem:[#allocation2] sm:$0xff]
      %v3135 = vld [vmem:[%s11] sm:$0xff]
      %v3136 = vld [vmem:[%s11 + $0x8] sm:$0xff]
      %v3137 = vld [vmem:[%s11 + $0x10] sm:$0xff]
      %v3138 = vld [vmem:[%s11 + $0x18] sm:$0xff]
      %v3139 = vld [vmem:[%s12] sm:$0x1]
      %v3141 = vlaneseq
      %v3142 = vshrl.u32 %v3141, 7
      %v3143 = vsub.s32 0, %v3142
      %v3144 = vrot.slane %v3139, %v3143
      %v3147 = vsel %vm820, %v3134, 0
      %3149 = vmatprep.subr.mxu0 0.0
      %3150 = vmatpush1.msra.mxu0 0.0
      %3151 = vmatprep.subr.mxu0 0.0
      %3152 = vmatpush1.msra.mxu0 0.0
      %3153 = vmatprep.subr.mxu0 0.0
      %3154 = vmatpush1.msra.mxu0 0.0
      %3155 = vmatprep.subr.mxu0 0.0
      %3156 = vmatpush1.msra.mxu0 0.0
      %3157 = vmatprep.subr.mxu0 0.0
      %3158 = vmatpush1.msra.mxu0 0.0
      %3159 = vmatprep.subr.mxu0 0.0
      %3160 = vmatpush1.msra.mxu0 0.0
      %3161 = vmatprep.subr.mxu0 0.0
      %3162 = vmatpush1.msra.mxu0 0.0
      %3163 = vmatprep.subr.mxu0 0.0
      %3164 = vmatpush1.msra.mxu0 0.0
      %3165 = vmatprep.subr.mxu0 0.0
      %3166 = vmatpush1.msra.mxu0 0.0
      %3167 = vmatprep.subr.mxu0 0.0
      %3168 = vmatpush1.msra.mxu0 0.0
      %3169 = vmatprep.subr.mxu0 0.0
      %3170 = vmatpush1.msra.mxu0 0.0
      %3171 = vmatprep.subr.mxu0 0.0
      %3172 = vmatpush1.msra.mxu0 0.0
      %3173 = vmatprep.subr.mxu0 0.0
      %3174 = vmatpush1.msra.mxu0 %v3138
      %3175 = vmatprep.subr.mxu0 0.0
      %3176 = vmatpush1.msra.mxu0 %v3137
      %3177 = vmatprep.subr.mxu0 0.0
      %3178 = vmatpush1.msra.mxu0 %v3136
      %3179 = vmatprep.subr.mxu0 0.0
      %3180 = vmatpush1.msra.mxu0 %v3135
      %3181 = vmatprep.subr.mxu0 0.0
      %3182 = vmatpush2.msra.mxu0 0.0
      %3183 = vmatprep.subr.mxu0 0.0
      %3184 = vmatpush2.msra.mxu0 0.0
      %3185 = vmatprep.subr.mxu0 0.0
      %3186 = vmatpush2.msra.mxu0 0.0
      %3187 = vmatprep.subr.mxu0 0.0
      %3188 = vmatpush2.msra.mxu0 0.0
      %3189 = vmatprep.subr.mxu0 0.0
      %3190 = vmatpush2.msra.mxu0 0.0
      %3191 = vmatprep.subr.mxu0 0.0
      %3192 = vmatpush2.msra.mxu0 0.0
      %3193 = vmatprep.subr.mxu0 0.0
      %3194 = vmatpush2.msra.mxu0 0.0
      %3195 = vmatprep.subr.mxu0 0.0
      %3196 = vmatpush2.msra.mxu0 0.0
      %3197 = vmatprep.subr.mxu0 0.0
      %3198 = vmatpush2.msra.mxu0 0.0
      %3199 = vmatprep.subr.mxu0 0.0
      %3200 = vmatpush2.msra.mxu0 0.0
      %3201 = vmatprep.subr.mxu0 0.0
      %3202 = vmatpush2.msra.mxu0 0.0
      %3203 = vmatprep.subr.mxu0 0.0
      %3204 = vmatpush2.msra.mxu0 0.0
      %3205 = vmatprep.subr.mxu0 0.0
      %3206 = vmatpush2.msra.mxu0 0.0
      %3207 = vmatprep.subr.mxu0 0.0
      %3208 = vmatpush2.msra.mxu0 0.0
      %3209 = vmatprep.subr.mxu0 0.0
      %3210 = vmatpush2.msra.mxu0 0.0
      %3211 = vmatprep.subr.mxu0 0.0
      %3212 = vmatpush2.msra.mxu0 0.0
      %3213 = vmatprep.mubr.f32.mxu0 0.0
      %3214 = vmatmul.mubr.f32.gmra.mxu0 %v3147
      %v3215 = vpop.f32.mrf.mxu0
      %v3216 = vadd.f32 %v3144, %v3215
      %v3217 = vpop.f32.mrf.mxu0
      %3218 = vdwg.mxu0
      %v3219 = vxor.u32 %v3216, 2147483648
      %v3220 = vmul.f32 %v3219, 1.442695
      %v3221 = vpow.pop %v3220
      %v3222 = vadd.f32 %v3221, 1.0
      %v3223 = vrcp.pop %v3222
      %v3224 = vmul.f32 1.0, %v3223
      %3226 = vrot.lane.b32.xlu0 %v3224, 126
      %v3227 = vpop.permute.xlu0 %3226
      %v3229 = vmul.f32 %v3216, %v3227
      %vm3230 = vcmask 15360
      %3231 = vst.msk [vmem:[%s435] sm:$0xff] %vm3230, %v3229
      %p3232 = scmp.lt.s32.totalorder %s24, 1
      %s3233 = scalar_select %p3232, %s24, 1
      %s3234 = smul.addr %s3233, 8
      %s3235 = scalar_lea.vmem %s13, %s3234
      // Predicated region
      $region73: #{tpu_custom_call.1} parent=71 // pred_check
        %p3236 = pneg %p320
      $region74: #{tpu_custom_call.1} parent=71 // pred_check_branch
        %3238 = sbr.rel (%p3236) target = $region76
      $region75: #{tpu_custom_call.1} parent=71 // pred_region
        _
      $region76: #{tpu_custom_call.1} parent=71 // pred_fallthru
        _
    $region72: #{tpu_custom_call.1} parent=5 // pred_fallthru
      _
    %p3239 = scmp.le.s32.totalorder 2, %s19
    // Predicated region
    $region77: #{tpu_custom_call.1} parent=5 // pred_check
      %p3240 = pneg %p3239
    $region78: #{tpu_custom_call.1} parent=5 // pred_check_branch
      %3242 = sbr.rel (%p3240) target = $region80
    $region79: #{tpu_custom_call.1} parent=5 // pred_region
      %s3243 = ssub.s32 %s19, 2
      // Predicated region
      $region81: #{tpu_custom_call.1} parent=79 // pred_check
        %p3244 = pneg %p326
      $region82: #{tpu_custom_call.1} parent=79 // pred_check_branch
        %3246 = sbr.rel (%p3244) target = $region84
      $region83: #{tpu_custom_call.1} parent=79 // pred_region
        %p3247 = scmp.lt.s32.totalorder %s25, 1
        %s3248 = scalar_select %p3247, %s25, 1
        %s3249 = smul.addr %s3248, 8
        %s3250 = scalar_lea.vmem %s13, %s3249
      $region84: #{tpu_custom_call.1} parent=79 // pred_fallthru
        _
    $region80: #{tpu_custom_call.1} parent=5 // pred_fallthru
      _
  $region6: #{tpu_custom_call.1} parent=0 // loop_footer
    %s23 = sadd.s32 1, %s19
  $region7: #{tpu_custom_call.1} parent=0 // loop_footer_branch
    %18 = sbr.rel target = $region3
  $region8: #{tpu_custom_call.1} parent=0 // loop_exit
    _

</llo_original>
